<compile_context>
chip_gen: v7x
topology: tpu7x:2x2x1
jax: 0.10.0
libtpu: 0.0.40
codegen_flags: <defaults>
</compile_context>

<pallas_src>
import math
import functools

import jax
import jax.numpy as jnp
import numpy as np
from jax.experimental import pallas as pl
from jax.experimental.pallas import tpu as pltpu


# ----------------------------------------------------------------------------- kernel
def _encoder_layer_kernel(n_heads, dph, eps,
                          x_ref, kmask_ref, rmask_ref,
                          wq_ref, bq_ref, wk_ref, bk_ref, wv_ref, bv_ref,
                          wo_ref, bo_ref,
                          g1_ref, be1_ref,
                          w1_ref, b1_ref, w2_ref, b2_ref,
                          g2_ref, be2_ref,
                          out_ref):
    f32 = jnp.float32
    bf16 = jnp.bfloat16
    Bb, L, D = x_ref.shape
    N = Bb * L
    inv_scale = 1.0 / math.sqrt(dph)

    x = x_ref[...]                                 # (Bb, L, D) f32
    x2 = x.reshape(N, D)                           # leading-dim merge: layout-free
    x2b = x2.astype(bf16)                          # bf16 MXU operand
    kmask = kmask_ref[...]                         # (Bb, 1, L), 1.0 keep / 0.0 pad

    # ---- multi-head self attention: heads accumulated, no slicing / concat ----
    attn = jnp.zeros((N, D), f32)
    for h in range(n_heads):                       # static unroll; leading-axis weight index
        qh = (jnp.dot(x2b, wq_ref[h], preferred_element_type=f32) + bq_ref[h]) * inv_scale
        kh = jnp.dot(x2b, wk_ref[h], preferred_element_type=f32) + bk_ref[h]
        vh = jnp.dot(x2b, wv_ref[h], preferred_element_type=f32) + bv_ref[h]
        qh = qh.reshape(Bb, L, dph).astype(bf16)
        kh = kh.reshape(Bb, L, dph).astype(bf16)
        vh = vh.reshape(Bb, L, dph).astype(bf16)

        s = jnp.einsum("bqd,bkd->bqk", qh, kh,
                       preferred_element_type=f32)            # (Bb, L, L) f32
        s = jnp.where(kmask == 0.0, -1e20, s)                 # masked_fill(mask==0, -1e20)
        s = s - jnp.max(s, axis=-1, keepdims=True)
        e = jnp.exp(s)
        p = e * pl.reciprocal(jnp.sum(e, axis=-1, keepdims=True), approx=True)

        ctx = jnp.einsum("bqk,bkd->bqd", p.astype(bf16), vh,
                         preferred_element_type=f32)          # (Bb, L, dph)
        # accumulate this head's slice of the output projection directly
        attn = attn + jnp.dot(ctx.reshape(N, dph).astype(bf16), wo_ref[h],
                              preferred_element_type=f32)
    attn = attn + bo_ref[...]

    t = x2 + attn                                  # residual (f32)

    def layer_norm(z, g, b):
        mu = jnp.mean(z, axis=-1, keepdims=True)
        var = jnp.mean((z - mu) ** 2, axis=-1, keepdims=True)
        return (z - mu) * jax.lax.rsqrt(var + eps) * g + b

    t = layer_norm(t, g1_ref[...], be1_ref[...])

    # ---- FFN (relu) ----
    h1 = jnp.maximum(
        jnp.dot(t.astype(bf16), w1_ref[...], preferred_element_type=f32) + b1_ref[...], 0.0)
    ffn = jnp.dot(h1.astype(bf16), w2_ref[...], preferred_element_type=f32) + b2_ref[...]

    t = layer_norm(t + ffn, g2_ref[...], be2_ref[...])

    # final mask multiply: tensor *= mask.unsqueeze(-1)  (row mask precomputed as (N, 1))
    t = t * rmask_ref[...]
    out_ref[...] = t.reshape(Bb, L, D).astype(out_ref.dtype)


# ----------------------------------------------------------------------------- weight prep
def _prep_params(params, n_heads):
    """Head-major weight slabs; bf16 for MXU operands, f32 for biases / LN params."""
    D = params["wq"].shape[0]
    dph = D // n_heads
    bf16, f32 = jnp.bfloat16, jnp.float32

    def head_major_w(w):          # (D, D) -> (H, D, dph)
        return jnp.transpose(w.reshape(D, n_heads, dph), (1, 0, 2))

    def head_major_b(b):          # (1, D) -> (H, 1, dph)
        return jnp.transpose(b.reshape(1, n_heads, dph), (1, 0, 2))

    return {
        "wq": head_major_w(params["wq"]).astype(bf16), "bq": head_major_b(params["bq"]).astype(f32),
        "wk": head_major_w(params["wk"]).astype(bf16), "bk": head_major_b(params["bk"]).astype(f32),
        "wv": head_major_w(params["wv"]).astype(bf16), "bv": head_major_b(params["bv"]).astype(f32),
        "wo": params["wo"].reshape(n_heads, dph, D).astype(bf16), "bo": params["bo"].astype(f32),
        "g1": params["g1"].astype(f32), "be1": params["be1"].astype(f32),
        "w1": params["w1"].astype(bf16), "b1": params["b1"].astype(f32),
        "w2": params["w2"].astype(bf16), "b2": params["b2"].astype(f32),
        "g2": params["g2"].astype(f32), "be2": params["be2"].astype(f32),
    }


# ----------------------------------------------------------------------------- wrapper
def transformer_encoder_layer(x, mask, params, n_heads, *, block_b=None):
    B, L, D = x.shape
    assert D % n_heads == 0
    dph = D // n_heads
    if block_b is None:
        block_b = 1
    assert B % block_b == 0

    prep = _prep_params(params, n_heads)
    order = ["wq", "bq", "wk", "bk", "wv", "bv", "wo", "bo",
             "g1", "be1", "w1", "b1", "w2", "b2", "g2", "be2"]
    weights = [prep[k] for k in order]

    kmask = mask.astype(jnp.float32)[:, None, :]           # (B, 1, L)   key mask
    rmask = mask.astype(jnp.float32).reshape(B * L, 1)      # (B*L, 1)    row mask

    def const_spec(a):
        nd = a.ndim
        # constant index_map -> the block is DMA'd once and stays resident
        return pl.BlockSpec(a.shape, lambda b, _nd=nd: (0,) * _nd)

    in_specs = [
        pl.BlockSpec((block_b, L, D), lambda b: (b, 0, 0)),        # x
        pl.BlockSpec((block_b, 1, L), lambda b: (b, 0, 0)),        # key mask
        pl.BlockSpec((block_b * L, 1), lambda b: (b, 0)),          # row mask
    ] + [const_spec(w) for w in weights]

    kernel = functools.partial(_encoder_layer_kernel, n_heads, dph, 1e-5)

    return pl.pallas_call(
        kernel,
        out_shape=jax.ShapeDtypeStruct((B, L, D), jnp.float32),
        grid=(B // block_b,),
        in_specs=in_specs,
        out_specs=pl.BlockSpec((block_b, L, D), lambda b: (b, 0, 0)),
        compiler_params=pltpu.CompilerParams(
            dimension_semantics=("parallel",),
            vmem_limit_bytes=32 * 1024 * 1024,
        ),
    )(x, kmask, rmask, *weights)


# ----------------------------------------------------------------------------- references
def reference_forward(x, mask, p, n_heads):
    """Pure f32 reference following the PyTorch module exactly."""
    B, L, D = x.shape
    dph = D // n_heads
    scale = math.sqrt(dph)

    def proj(z, w, b):
        return z @ w + b

    def split(z):
        return z.reshape(B, L, n_heads, dph).transpose(0, 2, 1, 3)

    q = split(proj(x, p["wq"], p["bq"]))
    k = split(proj(x, p["wk"], p["bk"]))
    v = split(proj(x, p["wv"], p["bv"]))
    s = jnp.einsum("bhqd,bhkd->bhqk", q, k)
    s = jnp.where((mask == 0.0)[:, None, None, :], -1e20, s)
    w = jax.nn.softmax(s / scale, axis=-1)
    att = jnp.einsum("bhqk,bhkd->bhqd", w, v).transpose(0, 2, 1, 3).reshape(B, L, D)
    att = proj(att, p["wo"], p["bo"])

    def layer_norm(z, g, b, eps=1e-5):
        mu = jnp.mean(z, -1, keepdims=True)
        var = jnp.mean((z - mu) ** 2, -1, keepdims=True)
        return (z - mu) / jnp.sqrt(var + eps) * g + b

    t = x + att
    t = layer_norm(t, p["g1"], p["be1"])
    h = jax.nn.relu(proj(t, p["w1"], p["b1"]))
    t = t + proj(h, p["w2"], p["b2"])
    t = layer_norm(t, p["g2"], p["be2"])
    return t * mask[..., None].astype(jnp.float32)


def reference_forward_bf16(x, mask, p, n_heads):
    """Same math, with bf16 matmul operands / f32 accumulation like the kernel."""
    bf = lambda a: a.astype(jnp.bfloat16)
    f32 = jnp.float32
    B, L, D = x.shape
    dph = D // n_heads
    inv_scale = 1.0 / math.sqrt(dph)

    def proj(z, w, b):
        return (jnp.dot(bf(z).reshape(-1, z.shape[-1]), bf(w),
                        preferred_element_type=f32).reshape(B, L, -1) + b)

    def split(z):
        return z.reshape(B, L, n_heads, dph).transpose(0, 2, 1, 3)

    q = split(proj(x, p["wq"], p["bq"]) * inv_scale)
    k = split(proj(x, p["wk"], p["bk"]))
    v = split(proj(x, p["wv"], p["bv"]))
    s = jnp.einsum("bhqd,bhkd->bhqk", bf(q), bf(k), preferred_element_type=f32)
    s = jnp.where((mask == 0.0)[:, None, None, :], -1e20, s)
    s = s - jnp.max(s, axis=-1, keepdims=True)
    e = jnp.exp(s)
    w = e / jnp.sum(e, axis=-1, keepdims=True)
    ctx = jnp.einsum("bhqk,bhkd->bhqd", bf(w), bf(v), preferred_element_type=f32)
    ctx = ctx.transpose(0, 2, 1, 3).reshape(B, L, D)
    att = proj(ctx, p["wo"], p["bo"])

    def layer_norm(z, g, b, eps=1e-5):
        mu = jnp.mean(z, -1, keepdims=True)
        var = jnp.mean((z - mu) ** 2, -1, keepdims=True)
        return (z - mu) * jax.lax.rsqrt(var + eps) * g + b

    t = x + att
    t = layer_norm(t, p["g1"], p["be1"])
    h1 = jnp.maximum(proj(t, p["w1"], p["b1"]), 0.0)
    t = t + proj(h1, p["w2"], p["b2"])
    t = layer_norm(t, p["g2"], p["be2"])
    return t * mask[..., None].astype(jnp.float32)


# ----------------------------------------------------------------------------- params
def init_params(key, dim, ffn_dim):
    ks = jax.random.split(key, 12)

    def xavier_normal(k, shape):
        fan_in, fan_out = shape
        std = math.sqrt(2.0 / (fan_in + fan_out))
        return (std * jax.random.normal(k, shape)).astype(jnp.float32)

    def xavier_uniform(k, shape):
        fan_in, fan_out = shape
        a = math.sqrt(6.0 / (fan_in + fan_out))
        return jax.random.uniform(k, shape, jnp.float32, -a, a)

    def bias(k, fan_in, out):
        bound = 1.0 / math.sqrt(fan_in)
        return jax.random.uniform(k, (1, out), jnp.float32, -bound, bound)

    return {
        "wq": xavier_normal(ks[0], (dim, dim)), "bq": bias(ks[1], dim, dim),
        "wk": xavier_normal(ks[2], (dim, dim)), "bk": bias(ks[3], dim, dim),
        "wv": xavier_normal(ks[4], (dim, dim)), "bv": bias(ks[5], dim, dim),
        "wo": xavier_normal(ks[6], (dim, dim)), "bo": bias(ks[7], dim, dim),
        "w1": xavier_uniform(ks[8], (dim, ffn_dim)), "b1": bias(ks[9], dim, ffn_dim),
        "w2": xavier_uniform(ks[10], (ffn_dim, dim)), "b2": bias(ks[11], ffn_dim, dim),
        "g1": jnp.ones((1, dim), jnp.float32), "be1": jnp.zeros((1, dim), jnp.float32),
        "g2": jnp.ones((1, dim), jnp.float32), "be2": jnp.zeros((1, dim), jnp.float32),
    }


# ----------------------------------------------------------------------------- main
if __name__ == "__main__":
    # Small but lane/sublane-friendly shapes: D, FFN multiples of 128; L multiple of 8.
    B, L, D, H, FFN = 8, 16, 128, 4, 256

    key = jax.random.PRNGKey(0)
    kx, kp = jax.random.split(key)
    x = jax.random.normal(kx, (B, L, D), jnp.float32)

    # padding mask with varying valid lengths (1.0 = keep, 0.0 = pad)
    lengths = [16, 13, 9, 5, 16, 1, 15, 8]
    mask = jnp.array([[1.0] * n + [0.0] * (L - n) for n in lengths], jnp.float32)

    params = init_params(kp, D, FFN)

    out = transformer_encoder_layer(x, mask, params, n_heads=H, block_b=4)
    out = jax.block_until_ready(out)

    # tight check vs. a reference with the same bf16-matmul / f32-accumulate numerics
    ref_bf16 = reference_forward_bf16(x, mask, params, H)
    np.testing.assert_allclose(np.asarray(out), np.asarray(ref_bf16), rtol=1e-2, atol=1e-2)

    # loose check vs. exact f32 module semantics (difference = bf16 quantisation)
    ref_f32 = reference_forward(x, mask, params, H)
    np.testing.assert_allclose(np.asarray(out), np.asarray(ref_f32), rtol=5e-2, atol=1.5e-1)

    print("KERNEL_OK")
</pallas_src>

<mosaic_0001>
module attributes {stable_mosaic.version = 11 : i64} {
  func.func @_encoder_layer_kernel(%arg0: i32, %arg1: memref<4x16x128xf32, #tpu.memory_space<vmem>>, %arg2: memref<4x1x16xf32, #tpu.memory_space<vmem>>, %arg3: memref<64x1xf32, #tpu.memory_space<vmem>>, %arg4: memref<4x128x32xbf16, #tpu.memory_space<vmem>>, %arg5: memref<4x1x32xf32, #tpu.memory_space<vmem>>, %arg6: memref<4x128x32xbf16, #tpu.memory_space<vmem>>, %arg7: memref<4x1x32xf32, #tpu.memory_space<vmem>>, %arg8: memref<4x128x32xbf16, #tpu.memory_space<vmem>>, %arg9: memref<4x1x32xf32, #tpu.memory_space<vmem>>, %arg10: memref<4x32x128xbf16, #tpu.memory_space<vmem>>, %arg11: memref<1x128xf32, #tpu.memory_space<vmem>>, %arg12: memref<1x128xf32, #tpu.memory_space<vmem>>, %arg13: memref<1x128xf32, #tpu.memory_space<vmem>>, %arg14: memref<128x256xbf16, #tpu.memory_space<vmem>>, %arg15: memref<1x256xf32, #tpu.memory_space<vmem>>, %arg16: memref<256x128xbf16, #tpu.memory_space<vmem>>, %arg17: memref<1x128xf32, #tpu.memory_space<vmem>>, %arg18: memref<1x128xf32, #tpu.memory_space<vmem>>, %arg19: memref<1x128xf32, #tpu.memory_space<vmem>>, %arg20: memref<4x16x128xf32, #tpu.memory_space<vmem>>) attributes {dimension_semantics = [#tpu.dimension_semantics<parallel>], iteration_bounds = array<i64: 2>, scalar_prefetch = 0 : i64, scratch_operands = 0 : i64, tpu.core_type = #tpu.core_type<tc>, window_params = [{transform_indices = @transform_0, window_bounds = array<i64: 4, 16, 128>}, {transform_indices = @transform_1, window_bounds = array<i64: 4, 1, 16>}, {transform_indices = @transform_2, window_bounds = array<i64: 64, 1>}, {pipeline_mode = #tpu.pipeline_mode<synchronous>, transform_indices = @transform_3, window_bounds = array<i64: 4, 128, 32>}, {pipeline_mode = #tpu.pipeline_mode<synchronous>, transform_indices = @transform_4, window_bounds = array<i64: 4, 1, 32>}, {pipeline_mode = #tpu.pipeline_mode<synchronous>, transform_indices = @transform_5, window_bounds = array<i64: 4, 128, 32>}, {pipeline_mode = #tpu.pipeline_mode<synchronous>, transform_indices = @transform_6, window_bounds = array<i64: 4, 1, 32>}, {pipeline_mode = #tpu.pipeline_mode<synchronous>, transform_indices = @transform_7, window_bounds = array<i64: 4, 128, 32>}, {pipeline_mode = #tpu.pipeline_mode<synchronous>, transform_indices = @transform_8, window_bounds = array<i64: 4, 1, 32>}, {pipeline_mode = #tpu.pipeline_mode<synchronous>, transform_indices = @transform_9, window_bounds = array<i64: 4, 32, 128>}, {pipeline_mode = #tpu.pipeline_mode<synchronous>, transform_indices = @transform_10, window_bounds = array<i64: 1, 128>}, {pipeline_mode = #tpu.pipeline_mode<synchronous>, transform_indices = @transform_11, window_bounds = array<i64: 1, 128>}, {pipeline_mode = #tpu.pipeline_mode<synchronous>, transform_indices = @transform_12, window_bounds = array<i64: 1, 128>}, {pipeline_mode = #tpu.pipeline_mode<synchronous>, transform_indices = @transform_13, window_bounds = array<i64: 128, 256>}, {pipeline_mode = #tpu.pipeline_mode<synchronous>, transform_indices = @transform_14, window_bounds = array<i64: 1, 256>}, {pipeline_mode = #tpu.pipeline_mode<synchronous>, transform_indices = @transform_15, window_bounds = array<i64: 256, 128>}, {pipeline_mode = #tpu.pipeline_mode<synchronous>, transform_indices = @transform_16, window_bounds = array<i64: 1, 128>}, {pipeline_mode = #tpu.pipeline_mode<synchronous>, transform_indices = @transform_17, window_bounds = array<i64: 1, 128>}, {pipeline_mode = #tpu.pipeline_mode<synchronous>, transform_indices = @transform_18, window_bounds = array<i64: 1, 128>}, {transform_indices = @transform_19, window_bounds = array<i64: 4, 16, 128>}]} {
    %c0 = arith.constant 0 : index
    %c0_0 = arith.constant 0 : index
    %c0_1 = arith.constant 0 : index
    %0 = vector.load %arg1[%c0, %c0_0, %c0_1] : memref<4x16x128xf32, #tpu.memory_space<vmem>>, vector<4x16x128xf32>
    %1 = vector.shape_cast %0 : vector<4x16x128xf32> to vector<64x128xf32>
    %2 = arith.truncf %1 : vector<64x128xf32> to vector<64x128xbf16>
    %c0_2 = arith.constant 0 : index
    %c0_3 = arith.constant 0 : index
    %c0_4 = arith.constant 0 : index
    %3 = vector.load %arg2[%c0_2, %c0_3, %c0_4] : memref<4x1x16xf32, #tpu.memory_space<vmem>>, vector<4x1x16xf32>
    %cst = arith.constant 0.000000e+00 : f32
    %4 = vector.broadcast %cst : f32 to vector<64x128xf32>
    %c0_5 = arith.constant 0 : index
    %c0_6 = arith.constant 0 : index
    %c0_7 = arith.constant 0 : index
    %5 = vector.load %arg4[%c0_5, %c0_6, %c0_7] : memref<4x128x32xbf16, #tpu.memory_space<vmem>>, vector<1x128x32xbf16>
    %6 = vector.shape_cast %5 : vector<1x128x32xbf16> to vector<128x32xbf16>
    %cst_8 = arith.constant dense<0.000000e+00> : vector<64x32xf32>
    %7 = tpu.matmul %2, %6, %cst_8 {dimension_numbers = #tpu.dot_dimension_numbers<[1], [0], [0], [1], [0, 0, 1, 1], [], []>} : vector<64x128xbf16>, vector<128x32xbf16>, vector<64x32xf32> -> vector<64x32xf32>
    %c0_9 = arith.constant 0 : index
    %c0_10 = arith.constant 0 : index
    %c0_11 = arith.constant 0 : index
    %8 = vector.load %arg5[%c0_9, %c0_10, %c0_11] : memref<4x1x32xf32, #tpu.memory_space<vmem>>, vector<1x1x32xf32>
    %9 = vector.shape_cast %8 : vector<1x1x32xf32> to vector<1x32xf32>
    %10 = vector.broadcast %9 : vector<1x32xf32> to vector<64x32xf32>
    %11 = arith.addf %7, %10 : vector<64x32xf32>
    %cst_12 = arith.constant 0.176776692 : f32
    %12 = vector.broadcast %cst_12 : f32 to vector<64x32xf32>
    %13 = arith.mulf %11, %12 : vector<64x32xf32>
    %c0_13 = arith.constant 0 : index
    %c0_14 = arith.constant 0 : index
    %c0_15 = arith.constant 0 : index
    %14 = vector.load %arg6[%c0_13, %c0_14, %c0_15] : memref<4x128x32xbf16, #tpu.memory_space<vmem>>, vector<1x128x32xbf16>
    %15 = vector.shape_cast %14 : vector<1x128x32xbf16> to vector<128x32xbf16>
    %cst_16 = arith.constant dense<0.000000e+00> : vector<64x32xf32>
    %16 = tpu.matmul %2, %15, %cst_16 {dimension_numbers = #tpu.dot_dimension_numbers<[1], [0], [0], [1], [0, 0, 1, 1], [], []>} : vector<64x128xbf16>, vector<128x32xbf16>, vector<64x32xf32> -> vector<64x32xf32>
    %c0_17 = arith.constant 0 : index
    %c0_18 = arith.constant 0 : index
    %c0_19 = arith.constant 0 : index
    %17 = vector.load %arg7[%c0_17, %c0_18, %c0_19] : memref<4x1x32xf32, #tpu.memory_space<vmem>>, vector<1x1x32xf32>
    %18 = vector.shape_cast %17 : vector<1x1x32xf32> to vector<1x32xf32>
    %19 = vector.broadcast %18 : vector<1x32xf32> to vector<64x32xf32>
    %20 = arith.addf %16, %19 : vector<64x32xf32>
    %c0_20 = arith.constant 0 : index
    %c0_21 = arith.constant 0 : index
    %c0_22 = arith.constant 0 : index
    %21 = vector.load %arg8[%c0_20, %c0_21, %c0_22] : memref<4x128x32xbf16, #tpu.memory_space<vmem>>, vector<1x128x32xbf16>
    %22 = vector.shape_cast %21 : vector<1x128x32xbf16> to vector<128x32xbf16>
    %cst_23 = arith.constant dense<0.000000e+00> : vector<64x32xf32>
    %23 = tpu.matmul %2, %22, %cst_23 {dimension_numbers = #tpu.dot_dimension_numbers<[1], [0], [0], [1], [0, 0, 1, 1], [], []>} : vector<64x128xbf16>, vector<128x32xbf16>, vector<64x32xf32> -> vector<64x32xf32>
    %c0_24 = arith.constant 0 : index
    %c0_25 = arith.constant 0 : index
    %c0_26 = arith.constant 0 : index
    %24 = vector.load %arg9[%c0_24, %c0_25, %c0_26] : memref<4x1x32xf32, #tpu.memory_space<vmem>>, vector<1x1x32xf32>
    %25 = vector.shape_cast %24 : vector<1x1x32xf32> to vector<1x32xf32>
    %26 = vector.broadcast %25 : vector<1x32xf32> to vector<64x32xf32>
    %27 = arith.addf %23, %26 : vector<64x32xf32>
    %28 = vector.shape_cast %13 : vector<64x32xf32> to vector<4x16x32xf32>
    %29 = arith.truncf %28 : vector<4x16x32xf32> to vector<4x16x32xbf16>
    %30 = vector.shape_cast %20 : vector<64x32xf32> to vector<4x16x32xf32>
    %31 = arith.truncf %30 : vector<4x16x32xf32> to vector<4x16x32xbf16>
    %32 = vector.shape_cast %27 : vector<64x32xf32> to vector<4x16x32xf32>
    %33 = arith.truncf %32 : vector<4x16x32xf32> to vector<4x16x32xbf16>
    "tpu.trace_start"() <{level = 10 : i32, message = "bqd,bkd->bqk"}> : () -> ()
    %cst_27 = arith.constant dense<0.000000e+00> : vector<4x16x16xf32>
    %34 = tpu.matmul %29, %31, %cst_27 {dimension_numbers = #tpu.dot_dimension_numbers<[2], [2], [1], [1], [0, 0, 0, 1, 1, 1], [0], [0]>} : vector<4x16x32xbf16>, vector<4x16x32xbf16>, vector<4x16x16xf32> -> vector<4x16x16xf32>
    %cst_28 = arith.constant 0.000000e+00 : f32
    "tpu.trace_stop"() : () -> ()
    %35 = vector.broadcast %cst_28 : f32 to vector<4x1x16xf32>
    %36 = arith.cmpf oeq, %3, %35 : vector<4x1x16xf32>
    %cst_29 = arith.constant -1.000000e+20 : f32
    %37 = vector.shape_cast %36 : vector<4x1x16xi1> to vector<4x1x16xi1>
    %38 = vector.broadcast %37 : vector<4x1x16xi1> to vector<4x16x16xi1>
    %39 = vector.broadcast %cst_29 : f32 to vector<4x16x16xf32>
    %40 = arith.select %38, %39, %34 : vector<4x16x16xi1>, vector<4x16x16xf32>
    %cst_30 = arith.constant dense<0xFF800000> : vector<4x16xf32>
    %41 = vector.multi_reduction <maximumf>, %40, %cst_30 [2] : vector<4x16x16xf32> to vector<4x16xf32>
    %42 = vector.shape_cast %41 : vector<4x16xf32> to vector<4x16x1xf32>
    %43 = vector.broadcast %42 : vector<4x16x1xf32> to vector<4x16x16xf32>
    %44 = arith.subf %40, %43 : vector<4x16x16xf32>
    %45 = math.exp %44 : vector<4x16x16xf32>
    %cst_31 = arith.constant dense<0.000000e+00> : vector<4x16xf32>
    %46 = vector.multi_reduction <add>, %45, %cst_31 [2] : vector<4x16x16xf32> to vector<4x16xf32>
    %47 = vector.shape_cast %46 : vector<4x16xf32> to vector<4x16x1xf32>
    %48 = tpu.reciprocal %47 {approx = true} : vector<4x16x1xf32> -> vector<4x16x1xf32>
    %49 = vector.broadcast %48 : vector<4x16x1xf32> to vector<4x16x16xf32>
    %50 = arith.mulf %45, %49 : vector<4x16x16xf32>
    %51 = arith.truncf %50 : vector<4x16x16xf32> to vector<4x16x16xbf16>
    "tpu.trace_start"() <{level = 10 : i32, message = "bqk,bkd->bqd"}> : () -> ()
    %cst_32 = arith.constant dense<0.000000e+00> : vector<4x16x32xf32>
    %52 = tpu.matmul %51, %33, %cst_32 {dimension_numbers = #tpu.dot_dimension_numbers<[2], [1], [1], [2], [0, 0, 0, 1, 1, 2], [0], [0]>} : vector<4x16x16xbf16>, vector<4x16x32xbf16>, vector<4x16x32xf32> -> vector<4x16x32xf32>
    "tpu.trace_stop"() : () -> ()
    %53 = vector.shape_cast %52 : vector<4x16x32xf32> to vector<64x32xf32>
    %54 = arith.truncf %53 : vector<64x32xf32> to vector<64x32xbf16>
    %c0_33 = arith.constant 0 : index
    %c0_34 = arith.constant 0 : index
    %c0_35 = arith.constant 0 : index
    %55 = vector.load %arg10[%c0_33, %c0_34, %c0_35] : memref<4x32x128xbf16, #tpu.memory_space<vmem>>, vector<1x32x128xbf16>
    %56 = vector.shape_cast %55 : vector<1x32x128xbf16> to vector<32x128xbf16>
    %cst_36 = arith.constant dense<0.000000e+00> : vector<64x128xf32>
    %57 = tpu.matmul %54, %56, %cst_36 {dimension_numbers = #tpu.dot_dimension_numbers<[1], [0], [0], [1], [0, 0, 1, 1], [], []>} : vector<64x32xbf16>, vector<32x128xbf16>, vector<64x128xf32> -> vector<64x128xf32>
    %58 = arith.addf %4, %57 : vector<64x128xf32>
    %c1 = arith.constant 1 : index
    %c0_37 = arith.constant 0 : index
    %c0_38 = arith.constant 0 : index
    %59 = vector.load %arg4[%c1, %c0_37, %c0_38] : memref<4x128x32xbf16, #tpu.memory_space<vmem>>, vector<1x128x32xbf16>
    %60 = vector.shape_cast %59 : vector<1x128x32xbf16> to vector<128x32xbf16>
    %cst_39 = arith.constant dense<0.000000e+00> : vector<64x32xf32>
    %61 = tpu.matmul %2, %60, %cst_39 {dimension_numbers = #tpu.dot_dimension_numbers<[1], [0], [0], [1], [0, 0, 1, 1], [], []>} : vector<64x128xbf16>, vector<128x32xbf16>, vector<64x32xf32> -> vector<64x32xf32>
    %c1_40 = arith.constant 1 : index
    %c0_41 = arith.constant 0 : index
    %c0_42 = arith.constant 0 : index
    %62 = vector.load %arg5[%c1_40, %c0_41, %c0_42] : memref<4x1x32xf32, #tpu.memory_space<vmem>>, vector<1x1x32xf32>
    %63 = vector.shape_cast %62 : vector<1x1x32xf32> to vector<1x32xf32>
    %64 = vector.broadcast %63 : vector<1x32xf32> to vector<64x32xf32>
    %65 = arith.addf %61, %64 : vector<64x32xf32>
    %cst_43 = arith.constant 0.176776692 : f32
    %66 = vector.broadcast %cst_43 : f32 to vector<64x32xf32>
    %67 = arith.mulf %65, %66 : vector<64x32xf32>
    %c1_44 = arith.constant 1 : index
    %c0_45 = arith.constant 0 : index
    %c0_46 = arith.constant 0 : index
    %68 = vector.load %arg6[%c1_44, %c0_45, %c0_46] : memref<4x128x32xbf16, #tpu.memory_space<vmem>>, vector<1x128x32xbf16>
    %69 = vector.shape_cast %68 : vector<1x128x32xbf16> to vector<128x32xbf16>
    %cst_47 = arith.constant dense<0.000000e+00> : vector<64x32xf32>
    %70 = tpu.matmul %2, %69, %cst_47 {dimension_numbers = #tpu.dot_dimension_numbers<[1], [0], [0], [1], [0, 0, 1, 1], [], []>} : vector<64x128xbf16>, vector<128x32xbf16>, vector<64x32xf32> -> vector<64x32xf32>
    %c1_48 = arith.constant 1 : index
    %c0_49 = arith.constant 0 : index
    %c0_50 = arith.constant 0 : index
    %71 = vector.load %arg7[%c1_48, %c0_49, %c0_50] : memref<4x1x32xf32, #tpu.memory_space<vmem>>, vector<1x1x32xf32>
    %72 = vector.shape_cast %71 : vector<1x1x32xf32> to vector<1x32xf32>
    %73 = vector.broadcast %72 : vector<1x32xf32> to vector<64x32xf32>
    %74 = arith.addf %70, %73 : vector<64x32xf32>
    %c1_51 = arith.constant 1 : index
    %c0_52 = arith.constant 0 : index
    %c0_53 = arith.constant 0 : index
    %75 = vector.load %arg8[%c1_51, %c0_52, %c0_53] : memref<4x128x32xbf16, #tpu.memory_space<vmem>>, vector<1x128x32xbf16>
    %76 = vector.shape_cast %75 : vector<1x128x32xbf16> to vector<128x32xbf16>
    %cst_54 = arith.constant dense<0.000000e+00> : vector<64x32xf32>
    %77 = tpu.matmul %2, %76, %cst_54 {dimension_numbers = #tpu.dot_dimension_numbers<[1], [0], [0], [1], [0, 0, 1, 1], [], []>} : vector<64x128xbf16>, vector<128x32xbf16>, vector<64x32xf32> -> vector<64x32xf32>
    %c1_55 = arith.constant 1 : index
    %c0_56 = arith.constant 0 : index
    %c0_57 = arith.constant 0 : index
    %78 = vector.load %arg9[%c1_55, %c0_56, %c0_57] : memref<4x1x32xf32, #tpu.memory_space<vmem>>, vector<1x1x32xf32>
    %79 = vector.shape_cast %78 : vector<1x1x32xf32> to vector<1x32xf32>
    %80 = vector.broadcast %79 : vector<1x32xf32> to vector<64x32xf32>
    %81 = arith.addf %77, %80 : vector<64x32xf32>
    %82 = vector.shape_cast %67 : vector<64x32xf32> to vector<4x16x32xf32>
    %83 = arith.truncf %82 : vector<4x16x32xf32> to vector<4x16x32xbf16>
    %84 = vector.shape_cast %74 : vector<64x32xf32> to vector<4x16x32xf32>
    %85 = arith.truncf %84 : vector<4x16x32xf32> to vector<4x16x32xbf16>
    %86 = vector.shape_cast %81 : vector<64x32xf32> to vector<4x16x32xf32>
    %87 = arith.truncf %86 : vector<4x16x32xf32> to vector<4x16x32xbf16>
    "tpu.trace_start"() <{level = 10 : i32, message = "bqd,bkd->bqk"}> : () -> ()
    %cst_58 = arith.constant dense<0.000000e+00> : vector<4x16x16xf32>
    %88 = tpu.matmul %83, %85, %cst_58 {dimension_numbers = #tpu.dot_dimension_numbers<[2], [2], [1], [1], [0, 0, 0, 1, 1, 1], [0], [0]>} : vector<4x16x32xbf16>, vector<4x16x32xbf16>, vector<4x16x16xf32> -> vector<4x16x16xf32>
    %cst_59 = arith.constant 0.000000e+00 : f32
    "tpu.trace_stop"() : () -> ()
    %89 = vector.broadcast %cst_59 : f32 to vector<4x1x16xf32>
    %90 = arith.cmpf oeq, %3, %89 : vector<4x1x16xf32>
    %cst_60 = arith.constant -1.000000e+20 : f32
    %91 = vector.shape_cast %90 : vector<4x1x16xi1> to vector<4x1x16xi1>
    %92 = vector.broadcast %91 : vector<4x1x16xi1> to vector<4x16x16xi1>
    %93 = vector.broadcast %cst_60 : f32 to vector<4x16x16xf32>
    %94 = arith.select %92, %93, %88 : vector<4x16x16xi1>, vector<4x16x16xf32>
    %cst_61 = arith.constant dense<0xFF800000> : vector<4x16xf32>
    %95 = vector.multi_reduction <maximumf>, %94, %cst_61 [2] : vector<4x16x16xf32> to vector<4x16xf32>
    %96 = vector.shape_cast %95 : vector<4x16xf32> to vector<4x16x1xf32>
    %97 = vector.broadcast %96 : vector<4x16x1xf32> to vector<4x16x16xf32>
    %98 = arith.subf %94, %97 : vector<4x16x16xf32>
    %99 = math.exp %98 : vector<4x16x16xf32>
    %cst_62 = arith.constant dense<0.000000e+00> : vector<4x16xf32>
    %100 = vector.multi_reduction <add>, %99, %cst_62 [2] : vector<4x16x16xf32> to vector<4x16xf32>
    %101 = vector.shape_cast %100 : vector<4x16xf32> to vector<4x16x1xf32>
    %102 = tpu.reciprocal %101 {approx = true} : vector<4x16x1xf32> -> vector<4x16x1xf32>
    %103 = vector.broadcast %102 : vector<4x16x1xf32> to vector<4x16x16xf32>
    %104 = arith.mulf %99, %103 : vector<4x16x16xf32>
    %105 = arith.truncf %104 : vector<4x16x16xf32> to vector<4x16x16xbf16>
    "tpu.trace_start"() <{level = 10 : i32, message = "bqk,bkd->bqd"}> : () -> ()
    %cst_63 = arith.constant dense<0.000000e+00> : vector<4x16x32xf32>
    %106 = tpu.matmul %105, %87, %cst_63 {dimension_numbers = #tpu.dot_dimension_numbers<[2], [1], [1], [2], [0, 0, 0, 1, 1, 2], [0], [0]>} : vector<4x16x16xbf16>, vector<4x16x32xbf16>, vector<4x16x32xf32> -> vector<4x16x32xf32>
    "tpu.trace_stop"() : () -> ()
    %107 = vector.shape_cast %106 : vector<4x16x32xf32> to vector<64x32xf32>
    %108 = arith.truncf %107 : vector<64x32xf32> to vector<64x32xbf16>
    %c1_64 = arith.constant 1 : index
    %c0_65 = arith.constant 0 : index
    %c0_66 = arith.constant 0 : index
    %109 = vector.load %arg10[%c1_64, %c0_65, %c0_66] : memref<4x32x128xbf16, #tpu.memory_space<vmem>>, vector<1x32x128xbf16>
    %110 = vector.shape_cast %109 : vector<1x32x128xbf16> to vector<32x128xbf16>
    %cst_67 = arith.constant dense<0.000000e+00> : vector<64x128xf32>
    %111 = tpu.matmul %108, %110, %cst_67 {dimension_numbers = #tpu.dot_dimension_numbers<[1], [0], [0], [1], [0, 0, 1, 1], [], []>} : vector<64x32xbf16>, vector<32x128xbf16>, vector<64x128xf32> -> vector<64x128xf32>
    %112 = arith.addf %58, %111 : vector<64x128xf32>
    %c2 = arith.constant 2 : index
    %c0_68 = arith.constant 0 : index
    %c0_69 = arith.constant 0 : index
    %113 = vector.load %arg4[%c2, %c0_68, %c0_69] : memref<4x128x32xbf16, #tpu.memory_space<vmem>>, vector<1x128x32xbf16>
    %114 = vector.shape_cast %113 : vector<1x128x32xbf16> to vector<128x32xbf16>
    %cst_70 = arith.constant dense<0.000000e+00> : vector<64x32xf32>
    %115 = tpu.matmul %2, %114, %cst_70 {dimension_numbers = #tpu.dot_dimension_numbers<[1], [0], [0], [1], [0, 0, 1, 1], [], []>} : vector<64x128xbf16>, vector<128x32xbf16>, vector<64x32xf32> -> vector<64x32xf32>
    %c2_71 = arith.constant 2 : index
    %c0_72 = arith.constant 0 : index
    %c0_73 = arith.constant 0 : index
    %116 = vector.load %arg5[%c2_71, %c0_72, %c0_73] : memref<4x1x32xf32, #tpu.memory_space<vmem>>, vector<1x1x32xf32>
    %117 = vector.shape_cast %116 : vector<1x1x32xf32> to vector<1x32xf32>
    %118 = vector.broadcast %117 : vector<1x32xf32> to vector<64x32xf32>
    %119 = arith.addf %115, %118 : vector<64x32xf32>
    %cst_74 = arith.constant 0.176776692 : f32
    %120 = vector.broadcast %cst_74 : f32 to vector<64x32xf32>
    %121 = arith.mulf %119, %120 : vector<64x32xf32>
    %c2_75 = arith.constant 2 : index
    %c0_76 = arith.constant 0 : index
    %c0_77 = arith.constant 0 : index
    %122 = vector.load %arg6[%c2_75, %c0_76, %c0_77] : memref<4x128x32xbf16, #tpu.memory_space<vmem>>, vector<1x128x32xbf16>
    %123 = vector.shape_cast %122 : vector<1x128x32xbf16> to vector<128x32xbf16>
    %cst_78 = arith.constant dense<0.000000e+00> : vector<64x32xf32>
    %124 = tpu.matmul %2, %123, %cst_78 {dimension_numbers = #tpu.dot_dimension_numbers<[1], [0], [0], [1], [0, 0, 1, 1], [], []>} : vector<64x128xbf16>, vector<128x32xbf16>, vector<64x32xf32> -> vector<64x32xf32>
    %c2_79 = arith.constant 2 : index
    %c0_80 = arith.constant 0 : index
    %c0_81 = arith.constant 0 : index
    %125 = vector.load %arg7[%c2_79, %c0_80, %c0_81] : memref<4x1x32xf32, #tpu.memory_space<vmem>>, vector<1x1x32xf32>
    %126 = vector.shape_cast %125 : vector<1x1x32xf32> to vector<1x32xf32>
    %127 = vector.broadcast %126 : vector<1x32xf32> to vector<64x32xf32>
    %128 = arith.addf %124, %127 : vector<64x32xf32>
    %c2_82 = arith.constant 2 : index
    %c0_83 = arith.constant 0 : index
    %c0_84 = arith.constant 0 : index
    %129 = vector.load %arg8[%c2_82, %c0_83, %c0_84] : memref<4x128x32xbf16, #tpu.memory_space<vmem>>, vector<1x128x32xbf16>
    %130 = vector.shape_cast %129 : vector<1x128x32xbf16> to vector<128x32xbf16>
    %cst_85 = arith.constant dense<0.000000e+00> : vector<64x32xf32>
    %131 = tpu.matmul %2, %130, %cst_85 {dimension_numbers = #tpu.dot_dimension_numbers<[1], [0], [0], [1], [0, 0, 1, 1], [], []>} : vector<64x128xbf16>, vector<128x32xbf16>, vector<64x32xf32> -> vector<64x32xf32>
    %c2_86 = arith.constant 2 : index
    %c0_87 = arith.constant 0 : index
    %c0_88 = arith.constant 0 : index
    %132 = vector.load %arg9[%c2_86, %c0_87, %c0_88] : memref<4x1x32xf32, #tpu.memory_space<vmem>>, vector<1x1x32xf32>
    %133 = vector.shape_cast %132 : vector<1x1x32xf32> to vector<1x32xf32>
    %134 = vector.broadcast %133 : vector<1x32xf32> to vector<64x32xf32>
    %135 = arith.addf %131, %134 : vector<64x32xf32>
    %136 = vector.shape_cast %121 : vector<64x32xf32> to vector<4x16x32xf32>
    %137 = arith.truncf %136 : vector<4x16x32xf32> to vector<4x16x32xbf16>
    %138 = vector.shape_cast %128 : vector<64x32xf32> to vector<4x16x32xf32>
    %139 = arith.truncf %138 : vector<4x16x32xf32> to vector<4x16x32xbf16>
    %140 = vector.shape_cast %135 : vector<64x32xf32> to vector<4x16x32xf32>
    %141 = arith.truncf %140 : vector<4x16x32xf32> to vector<4x16x32xbf16>
    "tpu.trace_start"() <{level = 10 : i32, message = "bqd,bkd->bqk"}> : () -> ()
    %cst_89 = arith.constant dense<0.000000e+00> : vector<4x16x16xf32>
    %142 = tpu.matmul %137, %139, %cst_89 {dimension_numbers = #tpu.dot_dimension_numbers<[2], [2], [1], [1], [0, 0, 0, 1, 1, 1], [0], [0]>} : vector<4x16x32xbf16>, vector<4x16x32xbf16>, vector<4x16x16xf32> -> vector<4x16x16xf32>
    %cst_90 = arith.constant 0.000000e+00 : f32
    "tpu.trace_stop"() : () -> ()
    %143 = vector.broadcast %cst_90 : f32 to vector<4x1x16xf32>
    %144 = arith.cmpf oeq, %3, %143 : vector<4x1x16xf32>
    %cst_91 = arith.constant -1.000000e+20 : f32
    %145 = vector.shape_cast %144 : vector<4x1x16xi1> to vector<4x1x16xi1>
    %146 = vector.broadcast %145 : vector<4x1x16xi1> to vector<4x16x16xi1>
    %147 = vector.broadcast %cst_91 : f32 to vector<4x16x16xf32>
    %148 = arith.select %146, %147, %142 : vector<4x16x16xi1>, vector<4x16x16xf32>
    %cst_92 = arith.constant dense<0xFF800000> : vector<4x16xf32>
    %149 = vector.multi_reduction <maximumf>, %148, %cst_92 [2] : vector<4x16x16xf32> to vector<4x16xf32>
    %150 = vector.shape_cast %149 : vector<4x16xf32> to vector<4x16x1xf32>
    %151 = vector.broadcast %150 : vector<4x16x1xf32> to vector<4x16x16xf32>
    %152 = arith.subf %148, %151 : vector<4x16x16xf32>
    %153 = math.exp %152 : vector<4x16x16xf32>
    %cst_93 = arith.constant dense<0.000000e+00> : vector<4x16xf32>
    %154 = vector.multi_reduction <add>, %153, %cst_93 [2] : vector<4x16x16xf32> to vector<4x16xf32>
    %155 = vector.shape_cast %154 : vector<4x16xf32> to vector<4x16x1xf32>
    %156 = tpu.reciprocal %155 {approx = true} : vector<4x16x1xf32> -> vector<4x16x1xf32>
    %157 = vector.broadcast %156 : vector<4x16x1xf32> to vector<4x16x16xf32>
    %158 = arith.mulf %153, %157 : vector<4x16x16xf32>
    %159 = arith.truncf %158 : vector<4x16x16xf32> to vector<4x16x16xbf16>
    "tpu.trace_start"() <{level = 10 : i32, message = "bqk,bkd->bqd"}> : () -> ()
    %cst_94 = arith.constant dense<0.000000e+00> : vector<4x16x32xf32>
    %160 = tpu.matmul %159, %141, %cst_94 {dimension_numbers = #tpu.dot_dimension_numbers<[2], [1], [1], [2], [0, 0, 0, 1, 1, 2], [0], [0]>} : vector<4x16x16xbf16>, vector<4x16x32xbf16>, vector<4x16x32xf32> -> vector<4x16x32xf32>
    "tpu.trace_stop"() : () -> ()
    %161 = vector.shape_cast %160 : vector<4x16x32xf32> to vector<64x32xf32>
    %162 = arith.truncf %161 : vector<64x32xf32> to vector<64x32xbf16>
    %c2_95 = arith.constant 2 : index
    %c0_96 = arith.constant 0 : index
    %c0_97 = arith.constant 0 : index
    %163 = vector.load %arg10[%c2_95, %c0_96, %c0_97] : memref<4x32x128xbf16, #tpu.memory_space<vmem>>, vector<1x32x128xbf16>
    %164 = vector.shape_cast %163 : vector<1x32x128xbf16> to vector<32x128xbf16>
    %cst_98 = arith.constant dense<0.000000e+00> : vector<64x128xf32>
    %165 = tpu.matmul %162, %164, %cst_98 {dimension_numbers = #tpu.dot_dimension_numbers<[1], [0], [0], [1], [0, 0, 1, 1], [], []>} : vector<64x32xbf16>, vector<32x128xbf16>, vector<64x128xf32> -> vector<64x128xf32>
    %166 = arith.addf %112, %165 : vector<64x128xf32>
    %c3 = arith.constant 3 : index
    %c0_99 = arith.constant 0 : index
    %c0_100 = arith.constant 0 : index
    %167 = vector.load %arg4[%c3, %c0_99, %c0_100] : memref<4x128x32xbf16, #tpu.memory_space<vmem>>, vector<1x128x32xbf16>
    %168 = vector.shape_cast %167 : vector<1x128x32xbf16> to vector<128x32xbf16>
    %cst_101 = arith.constant dense<0.000000e+00> : vector<64x32xf32>
    %169 = tpu.matmul %2, %168, %cst_101 {dimension_numbers = #tpu.dot_dimension_numbers<[1], [0], [0], [1], [0, 0, 1, 1], [], []>} : vector<64x128xbf16>, vector<128x32xbf16>, vector<64x32xf32> -> vector<64x32xf32>
    %c3_102 = arith.constant 3 : index
    %c0_103 = arith.constant 0 : index
    %c0_104 = arith.constant 0 : index
    %170 = vector.load %arg5[%c3_102, %c0_103, %c0_104] : memref<4x1x32xf32, #tpu.memory_space<vmem>>, vector<1x1x32xf32>
    %171 = vector.shape_cast %170 : vector<1x1x32xf32> to vector<1x32xf32>
    %172 = vector.broadcast %171 : vector<1x32xf32> to vector<64x32xf32>
    %173 = arith.addf %169, %172 : vector<64x32xf32>
    %cst_105 = arith.constant 0.176776692 : f32
    %174 = vector.broadcast %cst_105 : f32 to vector<64x32xf32>
    %175 = arith.mulf %173, %174 : vector<64x32xf32>
    %c3_106 = arith.constant 3 : index
    %c0_107 = arith.constant 0 : index
    %c0_108 = arith.constant 0 : index
    %176 = vector.load %arg6[%c3_106, %c0_107, %c0_108] : memref<4x128x32xbf16, #tpu.memory_space<vmem>>, vector<1x128x32xbf16>
    %177 = vector.shape_cast %176 : vector<1x128x32xbf16> to vector<128x32xbf16>
    %cst_109 = arith.constant dense<0.000000e+00> : vector<64x32xf32>
    %178 = tpu.matmul %2, %177, %cst_109 {dimension_numbers = #tpu.dot_dimension_numbers<[1], [0], [0], [1], [0, 0, 1, 1], [], []>} : vector<64x128xbf16>, vector<128x32xbf16>, vector<64x32xf32> -> vector<64x32xf32>
    %c3_110 = arith.constant 3 : index
    %c0_111 = arith.constant 0 : index
    %c0_112 = arith.constant 0 : index
    %179 = vector.load %arg7[%c3_110, %c0_111, %c0_112] : memref<4x1x32xf32, #tpu.memory_space<vmem>>, vector<1x1x32xf32>
    %180 = vector.shape_cast %179 : vector<1x1x32xf32> to vector<1x32xf32>
    %181 = vector.broadcast %180 : vector<1x32xf32> to vector<64x32xf32>
    %182 = arith.addf %178, %181 : vector<64x32xf32>
    %c3_113 = arith.constant 3 : index
    %c0_114 = arith.constant 0 : index
    %c0_115 = arith.constant 0 : index
    %183 = vector.load %arg8[%c3_113, %c0_114, %c0_115] : memref<4x128x32xbf16, #tpu.memory_space<vmem>>, vector<1x128x32xbf16>
    %184 = vector.shape_cast %183 : vector<1x128x32xbf16> to vector<128x32xbf16>
    %cst_116 = arith.constant dense<0.000000e+00> : vector<64x32xf32>
    %185 = tpu.matmul %2, %184, %cst_116 {dimension_numbers = #tpu.dot_dimension_numbers<[1], [0], [0], [1], [0, 0, 1, 1], [], []>} : vector<64x128xbf16>, vector<128x32xbf16>, vector<64x32xf32> -> vector<64x32xf32>
    %c3_117 = arith.constant 3 : index
    %c0_118 = arith.constant 0 : index
    %c0_119 = arith.constant 0 : index
    %186 = vector.load %arg9[%c3_117, %c0_118, %c0_119] : memref<4x1x32xf32, #tpu.memory_space<vmem>>, vector<1x1x32xf32>
    %187 = vector.shape_cast %186 : vector<1x1x32xf32> to vector<1x32xf32>
    %188 = vector.broadcast %187 : vector<1x32xf32> to vector<64x32xf32>
    %189 = arith.addf %185, %188 : vector<64x32xf32>
    %190 = vector.shape_cast %175 : vector<64x32xf32> to vector<4x16x32xf32>
    %191 = arith.truncf %190 : vector<4x16x32xf32> to vector<4x16x32xbf16>
    %192 = vector.shape_cast %182 : vector<64x32xf32> to vector<4x16x32xf32>
    %193 = arith.truncf %192 : vector<4x16x32xf32> to vector<4x16x32xbf16>
    %194 = vector.shape_cast %189 : vector<64x32xf32> to vector<4x16x32xf32>
    %195 = arith.truncf %194 : vector<4x16x32xf32> to vector<4x16x32xbf16>
    "tpu.trace_start"() <{level = 10 : i32, message = "bqd,bkd->bqk"}> : () -> ()
    %cst_120 = arith.constant dense<0.000000e+00> : vector<4x16x16xf32>
    %196 = tpu.matmul %191, %193, %cst_120 {dimension_numbers = #tpu.dot_dimension_numbers<[2], [2], [1], [1], [0, 0, 0, 1, 1, 1], [0], [0]>} : vector<4x16x32xbf16>, vector<4x16x32xbf16>, vector<4x16x16xf32> -> vector<4x16x16xf32>
    %cst_121 = arith.constant 0.000000e+00 : f32
    "tpu.trace_stop"() : () -> ()
    %197 = vector.broadcast %cst_121 : f32 to vector<4x1x16xf32>
    %198 = arith.cmpf oeq, %3, %197 : vector<4x1x16xf32>
    %cst_122 = arith.constant -1.000000e+20 : f32
    %199 = vector.shape_cast %198 : vector<4x1x16xi1> to vector<4x1x16xi1>
    %200 = vector.broadcast %199 : vector<4x1x16xi1> to vector<4x16x16xi1>
    %201 = vector.broadcast %cst_122 : f32 to vector<4x16x16xf32>
    %202 = arith.select %200, %201, %196 : vector<4x16x16xi1>, vector<4x16x16xf32>
    %cst_123 = arith.constant dense<0xFF800000> : vector<4x16xf32>
    %203 = vector.multi_reduction <maximumf>, %202, %cst_123 [2] : vector<4x16x16xf32> to vector<4x16xf32>
    %204 = vector.shape_cast %203 : vector<4x16xf32> to vector<4x16x1xf32>
    %205 = vector.broadcast %204 : vector<4x16x1xf32> to vector<4x16x16xf32>
    %206 = arith.subf %202, %205 : vector<4x16x16xf32>
    %207 = math.exp %206 : vector<4x16x16xf32>
    %cst_124 = arith.constant dense<0.000000e+00> : vector<4x16xf32>
    %208 = vector.multi_reduction <add>, %207, %cst_124 [2] : vector<4x16x16xf32> to vector<4x16xf32>
    %209 = vector.shape_cast %208 : vector<4x16xf32> to vector<4x16x1xf32>
    %210 = tpu.reciprocal %209 {approx = true} : vector<4x16x1xf32> -> vector<4x16x1xf32>
    %211 = vector.broadcast %210 : vector<4x16x1xf32> to vector<4x16x16xf32>
    %212 = arith.mulf %207, %211 : vector<4x16x16xf32>
    %213 = arith.truncf %212 : vector<4x16x16xf32> to vector<4x16x16xbf16>
    "tpu.trace_start"() <{level = 10 : i32, message = "bqk,bkd->bqd"}> : () -> ()
    %cst_125 = arith.constant dense<0.000000e+00> : vector<4x16x32xf32>
    %214 = tpu.matmul %213, %195, %cst_125 {dimension_numbers = #tpu.dot_dimension_numbers<[2], [1], [1], [2], [0, 0, 0, 1, 1, 2], [0], [0]>} : vector<4x16x16xbf16>, vector<4x16x32xbf16>, vector<4x16x32xf32> -> vector<4x16x32xf32>
    "tpu.trace_stop"() : () -> ()
    %215 = vector.shape_cast %214 : vector<4x16x32xf32> to vector<64x32xf32>
    %216 = arith.truncf %215 : vector<64x32xf32> to vector<64x32xbf16>
    %c3_126 = arith.constant 3 : index
    %c0_127 = arith.constant 0 : index
    %c0_128 = arith.constant 0 : index
    %217 = vector.load %arg10[%c3_126, %c0_127, %c0_128] : memref<4x32x128xbf16, #tpu.memory_space<vmem>>, vector<1x32x128xbf16>
    %218 = vector.shape_cast %217 : vector<1x32x128xbf16> to vector<32x128xbf16>
    %cst_129 = arith.constant dense<0.000000e+00> : vector<64x128xf32>
    %219 = tpu.matmul %216, %218, %cst_129 {dimension_numbers = #tpu.dot_dimension_numbers<[1], [0], [0], [1], [0, 0, 1, 1], [], []>} : vector<64x32xbf16>, vector<32x128xbf16>, vector<64x128xf32> -> vector<64x128xf32>
    %220 = arith.addf %166, %219 : vector<64x128xf32>
    %c0_130 = arith.constant 0 : index
    %c0_131 = arith.constant 0 : index
    %221 = vector.load %arg11[%c0_130, %c0_131] : memref<1x128xf32, #tpu.memory_space<vmem>>, vector<1x128xf32>
    %222 = vector.broadcast %221 : vector<1x128xf32> to vector<64x128xf32>
    %223 = arith.addf %220, %222 : vector<64x128xf32>
    %224 = arith.addf %1, %223 : vector<64x128xf32>
    %c0_132 = arith.constant 0 : index
    %c0_133 = arith.constant 0 : index
    %225 = vector.load %arg12[%c0_132, %c0_133] : memref<1x128xf32, #tpu.memory_space<vmem>>, vector<1x128xf32>
    %c0_134 = arith.constant 0 : index
    %c0_135 = arith.constant 0 : index
    %226 = vector.load %arg13[%c0_134, %c0_135] : memref<1x128xf32, #tpu.memory_space<vmem>>, vector<1x128xf32>
    %cst_136 = arith.constant dense<0.000000e+00> : vector<64xf32>
    %227 = vector.multi_reduction <add>, %224, %cst_136 [1] : vector<64x128xf32> to vector<64xf32>
    %228 = vector.shape_cast %227 : vector<64xf32> to vector<64x1xf32>
    %cst_137 = arith.constant 1.280000e+02 : f32
    %229 = vector.broadcast %cst_137 : f32 to vector<64x1xf32>
    %230 = arith.divf %228, %229 : vector<64x1xf32>
    %231 = vector.broadcast %230 : vector<64x1xf32> to vector<64x128xf32>
    %232 = arith.subf %224, %231 : vector<64x128xf32>
    %233 = arith.mulf %232, %232 : vector<64x128xf32>
    %cst_138 = arith.constant dense<0.000000e+00> : vector<64xf32>
    %234 = vector.multi_reduction <add>, %233, %cst_138 [1] : vector<64x128xf32> to vector<64xf32>
    %235 = vector.shape_cast %234 : vector<64xf32> to vector<64x1xf32>
    %cst_139 = arith.constant 1.280000e+02 : f32
    %236 = vector.broadcast %cst_139 : f32 to vector<64x1xf32>
    %237 = arith.divf %235, %236 : vector<64x1xf32>
    %238 = vector.broadcast %230 : vector<64x1xf32> to vector<64x128xf32>
    %239 = arith.subf %224, %238 : vector<64x128xf32>
    %cst_140 = arith.constant 9.99999974E-6 : f32
    %240 = vector.broadcast %cst_140 : f32 to vector<64x1xf32>
    %241 = arith.addf %237, %240 : vector<64x1xf32>
    %242 = math.rsqrt %241 : vector<64x1xf32>
    %243 = vector.broadcast %242 : vector<64x1xf32> to vector<64x128xf32>
    %244 = arith.mulf %239, %243 : vector<64x128xf32>
    %245 = vector.broadcast %225 : vector<1x128xf32> to vector<64x128xf32>
    %246 = arith.mulf %244, %245 : vector<64x128xf32>
    %247 = vector.broadcast %226 : vector<1x128xf32> to vector<64x128xf32>
    %248 = arith.addf %246, %247 : vector<64x128xf32>
    %249 = arith.truncf %248 : vector<64x128xf32> to vector<64x128xbf16>
    %c0_141 = arith.constant 0 : index
    %c0_142 = arith.constant 0 : index
    %250 = vector.load %arg14[%c0_141, %c0_142] : memref<128x256xbf16, #tpu.memory_space<vmem>>, vector<128x256xbf16>
    %cst_143 = arith.constant dense<0.000000e+00> : vector<64x256xf32>
    %251 = tpu.matmul %249, %250, %cst_143 {dimension_numbers = #tpu.dot_dimension_numbers<[1], [0], [0], [1], [0, 0, 1, 1], [], []>} : vector<64x128xbf16>, vector<128x256xbf16>, vector<64x256xf32> -> vector<64x256xf32>
    %c0_144 = arith.constant 0 : index
    %c0_145 = arith.constant 0 : index
    %252 = vector.load %arg15[%c0_144, %c0_145] : memref<1x256xf32, #tpu.memory_space<vmem>>, vector<1x256xf32>
    %253 = vector.broadcast %252 : vector<1x256xf32> to vector<64x256xf32>
    %254 = arith.addf %251, %253 : vector<64x256xf32>
    %cst_146 = arith.constant 0.000000e+00 : f32
    %255 = vector.broadcast %cst_146 : f32 to vector<64x256xf32>
    %256 = arith.maximumf %254, %255 : vector<64x256xf32>
    %257 = arith.truncf %256 : vector<64x256xf32> to vector<64x256xbf16>
    %c0_147 = arith.constant 0 : index
    %c0_148 = arith.constant 0 : index
    %258 = vector.load %arg16[%c0_147, %c0_148] : memref<256x128xbf16, #tpu.memory_space<vmem>>, vector<256x128xbf16>
    %cst_149 = arith.constant dense<0.000000e+00> : vector<64x128xf32>
    %259 = tpu.matmul %257, %258, %cst_149 {dimension_numbers = #tpu.dot_dimension_numbers<[1], [0], [0], [1], [0, 0, 1, 1], [], []>} : vector<64x256xbf16>, vector<256x128xbf16>, vector<64x128xf32> -> vector<64x128xf32>
    %c0_150 = arith.constant 0 : index
    %c0_151 = arith.constant 0 : index
    %260 = vector.load %arg17[%c0_150, %c0_151] : memref<1x128xf32, #tpu.memory_space<vmem>>, vector<1x128xf32>
    %261 = vector.broadcast %260 : vector<1x128xf32> to vector<64x128xf32>
    %262 = arith.addf %259, %261 : vector<64x128xf32>
    %263 = arith.addf %248, %262 : vector<64x128xf32>
    %c0_152 = arith.constant 0 : index
    %c0_153 = arith.constant 0 : index
    %264 = vector.load %arg18[%c0_152, %c0_153] : memref<1x128xf32, #tpu.memory_space<vmem>>, vector<1x128xf32>
    %c0_154 = arith.constant 0 : index
    %c0_155 = arith.constant 0 : index
    %265 = vector.load %arg19[%c0_154, %c0_155] : memref<1x128xf32, #tpu.memory_space<vmem>>, vector<1x128xf32>
    %cst_156 = arith.constant dense<0.000000e+00> : vector<64xf32>
    %266 = vector.multi_reduction <add>, %263, %cst_156 [1] : vector<64x128xf32> to vector<64xf32>
    %267 = vector.shape_cast %266 : vector<64xf32> to vector<64x1xf32>
    %cst_157 = arith.constant 1.280000e+02 : f32
    %268 = vector.broadcast %cst_157 : f32 to vector<64x1xf32>
    %269 = arith.divf %267, %268 : vector<64x1xf32>
    %270 = vector.broadcast %269 : vector<64x1xf32> to vector<64x128xf32>
    %271 = arith.subf %263, %270 : vector<64x128xf32>
    %272 = arith.mulf %271, %271 : vector<64x128xf32>
    %cst_158 = arith.constant dense<0.000000e+00> : vector<64xf32>
    %273 = vector.multi_reduction <add>, %272, %cst_158 [1] : vector<64x128xf32> to vector<64xf32>
    %274 = vector.shape_cast %273 : vector<64xf32> to vector<64x1xf32>
    %cst_159 = arith.constant 1.280000e+02 : f32
    %275 = vector.broadcast %cst_159 : f32 to vector<64x1xf32>
    %276 = arith.divf %274, %275 : vector<64x1xf32>
    %277 = vector.broadcast %269 : vector<64x1xf32> to vector<64x128xf32>
    %278 = arith.subf %263, %277 : vector<64x128xf32>
    %cst_160 = arith.constant 9.99999974E-6 : f32
    %279 = vector.broadcast %cst_160 : f32 to vector<64x1xf32>
    %280 = arith.addf %276, %279 : vector<64x1xf32>
    %281 = math.rsqrt %280 : vector<64x1xf32>
    %282 = vector.broadcast %281 : vector<64x1xf32> to vector<64x128xf32>
    %283 = arith.mulf %278, %282 : vector<64x128xf32>
    %284 = vector.broadcast %264 : vector<1x128xf32> to vector<64x128xf32>
    %285 = arith.mulf %283, %284 : vector<64x128xf32>
    %286 = vector.broadcast %265 : vector<1x128xf32> to vector<64x128xf32>
    %287 = arith.addf %285, %286 : vector<64x128xf32>
    %c0_161 = arith.constant 0 : index
    %c0_162 = arith.constant 0 : index
    %288 = vector.load %arg3[%c0_161, %c0_162] : memref<64x1xf32, #tpu.memory_space<vmem>>, vector<64x1xf32>
    %289 = vector.broadcast %288 : vector<64x1xf32> to vector<64x128xf32>
    %290 = arith.mulf %287, %289 : vector<64x128xf32>
    %291 = vector.shape_cast %290 : vector<64x128xf32> to vector<4x16x128xf32>
    %c0_163 = arith.constant 0 : index
    %c0_164 = arith.constant 0 : index
    %c0_165 = arith.constant 0 : index
    %292 = vector.load %arg20[%c0_163, %c0_164, %c0_165] : memref<4x16x128xf32, #tpu.memory_space<vmem>>, vector<4x16x128xf32>
    tpu.vector_store %arg20[%c0_163, %c0_164, %c0_165], %291 {strides = array<i32>} : memref<4x16x128xf32, #tpu.memory_space<vmem>>, vector<4x16x128xf32>,
    return
  }
  func.func @transform_0(%arg0: i32) -> (i32, i32, i32) {
    %c0_i32 = arith.constant 0 : i32
    %c0_i32_0 = arith.constant 0 : i32
    %c0_i32_1 = arith.constant 0 : i32
    return %arg0, %c0_i32, %c0_i32_0 : i32, i32, i32
  }
  func.func @transform_1(%arg0: i32) -> (i32, i32, i32) {
    %c0_i32 = arith.constant 0 : i32
    %c0_i32_0 = arith.constant 0 : i32
    %c0_i32_1 = arith.constant 0 : i32
    return %arg0, %c0_i32, %c0_i32_0 : i32, i32, i32
  }
  func.func @transform_2(%arg0: i32) -> (i32, i32) {
    %c0_i32 = arith.constant 0 : i32
    %c0_i32_0 = arith.constant 0 : i32
    return %arg0, %c0_i32 : i32, i32
  }
  func.func @transform_3(%arg0: i32) -> (i32, i32, i32) {
    %c0_i32 = arith.constant 0 : i32
    %c0_i32_0 = arith.constant 0 : i32
    %c0_i32_1 = arith.constant 0 : i32
    %c0_i32_2 = arith.constant 0 : i32
    return %c0_i32, %c0_i32_0, %c0_i32_1 : i32, i32, i32
  }
  func.func @transform_4(%arg0: i32) -> (i32, i32, i32) {
    %c0_i32 = arith.constant 0 : i32
    %c0_i32_0 = arith.constant 0 : i32
    %c0_i32_1 = arith.constant 0 : i32
    %c0_i32_2 = arith.constant 0 : i32
    return %c0_i32, %c0_i32_0, %c0_i32_1 : i32, i32, i32
  }
  func.func @transform_5(%arg0: i32) -> (i32, i32, i32) {
    %c0_i32 = arith.constant 0 : i32
    %c0_i32_0 = arith.constant 0 : i32
    %c0_i32_1 = arith.constant 0 : i32
    %c0_i32_2 = arith.constant 0 : i32
    return %c0_i32, %c0_i32_0, %c0_i32_1 : i32, i32, i32
  }
  func.func @transform_6(%arg0: i32) -> (i32, i32, i32) {
    %c0_i32 = arith.constant 0 : i32
    %c0_i32_0 = arith.constant 0 : i32
    %c0_i32_1 = arith.constant 0 : i32
    %c0_i32_2 = arith.constant 0 : i32
    return %c0_i32, %c0_i32_0, %c0_i32_1 : i32, i32, i32
  }
  func.func @transform_7(%arg0: i32) -> (i32, i32, i32) {
    %c0_i32 = arith.constant 0 : i32
    %c0_i32_0 = arith.constant 0 : i32
    %c0_i32_1 = arith.constant 0 : i32
    %c0_i32_2 = arith.constant 0 : i32
    return %c0_i32, %c0_i32_0, %c0_i32_1 : i32, i32, i32
  }
  func.func @transform_8(%arg0: i32) -> (i32, i32, i32) {
    %c0_i32 = arith.constant 0 : i32
    %c0_i32_0 = arith.constant 0 : i32
    %c0_i32_1 = arith.constant 0 : i32
    %c0_i32_2 = arith.constant 0 : i32
    return %c0_i32, %c0_i32_0, %c0_i32_1 : i32, i32, i32
  }
  func.func @transform_9(%arg0: i32) -> (i32, i32, i32) {
    %c0_i32 = arith.constant 0 : i32
    %c0_i32_0 = arith.constant 0 : i32
    %c0_i32_1 = arith.constant 0 : i32
    %c0_i32_2 = arith.constant 0 : i32
    return %c0_i32, %c0_i32_0, %c0_i32_1 : i32, i32, i32
  }
  func.func @transform_10(%arg0: i32) -> (i32, i32) {
    %c0_i32 = arith.constant 0 : i32
    %c0_i32_0 = arith.constant 0 : i32
    %c0_i32_1 = arith.constant 0 : i32
    return %c0_i32, %c0_i32_0 : i32, i32
  }
  func.func @transform_11(%arg0: i32) -> (i32, i32) {
    %c0_i32 = arith.constant 0 : i32
    %c0_i32_0 = arith.constant 0 : i32
    %c0_i32_1 = arith.constant 0 : i32
    return %c0_i32, %c0_i32_0 : i32, i32
  }
  func.func @transform_12(%arg0: i32) -> (i32, i32) {
    %c0_i32 = arith.constant 0 : i32
    %c0_i32_0 = arith.constant 0 : i32
    %c0_i32_1 = arith.constant 0 : i32
    return %c0_i32, %c0_i32_0 : i32, i32
  }
  func.func @transform_13(%arg0: i32) -> (i32, i32) {
    %c0_i32 = arith.constant 0 : i32
    %c0_i32_0 = arith.constant 0 : i32
    %c0_i32_1 = arith.constant 0 : i32
    return %c0_i32, %c0_i32_0 : i32, i32
  }
  func.func @transform_14(%arg0: i32) -> (i32, i32) {
    %c0_i32 = arith.constant 0 : i32
    %c0_i32_0 = arith.constant 0 : i32
    %c0_i32_1 = arith.constant 0 : i32
    return %c0_i32, %c0_i32_0 : i32, i32
  }
  func.func @transform_15(%arg0: i32) -> (i32, i32) {
    %c0_i32 = arith.constant 0 : i32
    %c0_i32_0 = arith.constant 0 : i32
    %c0_i32_1 = arith.constant 0 : i32
    return %c0_i32, %c0_i32_0 : i32, i32
  }
  func.func @transform_16(%arg0: i32) -> (i32, i32) {
    %c0_i32 = arith.constant 0 : i32
    %c0_i32_0 = arith.constant 0 : i32
    %c0_i32_1 = arith.constant 0 : i32
    return %c0_i32, %c0_i32_0 : i32, i32
  }
  func.func @transform_17(%arg0: i32) -> (i32, i32) {
    %c0_i32 = arith.constant 0 : i32
    %c0_i32_0 = arith.constant 0 : i32
    %c0_i32_1 = arith.constant 0 : i32
    return %c0_i32, %c0_i32_0 : i32, i32
  }
  func.func @transform_18(%arg0: i32) -> (i32, i32) {
    %c0_i32 = arith.constant 0 : i32
    %c0_i32_0 = arith.constant 0 : i32
    %c0_i32_1 = arith.constant 0 : i32
    return %c0_i32, %c0_i32_0 : i32, i32
  }
  func.func @transform_19(%arg0: i32) -> (i32, i32, i32) {
    %c0_i32 = arith.constant 0 : i32
    %c0_i32_0 = arith.constant 0 : i32
    %c0_i32_1 = arith.constant 0 : i32
    return %arg0, %c0_i32, %c0_i32_0 : i32, i32, i32
  }
}

</mosaic_0001>

<llo_original>
// kernel: tpu_custom_call.1
$region0: #{tpu_custom_call.1}
  #allocation0 [shape = 'u32[]', space=smem, size = 0x4, offset = 0x4, fixed_abs, tag = 'smem constant byte address 0x4 - core index']
  #allocation1 [shape = 'u32[144,128]{1,0:T(1,128)}', space=vmem, size = 0x12000, scoped, tag = 'internal scratch']
  %s0 = inlined_call_operand.vmem [shape: f32[8,16,128], index: 0, kind: input, shape index: {}]
  %s1 = inlined_call_operand.vmem [shape: f32[8,1,16], index: 1, kind: input, shape index: {}]
  %s2 = inlined_call_operand.vmem [shape: f32[128,1], index: 2, kind: input, shape index: {}]
  %s3 = inlined_call_operand.vmem [shape: bf16[4,128,32], index: 3, kind: input, shape index: {}]
  %s4 = inlined_call_operand.vmem [shape: f32[4,1,32], index: 4, kind: input, shape index: {}]
  %s5 = inlined_call_operand.vmem [shape: bf16[4,128,32], index: 5, kind: input, shape index: {}]
  %s6 = inlined_call_operand.vmem [shape: f32[4,1,32], index: 6, kind: input, shape index: {}]
  %s7 = inlined_call_operand.vmem [shape: bf16[4,128,32], index: 7, kind: input, shape index: {}]
  %s8 = inlined_call_operand.vmem [shape: f32[4,1,32], index: 8, kind: input, shape index: {}]
  %s9 = inlined_call_operand.vmem [shape: bf16[4,32,128], index: 9, kind: input, shape index: {}]
  %s10 = inlined_call_operand.vmem [shape: f32[1,128], index: 10, kind: input, shape index: {}]
  %s11 = inlined_call_operand.vmem [shape: f32[1,128], index: 11, kind: input, shape index: {}]
  %s12 = inlined_call_operand.vmem [shape: f32[1,128], index: 12, kind: input, shape index: {}]
  %s13 = inlined_call_operand.vmem [shape: bf16[128,256], index: 13, kind: input, shape index: {}]
  %s14 = inlined_call_operand.vmem [shape: f32[1,256], index: 14, kind: input, shape index: {}]
  %s15 = inlined_call_operand.vmem [shape: bf16[256,128], index: 15, kind: input, shape index: {}]
  %s16 = inlined_call_operand.vmem [shape: f32[1,128], index: 16, kind: input, shape index: {}]
  %s17 = inlined_call_operand.vmem [shape: f32[1,128], index: 17, kind: input, shape index: {}]
  %s18 = inlined_call_operand.vmem [shape: f32[1,128], index: 18, kind: input, shape index: {}]
  %s19 = inlined_call_operand.hbm [shape: f32[8,16,128], index: 19, kind: output, shape index: {}]
  %s20 = sld [smem:[#allocation0]]
  $region109: #{tpu_custom_call.1} parent=0
    _
  %s22 = ssub.s32 1, %s20
  %s23 = scalar_select 0, %s22, %s20
  $region1: #{tpu_custom_call.1} parent=0
    #allocation2 [shape = 'u8[65536]{0}', space=vmem, size = 0x10000, scoped, tag = 'output window, operand 0']
    #allocation3 [shape = 's32[2]{0}', space=sflag, size = 0x8, scoped, tag = 'scoped memory for tpu_custom_call.1']
    %24 = vsyncpa [#allocation3], 0
    %s25 = scalar_lea.sflag [#allocation3], 1
    %26 = vsyncpa %s25, 0
    loop: start=0, step=1, limit=4
    $region2: #{tpu_custom_call.1} parent=1 // loop_pre_header
      _
    $region3: #{tpu_custom_call.1} parent=1 // loop_header
      %s28 = sphi 0, %s32
      %p29 = scmp.ge.s32.totalorder %s28, 4
      %s38 = sphi 0, %s40
      %s41 = sphi 0, %s38
      %s42 = sphi 0, %s41
      %s58 = sphi 0, %s42
      %s64 = sphi 0, %s66
      %s67 = sphi 0, %s64
      %s68 = sphi 0, %s67
      %s84 = sphi 0, %s68
      %s90 = sphi 0, %s92
      %s93 = sphi 0, %s90
      %s94 = sphi 0, %s93
      %s110 = sphi 0, %s94
      %s114 = sphi 0, %s114
      %s116 = sphi 0, %s114
      %s117 = sphi 0, %s116
      %s131 = sphi 0, %s117
      %s135 = sphi 0, %s135
      %s137 = sphi 0, %s135
      %s138 = sphi 0, %s137
      %s152 = sphi 0, %s138
      %s156 = sphi 0, %s156
      %s158 = sphi 0, %s156
      %s159 = sphi 0, %s158
      %s173 = sphi 0, %s159
      %s177 = sphi 0, %s177
      %s179 = sphi 0, %s177
      %s180 = sphi 0, %s179
      %s194 = sphi 0, %s180
      %s198 = sphi 0, %s198
      %s200 = sphi 0, %s198
      %s201 = sphi 0, %s200
      %s215 = sphi 0, %s201
      %s219 = sphi 0, %s219
      %s221 = sphi 0, %s219
      %s222 = sphi 0, %s221
      %s236 = sphi 0, %s222
      %s240 = sphi 0, %s240
      %s242 = sphi 0, %s240
      %s243 = sphi 0, %s242
      %s257 = sphi 0, %s243
      %s261 = sphi 0, %s261
      %s263 = sphi 0, %s261
      %s264 = sphi 0, %s263
      %s278 = sphi 0, %s264
      %s282 = sphi 0, %s282
      %s284 = sphi 0, %s282
      %s285 = sphi 0, %s284
      %s299 = sphi 0, %s285
      %s303 = sphi 0, %s303
      %s305 = sphi 0, %s303
      %s306 = sphi 0, %s305
      %s320 = sphi 0, %s306
      %s324 = sphi 0, %s324
      %s326 = sphi 0, %s324
      %s327 = sphi 0, %s326
      %s341 = sphi 0, %s327
      %s345 = sphi 0, %s345
      %s347 = sphi 0, %s345
      %s348 = sphi 0, %s347
      %s362 = sphi 0, %s348
      %s366 = sphi 0, %s366
      %s368 = sphi 0, %s366
      %s369 = sphi 0, %s368
      %s383 = sphi 0, %s369
      %s387 = sphi 0, %s387
      %s389 = sphi 0, %s387
      %s390 = sphi 0, %s389
      %s404 = sphi 0, %s390
      %s408 = sphi 0, %s408
      %s410 = sphi 0, %s408
      %s411 = sphi 0, %s410
      %s425 = sphi 0, %s411
      %s429 = sphi 0, %s429
      %s431 = sphi 0, %s429
      %s432 = sphi 0, %s431
      %s446 = sphi 0, %s432
      %s452 = sphi 0, %s454
      %s455 = sphi 0, %s452
      %s456 = sphi 0, %s455
      %s472 = sphi 0, %s456
    $region4: #{tpu_custom_call.1} parent=1 // loop_header_branch
      %31 = sbr.rel (%p29) target = $region8
    $region5: #{tpu_custom_call.1} parent=1 // loop_body
      %s33 = ssub.s32 %s28, 1
      %s34 = ssub.s32 %s28, 2
      %s35 = sadd.s32 %s28, 1
      %s36 = ssub.s32 %s28, %s35
      %p37 = scmp.eq.s32.totalorder %s36, 0
      %s39 = sadd.s32 %s38, 1
      %s40 = scalar_select %p37, %s38, %s39
      %p43 = pneg %p37
      %p44 = scmp.eq.s32.totalorder %s28, 1
      %p45 = por %p43, %p44
      %p46 = scmp.ne.s32.totalorder %s38, %s41
      %p47 = scmp.eq.s32.totalorder %s28, 0
      %p48 = por %p46, %p47
      %p49 = scmp.ne.s32.totalorder %s38, %s41
      %p50 = scmp.eq.s32.totalorder %s33, 1
      %p51 = por %p49, %p50
      %p52 = scmp.ne.s32.totalorder %s41, %s42
      %p53 = scmp.eq.s32.totalorder %s33, 0
      %p54 = por %p52, %p53
      %p55 = scmp.ne.s32.totalorder %s41, %s42
      %p56 = scmp.eq.s32.totalorder %s34, 1
      %p57 = por %p55, %p56
      %p59 = scmp.ne.s32.totalorder %s42, %s58
      %p60 = scmp.eq.s32.totalorder %s34, 0
      %p61 = por %p59, %p60
      %s62 = ssub.s32 %s28, %s35
      %p63 = scmp.eq.s32.totalorder %s62, 0
      %s65 = sadd.s32 %s64, 1
      %s66 = scalar_select %p63, %s64, %s65
      %p69 = pneg %p63
      %p70 = scmp.eq.s32.totalorder %s28, 1
      %p71 = por %p69, %p70
      %p72 = scmp.ne.s32.totalorder %s64, %s67
      %p73 = scmp.eq.s32.totalorder %s28, 0
      %p74 = por %p72, %p73
      %p75 = scmp.ne.s32.totalorder %s64, %s67
      %p76 = scmp.eq.s32.totalorder %s33, 1
      %p77 = por %p75, %p76
      %p78 = scmp.ne.s32.totalorder %s67, %s68
      %p79 = scmp.eq.s32.totalorder %s33, 0
      %p80 = por %p78, %p79
      %p81 = scmp.ne.s32.totalorder %s67, %s68
      %p82 = scmp.eq.s32.totalorder %s34, 1
      %p83 = por %p81, %p82
      %p85 = scmp.ne.s32.totalorder %s68, %s84
      %p86 = scmp.eq.s32.totalorder %s34, 0
      %p87 = por %p85, %p86
      %s88 = ssub.s32 %s28, %s35
      %p89 = scmp.eq.s32.totalorder %s88, 0
      %s91 = sadd.s32 %s90, 1
      %s92 = scalar_select %p89, %s90, %s91
      %p95 = pneg %p89
      %p96 = scmp.eq.s32.totalorder %s28, 1
      %p97 = por %p95, %p96
      %p98 = scmp.ne.s32.totalorder %s90, %s93
      %p99 = scmp.eq.s32.totalorder %s28, 0
      %p100 = por %p98, %p99
      %p101 = scmp.ne.s32.totalorder %s90, %s93
      %p102 = scmp.eq.s32.totalorder %s33, 1
      %p103 = por %p101, %p102
      %p104 = scmp.ne.s32.totalorder %s93, %s94
      %p105 = scmp.eq.s32.totalorder %s33, 0
      %p106 = por %p104, %p105
      %p107 = scmp.ne.s32.totalorder %s93, %s94
      %p108 = scmp.eq.s32.totalorder %s34, 1
      %p109 = por %p107, %p108
      %p111 = scmp.ne.s32.totalorder %s94, %s110
      %p112 = scmp.eq.s32.totalorder %s34, 0
      %p113 = por %p111, %p112
      %s115 = sadd.s32 %s114, 1
      %p118 = scmp.eq.s32.totalorder %s28, 1
      %p119 = scmp.ne.s32.totalorder %s114, %s116
      %p120 = scmp.eq.s32.totalorder %s28, 0
      %p121 = por %p119, %p120
      %p122 = scmp.ne.s32.totalorder %s114, %s116
      %p123 = scmp.eq.s32.totalorder %s33, 1
      %p124 = por %p122, %p123
      %p125 = scmp.ne.s32.totalorder %s116, %s117
      %p126 = scmp.eq.s32.totalorder %s33, 0
      %p127 = por %p125, %p126
      %p128 = scmp.ne.s32.totalorder %s116, %s117
      %p129 = scmp.eq.s32.totalorder %s34, 1
      %p130 = por %p128, %p129
      %p132 = scmp.ne.s32.totalorder %s117, %s131
      %p133 = scmp.eq.s32.totalorder %s34, 0
      %p134 = por %p132, %p133
      %s136 = sadd.s32 %s135, 1
      %p139 = scmp.eq.s32.totalorder %s28, 1
      %p140 = scmp.ne.s32.totalorder %s135, %s137
      %p141 = scmp.eq.s32.totalorder %s28, 0
      %p142 = por %p140, %p141
      %p143 = scmp.ne.s32.totalorder %s135, %s137
      %p144 = scmp.eq.s32.totalorder %s33, 1
      %p145 = por %p143, %p144
      %p146 = scmp.ne.s32.totalorder %s137, %s138
      %p147 = scmp.eq.s32.totalorder %s33, 0
      %p148 = por %p146, %p147
      %p149 = scmp.ne.s32.totalorder %s137, %s138
      %p150 = scmp.eq.s32.totalorder %s34, 1
      %p151 = por %p149, %p150
      %p153 = scmp.ne.s32.totalorder %s138, %s152
      %p154 = scmp.eq.s32.totalorder %s34, 0
      %p155 = por %p153, %p154
      %s157 = sadd.s32 %s156, 1
      %p160 = scmp.eq.s32.totalorder %s28, 1
      %p161 = scmp.ne.s32.totalorder %s156, %s158
      %p162 = scmp.eq.s32.totalorder %s28, 0
      %p163 = por %p161, %p162
      %p164 = scmp.ne.s32.totalorder %s156, %s158
      %p165 = scmp.eq.s32.totalorder %s33, 1
      %p166 = por %p164, %p165
      %p167 = scmp.ne.s32.totalorder %s158, %s159
      %p168 = scmp.eq.s32.totalorder %s33, 0
      %p169 = por %p167, %p168
      %p170 = scmp.ne.s32.totalorder %s158, %s159
      %p171 = scmp.eq.s32.totalorder %s34, 1
      %p172 = por %p170, %p171
      %p174 = scmp.ne.s32.totalorder %s159, %s173
      %p175 = scmp.eq.s32.totalorder %s34, 0
      %p176 = por %p174, %p175
      %s178 = sadd.s32 %s177, 1
      %p181 = scmp.eq.s32.totalorder %s28, 1
      %p182 = scmp.ne.s32.totalorder %s177, %s179
      %p183 = scmp.eq.s32.totalorder %s28, 0
      %p184 = por %p182, %p183
      %p185 = scmp.ne.s32.totalorder %s177, %s179
      %p186 = scmp.eq.s32.totalorder %s33, 1
      %p187 = por %p185, %p186
      %p188 = scmp.ne.s32.totalorder %s179, %s180
      %p189 = scmp.eq.s32.totalorder %s33, 0
      %p190 = por %p188, %p189
      %p191 = scmp.ne.s32.totalorder %s179, %s180
      %p192 = scmp.eq.s32.totalorder %s34, 1
      %p193 = por %p191, %p192
      %p195 = scmp.ne.s32.totalorder %s180, %s194
      %p196 = scmp.eq.s32.totalorder %s34, 0
      %p197 = por %p195, %p196
      %s199 = sadd.s32 %s198, 1
      %p202 = scmp.eq.s32.totalorder %s28, 1
      %p203 = scmp.ne.s32.totalorder %s198, %s200
      %p204 = scmp.eq.s32.totalorder %s28, 0
      %p205 = por %p203, %p204
      %p206 = scmp.ne.s32.totalorder %s198, %s200
      %p207 = scmp.eq.s32.totalorder %s33, 1
      %p208 = por %p206, %p207
      %p209 = scmp.ne.s32.totalorder %s200, %s201
      %p210 = scmp.eq.s32.totalorder %s33, 0
      %p211 = por %p209, %p210
      %p212 = scmp.ne.s32.totalorder %s200, %s201
      %p213 = scmp.eq.s32.totalorder %s34, 1
      %p214 = por %p212, %p213
      %p216 = scmp.ne.s32.totalorder %s201, %s215
      %p217 = scmp.eq.s32.totalorder %s34, 0
      %p218 = por %p216, %p217
      %s220 = sadd.s32 %s219, 1
      %p223 = scmp.eq.s32.totalorder %s28, 1
      %p224 = scmp.ne.s32.totalorder %s219, %s221
      %p225 = scmp.eq.s32.totalorder %s28, 0
      %p226 = por %p224, %p225
      %p227 = scmp.ne.s32.totalorder %s219, %s221
      %p228 = scmp.eq.s32.totalorder %s33, 1
      %p229 = por %p227, %p228
      %p230 = scmp.ne.s32.totalorder %s221, %s222
      %p231 = scmp.eq.s32.totalorder %s33, 0
      %p232 = por %p230, %p231
      %p233 = scmp.ne.s32.totalorder %s221, %s222
      %p234 = scmp.eq.s32.totalorder %s34, 1
      %p235 = por %p233, %p234
      %p237 = scmp.ne.s32.totalorder %s222, %s236
      %p238 = scmp.eq.s32.totalorder %s34, 0
      %p239 = por %p237, %p238
      %s241 = sadd.s32 %s240, 1
      %p244 = scmp.eq.s32.totalorder %s28, 1
      %p245 = scmp.ne.s32.totalorder %s240, %s242
      %p246 = scmp.eq.s32.totalorder %s28, 0
      %p247 = por %p245, %p246
      %p248 = scmp.ne.s32.totalorder %s240, %s242
      %p249 = scmp.eq.s32.totalorder %s33, 1
      %p250 = por %p248, %p249
      %p251 = scmp.ne.s32.totalorder %s242, %s243
      %p252 = scmp.eq.s32.totalorder %s33, 0
      %p253 = por %p251, %p252
      %p254 = scmp.ne.s32.totalorder %s242, %s243
      %p255 = scmp.eq.s32.totalorder %s34, 1
      %p256 = por %p254, %p255
      %p258 = scmp.ne.s32.totalorder %s243, %s257
      %p259 = scmp.eq.s32.totalorder %s34, 0
      %p260 = por %p258, %p259
      %s262 = sadd.s32 %s261, 1
      %p265 = scmp.eq.s32.totalorder %s28, 1
      %p266 = scmp.ne.s32.totalorder %s261, %s263
      %p267 = scmp.eq.s32.totalorder %s28, 0
      %p268 = por %p266, %p267
      %p269 = scmp.ne.s32.totalorder %s261, %s263
      %p270 = scmp.eq.s32.totalorder %s33, 1
      %p271 = por %p269, %p270
      %p272 = scmp.ne.s32.totalorder %s263, %s264
      %p273 = scmp.eq.s32.totalorder %s33, 0
      %p274 = por %p272, %p273
      %p275 = scmp.ne.s32.totalorder %s263, %s264
      %p276 = scmp.eq.s32.totalorder %s34, 1
      %p277 = por %p275, %p276
      %p279 = scmp.ne.s32.totalorder %s264, %s278
      %p280 = scmp.eq.s32.totalorder %s34, 0
      %p281 = por %p279, %p280
      %s283 = sadd.s32 %s282, 1
      %p286 = scmp.eq.s32.totalorder %s28, 1
      %p287 = scmp.ne.s32.totalorder %s282, %s284
      %p288 = scmp.eq.s32.totalorder %s28, 0
      %p289 = por %p287, %p288
      %p290 = scmp.ne.s32.totalorder %s282, %s284
      %p291 = scmp.eq.s32.totalorder %s33, 1
      %p292 = por %p290, %p291
      %p293 = scmp.ne.s32.totalorder %s284, %s285
      %p294 = scmp.eq.s32.totalorder %s33, 0
      %p295 = por %p293, %p294
      %p296 = scmp.ne.s32.totalorder %s284, %s285
      %p297 = scmp.eq.s32.totalorder %s34, 1
      %p298 = por %p296, %p297
      %p300 = scmp.ne.s32.totalorder %s285, %s299
      %p301 = scmp.eq.s32.totalorder %s34, 0
      %p302 = por %p300, %p301
      %s304 = sadd.s32 %s303, 1
      %p307 = scmp.eq.s32.totalorder %s28, 1
      %p308 = scmp.ne.s32.totalorder %s303, %s305
      %p309 = scmp.eq.s32.totalorder %s28, 0
      %p310 = por %p308, %p309
      %p311 = scmp.ne.s32.totalorder %s303, %s305
      %p312 = scmp.eq.s32.totalorder %s33, 1
      %p313 = por %p311, %p312
      %p314 = scmp.ne.s32.totalorder %s305, %s306
      %p315 = scmp.eq.s32.totalorder %s33, 0
      %p316 = por %p314, %p315
      %p317 = scmp.ne.s32.totalorder %s305, %s306
      %p318 = scmp.eq.s32.totalorder %s34, 1
      %p319 = por %p317, %p318
      %p321 = scmp.ne.s32.totalorder %s306, %s320
      %p322 = scmp.eq.s32.totalorder %s34, 0
      %p323 = por %p321, %p322
      %s325 = sadd.s32 %s324, 1
      %p328 = scmp.eq.s32.totalorder %s28, 1
      %p329 = scmp.ne.s32.totalorder %s324, %s326
      %p330 = scmp.eq.s32.totalorder %s28, 0
      %p331 = por %p329, %p330
      %p332 = scmp.ne.s32.totalorder %s324, %s326
      %p333 = scmp.eq.s32.totalorder %s33, 1
      %p334 = por %p332, %p333
      %p335 = scmp.ne.s32.totalorder %s326, %s327
      %p336 = scmp.eq.s32.totalorder %s33, 0
      %p337 = por %p335, %p336
      %p338 = scmp.ne.s32.totalorder %s326, %s327
      %p339 = scmp.eq.s32.totalorder %s34, 1
      %p340 = por %p338, %p339
      %p342 = scmp.ne.s32.totalorder %s327, %s341
      %p343 = scmp.eq.s32.totalorder %s34, 0
      %p344 = por %p342, %p343
      %s346 = sadd.s32 %s345, 1
      %p349 = scmp.eq.s32.totalorder %s28, 1
      %p350 = scmp.ne.s32.totalorder %s345, %s347
      %p351 = scmp.eq.s32.totalorder %s28, 0
      %p352 = por %p350, %p351
      %p353 = scmp.ne.s32.totalorder %s345, %s347
      %p354 = scmp.eq.s32.totalorder %s33, 1
      %p355 = por %p353, %p354
      %p356 = scmp.ne.s32.totalorder %s347, %s348
      %p357 = scmp.eq.s32.totalorder %s33, 0
      %p358 = por %p356, %p357
      %p359 = scmp.ne.s32.totalorder %s347, %s348
      %p360 = scmp.eq.s32.totalorder %s34, 1
      %p361 = por %p359, %p360
      %p363 = scmp.ne.s32.totalorder %s348, %s362
      %p364 = scmp.eq.s32.totalorder %s34, 0
      %p365 = por %p363, %p364
      %s367 = sadd.s32 %s366, 1
      %p370 = scmp.eq.s32.totalorder %s28, 1
      %p371 = scmp.ne.s32.totalorder %s366, %s368
      %p372 = scmp.eq.s32.totalorder %s28, 0
      %p373 = por %p371, %p372
      %p374 = scmp.ne.s32.totalorder %s366, %s368
      %p375 = scmp.eq.s32.totalorder %s33, 1
      %p376 = por %p374, %p375
      %p377 = scmp.ne.s32.totalorder %s368, %s369
      %p378 = scmp.eq.s32.totalorder %s33, 0
      %p379 = por %p377, %p378
      %p380 = scmp.ne.s32.totalorder %s368, %s369
      %p381 = scmp.eq.s32.totalorder %s34, 1
      %p382 = por %p380, %p381
      %p384 = scmp.ne.s32.totalorder %s369, %s383
      %p385 = scmp.eq.s32.totalorder %s34, 0
      %p386 = por %p384, %p385
      %s388 = sadd.s32 %s387, 1
      %p391 = scmp.eq.s32.totalorder %s28, 1
      %p392 = scmp.ne.s32.totalorder %s387, %s389
      %p393 = scmp.eq.s32.totalorder %s28, 0
      %p394 = por %p392, %p393
      %p395 = scmp.ne.s32.totalorder %s387, %s389
      %p396 = scmp.eq.s32.totalorder %s33, 1
      %p397 = por %p395, %p396
      %p398 = scmp.ne.s32.totalorder %s389, %s390
      %p399 = scmp.eq.s32.totalorder %s33, 0
      %p400 = por %p398, %p399
      %p401 = scmp.ne.s32.totalorder %s389, %s390
      %p402 = scmp.eq.s32.totalorder %s34, 1
      %p403 = por %p401, %p402
      %p405 = scmp.ne.s32.totalorder %s390, %s404
      %p406 = scmp.eq.s32.totalorder %s34, 0
      %p407 = por %p405, %p406
      %s409 = sadd.s32 %s408, 1
      %p412 = scmp.eq.s32.totalorder %s28, 1
      %p413 = scmp.ne.s32.totalorder %s408, %s410
      %p414 = scmp.eq.s32.totalorder %s28, 0
      %p415 = por %p413, %p414
      %p416 = scmp.ne.s32.totalorder %s408, %s410
      %p417 = scmp.eq.s32.totalorder %s33, 1
      %p418 = por %p416, %p417
      %p419 = scmp.ne.s32.totalorder %s410, %s411
      %p420 = scmp.eq.s32.totalorder %s33, 0
      %p421 = por %p419, %p420
      %p422 = scmp.ne.s32.totalorder %s410, %s411
      %p423 = scmp.eq.s32.totalorder %s34, 1
      %p424 = por %p422, %p423
      %p426 = scmp.ne.s32.totalorder %s411, %s425
      %p427 = scmp.eq.s32.totalorder %s34, 0
      %p428 = por %p426, %p427
      %s430 = sadd.s32 %s429, 1
      %p433 = scmp.eq.s32.totalorder %s28, 1
      %p434 = scmp.ne.s32.totalorder %s429, %s431
      %p435 = scmp.eq.s32.totalorder %s28, 0
      %p436 = por %p434, %p435
      %p437 = scmp.ne.s32.totalorder %s429, %s431
      %p438 = scmp.eq.s32.totalorder %s33, 1
      %p439 = por %p437, %p438
      %p440 = scmp.ne.s32.totalorder %s431, %s432
      %p441 = scmp.eq.s32.totalorder %s33, 0
      %p442 = por %p440, %p441
      %p443 = scmp.ne.s32.totalorder %s431, %s432
      %p444 = scmp.eq.s32.totalorder %s34, 1
      %p445 = por %p443, %p444
      %p447 = scmp.ne.s32.totalorder %s432, %s446
      %p448 = scmp.eq.s32.totalorder %s34, 0
      %p449 = por %p447, %p448
      %s450 = ssub.s32 %s28, %s35
      %p451 = scmp.eq.s32.totalorder %s450, 0
      %s453 = sadd.s32 %s452, 1
      %s454 = scalar_select %p451, %s452, %s453
      %p457 = pneg %p451
      %p458 = scmp.eq.s32.totalorder %s28, 1
      %p459 = por %p457, %p458
      %p460 = scmp.ne.s32.totalorder %s452, %s455
      %p461 = scmp.eq.s32.totalorder %s28, 0
      %p462 = por %p460, %p461
      %p463 = scmp.ne.s32.totalorder %s452, %s455
      %p464 = scmp.eq.s32.totalorder %s33, 1
      %p465 = por %p463, %p464
      %p466 = scmp.ne.s32.totalorder %s455, %s456
      %p467 = scmp.eq.s32.totalorder %s33, 0
      %p468 = por %p466, %p467
      %p469 = scmp.ne.s32.totalorder %s455, %s456
      %p470 = scmp.eq.s32.totalorder %s34, 1
      %p471 = por %p469, %p470
      %p473 = scmp.ne.s32.totalorder %s456, %s472
      %p474 = scmp.eq.s32.totalorder %s34, 0
      %p475 = por %p473, %p474
      %p476 = scmp.le.s32.totalorder 1, %s28
      %p477 = scmp.lt.s32.totalorder %s28, 3
      %p478 = pnand %p476, %p477
      %p479 = pneg %p478
      // Predicated region
      $region9: #{tpu_custom_call.1} parent=5 // pred_check
        _
      $region10: #{tpu_custom_call.1} parent=5 // pred_check_branch
        %481 = sbr.rel (%p478) target = $region12
      $region11: #{tpu_custom_call.1} parent=5 // pred_region
        %s482 = ssub.s32 %s28, 1
        // Predicated region
        $region13: #{tpu_custom_call.1} parent=11 // pred_check
          %p483 = pneg %p127
        $region14: #{tpu_custom_call.1} parent=11 // pred_check_branch
          %485 = sbr.rel (%p483) target = $region16
        $region15: #{tpu_custom_call.1} parent=11 // pred_region
          _
        $region16: #{tpu_custom_call.1} parent=11 // pred_fallthru
          _
        // Predicated region
        $region17: #{tpu_custom_call.1} parent=11 // pred_check
          %p486 = pneg %p148
        $region18: #{tpu_custom_call.1} parent=11 // pred_check_branch
          %488 = sbr.rel (%p486) target = $region20
        $region19: #{tpu_custom_call.1} parent=11 // pred_region
          _
        $region20: #{tpu_custom_call.1} parent=11 // pred_fallthru
          _
        // Predicated region
        $region21: #{tpu_custom_call.1} parent=11 // pred_check
          %p489 = pneg %p169
        $region22: #{tpu_custom_call.1} parent=11 // pred_check_branch
          %491 = sbr.rel (%p489) target = $region24
        $region23: #{tpu_custom_call.1} parent=11 // pred_region
          _
        $region24: #{tpu_custom_call.1} parent=11 // pred_fallthru
          _
        // Predicated region
        $region25: #{tpu_custom_call.1} parent=11 // pred_check
          %p492 = pneg %p190
        $region26: #{tpu_custom_call.1} parent=11 // pred_check_branch
          %494 = sbr.rel (%p492) target = $region28
        $region27: #{tpu_custom_call.1} parent=11 // pred_region
          _
        $region28: #{tpu_custom_call.1} parent=11 // pred_fallthru
          _
        // Predicated region
        $region29: #{tpu_custom_call.1} parent=11 // pred_check
          %p495 = pneg %p211
        $region30: #{tpu_custom_call.1} parent=11 // pred_check_branch
          %497 = sbr.rel (%p495) target = $region32
        $region31: #{tpu_custom_call.1} parent=11 // pred_region
          _
        $region32: #{tpu_custom_call.1} parent=11 // pred_fallthru
          _
        // Predicated region
        $region33: #{tpu_custom_call.1} parent=11 // pred_check
          %p498 = pneg %p232
        $region34: #{tpu_custom_call.1} parent=11 // pred_check_branch
          %500 = sbr.rel (%p498) target = $region36
        $region35: #{tpu_custom_call.1} parent=11 // pred_region
          _
        $region36: #{tpu_custom_call.1} parent=11 // pred_fallthru
          _
        // Predicated region
        $region37: #{tpu_custom_call.1} parent=11 // pred_check
          %p501 = pneg %p253
        $region38: #{tpu_custom_call.1} parent=11 // pred_check_branch
          %503 = sbr.rel (%p501) target = $region40
        $region39: #{tpu_custom_call.1} parent=11 // pred_region
          _
        $region40: #{tpu_custom_call.1} parent=11 // pred_fallthru
          _
        // Predicated region
        $region41: #{tpu_custom_call.1} parent=11 // pred_check
          %p504 = pneg %p274
        $region42: #{tpu_custom_call.1} parent=11 // pred_check_branch
          %506 = sbr.rel (%p504) target = $region44
        $region43: #{tpu_custom_call.1} parent=11 // pred_region
          _
        $region44: #{tpu_custom_call.1} parent=11 // pred_fallthru
          _
        // Predicated region
        $region45: #{tpu_custom_call.1} parent=11 // pred_check
          %p507 = pneg %p295
        $region46: #{tpu_custom_call.1} parent=11 // pred_check_branch
          %509 = sbr.rel (%p507) target = $region48
        $region47: #{tpu_custom_call.1} parent=11 // pred_region
          _
        $region48: #{tpu_custom_call.1} parent=11 // pred_fallthru
          _
        // Predicated region
        $region49: #{tpu_custom_call.1} parent=11 // pred_check
          %p510 = pneg %p316
        $region50: #{tpu_custom_call.1} parent=11 // pred_check_branch
          %512 = sbr.rel (%p510) target = $region52
        $region51: #{tpu_custom_call.1} parent=11 // pred_region
          _
        $region52: #{tpu_custom_call.1} parent=11 // pred_fallthru
          _
        // Predicated region
        $region53: #{tpu_custom_call.1} parent=11 // pred_check
          %p513 = pneg %p337
        $region54: #{tpu_custom_call.1} parent=11 // pred_check_branch
          %515 = sbr.rel (%p513) target = $region56
        $region55: #{tpu_custom_call.1} parent=11 // pred_region
          _
        $region56: #{tpu_custom_call.1} parent=11 // pred_fallthru
          _
        // Predicated region
        $region57: #{tpu_custom_call.1} parent=11 // pred_check
          %p516 = pneg %p358
        $region58: #{tpu_custom_call.1} parent=11 // pred_check_branch
          %518 = sbr.rel (%p516) target = $region60
        $region59: #{tpu_custom_call.1} parent=11 // pred_region
          _
        $region60: #{tpu_custom_call.1} parent=11 // pred_fallthru
          _
        // Predicated region
        $region61: #{tpu_custom_call.1} parent=11 // pred_check
          %p519 = pneg %p379
        $region62: #{tpu_custom_call.1} parent=11 // pred_check_branch
          %521 = sbr.rel (%p519) target = $region64
        $region63: #{tpu_custom_call.1} parent=11 // pred_region
          _
        $region64: #{tpu_custom_call.1} parent=11 // pred_fallthru
          _
        // Predicated region
        $region65: #{tpu_custom_call.1} parent=11 // pred_check
          %p522 = pneg %p400
        $region66: #{tpu_custom_call.1} parent=11 // pred_check_branch
          %524 = sbr.rel (%p522) target = $region68
        $region67: #{tpu_custom_call.1} parent=11 // pred_region
          _
        $region68: #{tpu_custom_call.1} parent=11 // pred_fallthru
          _
        // Predicated region
        $region69: #{tpu_custom_call.1} parent=11 // pred_check
          %p525 = pneg %p421
        $region70: #{tpu_custom_call.1} parent=11 // pred_check_branch
          %527 = sbr.rel (%p525) target = $region72
        $region71: #{tpu_custom_call.1} parent=11 // pred_region
          _
        $region72: #{tpu_custom_call.1} parent=11 // pred_fallthru
          _
        // Predicated region
        $region73: #{tpu_custom_call.1} parent=11 // pred_check
          %p528 = pneg %p442
        $region74: #{tpu_custom_call.1} parent=11 // pred_check_branch
          %530 = sbr.rel (%p528) target = $region76
        $region75: #{tpu_custom_call.1} parent=11 // pred_region
          _
        $region76: #{tpu_custom_call.1} parent=11 // pred_fallthru
          _
      $region12: #{tpu_custom_call.1} parent=5 // pred_fallthru
        _
      %p531 = scmp.lt.s32.totalorder %s28, 2
      // Predicated region
      $region77: #{tpu_custom_call.1} parent=5 // pred_check
        %p532 = pneg %p531
      $region78: #{tpu_custom_call.1} parent=5 // pred_check_branch
        %534 = sbr.rel (%p532) target = $region80
      $region79: #{tpu_custom_call.1} parent=5 // pred_region
        // Predicated region
        $region81: #{tpu_custom_call.1} parent=79 // pred_check
          %p535 = pneg %p48
        $region82: #{tpu_custom_call.1} parent=79 // pred_check_branch
          %537 = sbr.rel (%p535) target = $region84
        $region83: #{tpu_custom_call.1} parent=79 // pred_region
          %s538 = smul.u32 4, %s28
          %p539 = scmp.lt.s32.totalorder %s538, 7
          %s540 = scalar_select %p539, %s538, 7
          %s541 = smul.addr %s540, 2
          %s542 = smul.addr %s541, 8
          %s543 = scalar_lea.vmem %s0, %s542
          %s544 = smul.u32 4, %s28
        $region84: #{tpu_custom_call.1} parent=79 // pred_fallthru
          _
        // Predicated region
        $region85: #{tpu_custom_call.1} parent=79 // pred_check
          %p545 = pneg %p74
        $region86: #{tpu_custom_call.1} parent=79 // pred_check_branch
          %547 = sbr.rel (%p545) target = $region88
        $region87: #{tpu_custom_call.1} parent=79 // pred_region
          %s548 = smul.u32 4, %s28
          %p549 = scmp.lt.s32.totalorder %s548, 7
          %s550 = scalar_select %p549, %s548, 7
          %s551 = scalar_lea.vmem %s1, %s550
          %s552 = smul.u32 4, %s28
        $region88: #{tpu_custom_call.1} parent=79 // pred_fallthru
          _
        // Predicated region
        $region89: #{tpu_custom_call.1} parent=79 // pred_check
          %p553 = pneg %p100
        $region90: #{tpu_custom_call.1} parent=79 // pred_check_branch
          %555 = sbr.rel (%p553) target = $region92
        $region91: #{tpu_custom_call.1} parent=79 // pred_region
          %s556 = smul.u32 8, %s28
          %p557 = scmp.lt.s32.totalorder %s556, 15
          %s558 = scalar_select %p557, %s556, 15
          %s559 = smul.addr %s558, 8
          %s560 = scalar_lea.vmem %s2, %s559
          %s561 = smul.u32 8, %s28
        $region92: #{tpu_custom_call.1} parent=79 // pred_fallthru
          _
      $region80: #{tpu_custom_call.1} parent=5 // pred_fallthru
        _
      %p562 = scmp.le.s32.totalorder 1, %s28
      %p563 = scmp.lt.s32.totalorder %s28, 3
      %p564 = pnand %p562, %p563
      %p565 = pneg %p564
      // Predicated region
      $region93: #{tpu_custom_call.1} parent=5 // pred_check
        _
      $region94: #{tpu_custom_call.1} parent=5 // pred_check_branch
        %567 = sbr.rel (%p564) target = $region96
      $region95: #{tpu_custom_call.1} parent=5 // pred_region
        %s568 = ssub.s32 %s28, 1
        %s569 = smul.u32 4, %s33
        %p570 = scmp.lt.s32.totalorder %s569, 7
        %s571 = scalar_select %p570, %s569, 7
        %s572 = smul.addr %s571, 2
        %s573 = smul.addr %s572, 8
        %s574 = scalar_lea.vmem %s0, %s573
        %p575 = pneg %p54
        %p576 = pneg %p51
        %s577 = smul.u32 4, %s33
        %p578 = scmp.lt.s32.totalorder %s577, 7
        %s579 = scalar_select %p578, %s577, 7
        %s580 = scalar_lea.vmem %s1, %s579
        %p581 = pneg %p80
        %p582 = pneg %p77
        %s583 = smul.u32 8, %s33
        %p584 = scmp.lt.s32.totalorder %s583, 15
        %s585 = scalar_select %p584, %s583, 15
        %s586 = smul.addr %s585, 8
        %s587 = scalar_lea.vmem %s2, %s586
        %p588 = pneg %p106
        %p589 = pneg %p103
        %p590 = pneg %p127
        %p591 = pneg %p124
        %p592 = pneg %p148
        %p593 = pneg %p145
        %p594 = pneg %p169
        %p595 = pneg %p166
        %p596 = pneg %p190
        %p597 = pneg %p187
        %p598 = pneg %p211
        %p599 = pneg %p208
        %p600 = pneg %p232
        %p601 = pneg %p229
        %p602 = pneg %p253
        %p603 = pneg %p250
        %p604 = pneg %p274
        %p605 = pneg %p271
        %p606 = pneg %p295
        %p607 = pneg %p292
        %p608 = pneg %p316
        %p609 = pneg %p313
        %p610 = pneg %p337
        %p611 = pneg %p334
        %p612 = pneg %p358
        %p613 = pneg %p355
        %p614 = pneg %p379
        %p615 = pneg %p376
        %p616 = pneg %p400
        %p617 = pneg %p397
        %p618 = pneg %p421
        %p619 = pneg %p418
        %p620 = pneg %p442
        %p621 = pneg %p439
        %p622 = pneg %p468
        %p623 = pneg %p465
        %s624 = sand.u32 %s455, 1
        %s625 = scalar_lea.sflag [#allocation3], %s624
        %s626 = sand.u32 %s455, 1
        %s627 = smul.addr %s626, 64
        %s628 = scalar_lea.vmem [#allocation2], %s627
        %s629 = smul.u32 4, %s33
        %p630 = scmp.lt.s32.totalorder %s629, 7
        %s631 = scalar_select %p630, %s629, 7
        %s632 = smul.addr %s631, 2
        %s633 = smul.addr %s632, 8
        %s634 = scalar_lea.vmem %s0, %s633
        %s635 = smul.u32 4, %s33
        %s636 = smul.u32 4, %s33
        %p637 = scmp.lt.s32.totalorder %s636, 7
        %s638 = scalar_select %p637, %s636, 7
        %s639 = scalar_lea.vmem %s1, %s638
        %s640 = smul.u32 4, %s33
        %s641 = smul.u32 8, %s33
        %p642 = scmp.lt.s32.totalorder %s641, 15
        %s643 = scalar_select %p642, %s641, 15
        %s644 = smul.addr %s643, 8
        %s645 = scalar_lea.vmem %s2, %s644
        %s646 = smul.u32 8, %s33
        %s647 = smul.u32 4, %s33
        %v649 = vld [vmem:[%s634] sm:$0xff]
        %v650 = vld [vmem:[%s634 + $0x8] sm:$0xff]
        %v651 = vld [vmem:[%s634 + $0x10] sm:$0xff]
        %v652 = vld [vmem:[%s634 + $0x18] sm:$0xff]
        %v653 = vld [vmem:[%s634 + $0x20] sm:$0xff]
        %v654 = vld [vmem:[%s634 + $0x28] sm:$0xff]
        %v655 = vld [vmem:[%s634 + $0x30] sm:$0xff]
        %v656 = vld [vmem:[%s634 + $0x38] sm:$0xff]
        %v657 = vpack.c.bf16 %v650, %v649
        %v658 = vpack.c.bf16 %v652, %v651
        %v659 = vpack.c.bf16 %v654, %v653
        %v660 = vpack.c.bf16 %v656, %v655
        %v661 = vld [vmem:[%s639] sm:$0x1]
        %v662 = vld [vmem:[%s639 + $0x1] sm:$0x1]
        %v663 = vld [vmem:[%s639 + $0x2] sm:$0x1]
        %v664 = vld [vmem:[%s639 + $0x3] sm:$0x1]
        %v665 = vld [vmem:[%s3] sm:$0xf]
        %v666 = vld [vmem:[%s3 + $0x4] sm:$0xf]
        %v667 = vld [vmem:[%s3 + $0x8] sm:$0xf]
        %v668 = vld [vmem:[%s3 + $0xc] sm:$0xf]
        %v669 = vld [vmem:[%s3 + $0x10] sm:$0xf]
        %v670 = vld [vmem:[%s3 + $0x14] sm:$0xf]
        %v671 = vld [vmem:[%s3 + $0x18] sm:$0xf]
        %v672 = vld [vmem:[%s3 + $0x1c] sm:$0xf]
        %v673 = vld [vmem:[%s3 + $0x20] sm:$0xf]
        %v674 = vld [vmem:[%s3 + $0x24] sm:$0xf]
        %v675 = vld [vmem:[%s3 + $0x28] sm:$0xf]
        %v676 = vld [vmem:[%s3 + $0x2c] sm:$0xf]
        %v677 = vld [vmem:[%s3 + $0x30] sm:$0xf]
        %v678 = vld [vmem:[%s3 + $0x34] sm:$0xf]
        %v679 = vld [vmem:[%s3 + $0x38] sm:$0xf]
        %v680 = vld [vmem:[%s3 + $0x3c] sm:$0xf]
        %v681 = vld [vmem:[%s4] sm:$0x1]
        %v683 = vlaneseq
        %v684 = vshrl.u32 %v683, 7
        %v685 = vsub.s32 0, %v684
        %v686 = vrot.slane %v681, %v685
        %v704 = vunpack.c.l.b16 %v665
        %v705 = vunpack.c.l.b16 %v666
        %v706 = vunpack.c.l.b16 %v667
        %v707 = vunpack.c.l.b16 %v668
        %v708 = vunpack.c.l.b16 %v669
        %v709 = vunpack.c.l.b16 %v670
        %v710 = vunpack.c.l.b16 %v671
        %v711 = vunpack.c.l.b16 %v672
        %v712 = vunpack.c.l.b16 %v673
        %v713 = vunpack.c.l.b16 %v674
        %v714 = vunpack.c.l.b16 %v675
        %v715 = vunpack.c.l.b16 %v676
        %v716 = vunpack.c.l.b16 %v677
        %v717 = vunpack.c.l.b16 %v678
        %v718 = vunpack.c.l.b16 %v679
        %v719 = vunpack.c.l.b16 %v680
        %v720 = vpack.c.b16 %v705, %v704
        %v721 = vpack.c.b16 %v707, %v706
        %v722 = vpack.c.b16 %v709, %v708
        %v723 = vpack.c.b16 %v711, %v710
        %v724 = vpack.c.b16 %v713, %v712
        %v725 = vpack.c.b16 %v715, %v714
        %v726 = vpack.c.b16 %v717, %v716
        %v727 = vpack.c.b16 %v719, %v718
        %736 = vmatprep.subr.bf16.mxu0 0
        %737 = vmatpush1.bf16.msra.mxu0 %v720
        %738 = vmatprep.subr.bf16.mxu0 0
        %739 = vmatpush1.bf16.msra.mxu0 %v721
        %740 = vmatprep.subr.bf16.mxu0 0
        %741 = vmatpush1.bf16.msra.mxu0 %v722
        %742 = vmatprep.subr.bf16.mxu0 0
        %743 = vmatpush1.bf16.msra.mxu0 %v723
        %744 = vmatprep.subr.bf16.mxu0 0
        %745 = vmatpush1.bf16.msra.mxu0 %v724
        %746 = vmatprep.subr.bf16.mxu0 0
        %747 = vmatpush1.bf16.msra.mxu0 %v725
        %748 = vmatprep.subr.bf16.mxu0 0
        %749 = vmatpush1.bf16.msra.mxu0 %v726
        %750 = vmatprep.subr.bf16.mxu0 0
        %751 = vmatpush1.bf16.msra.mxu0 %v727
        %752 = vmatprep.subr.bf16.mxu0 0
        %753 = vmatpush1.bf16.msra.mxu0 0
        %754 = vmatprep.subr.bf16.mxu0 0
        %755 = vmatpush1.bf16.msra.mxu0 0
        %756 = vmatprep.subr.bf16.mxu0 0
        %757 = vmatpush1.bf16.msra.mxu0 0
        %758 = vmatprep.subr.bf16.mxu0 0
        %759 = vmatpush1.bf16.msra.mxu0 0
        %760 = vmatprep.subr.bf16.mxu0 0
        %761 = vmatpush1.bf16.msra.mxu0 0
        %762 = vmatprep.subr.bf16.mxu0 0
        %763 = vmatpush1.bf16.msra.mxu0 0
        %764 = vmatprep.subr.bf16.mxu0 0
        %765 = vmatpush1.bf16.msra.mxu0 0
        %766 = vmatprep.subr.bf16.mxu0 0
        %767 = vmatpush1.bf16.msra.mxu0 0
        %768 = vmatprep.mubr.bf16.mxu0 0
        %769 = vmatmul.mubr.bf16.gmra.mrb[0].mxu0 %v657
        %v770 = vpop.f32.mrb[0].mxu0
        %v771 = vadd.f32 %v686, %v770
        %v772 = vpop.f32.mrb[0].mxu0
        %v773 = vpop.f32.mrb[0].mxu0
        %v774 = vadd.f32 %v686, %v773
        %v775 = vpop.f32.mrb[0].mxu0
        %776 = vmatprep.mubr.bf16.mxu0 0
        %777 = vmatmul.mubr.bf16.gmra.mrb[0].mxu0 %v658
        %v778 = vpop.f32.mrb[0].mxu0
        %v779 = vadd.f32 %v686, %v778
        %v780 = vpop.f32.mrb[0].mxu0
        %v781 = vpop.f32.mrb[0].mxu0
        %v782 = vadd.f32 %v686, %v781
        %v783 = vpop.f32.mrb[0].mxu0
        %784 = vmatprep.mubr.bf16.mxu0 0
        %785 = vmatmul.mubr.bf16.gmra.mrb[0].mxu0 %v659
        %v786 = vpop.f32.mrb[0].mxu0
        %v787 = vadd.f32 %v686, %v786
        %v788 = vpop.f32.mrb[0].mxu0
        %v789 = vpop.f32.mrb[0].mxu0
        %v790 = vadd.f32 %v686, %v789
        %v791 = vpop.f32.mrb[0].mxu0
        %792 = vmatprep.mubr.bf16.mxu0 0
        %793 = vmatmul.mubr.bf16.gmra.mrb[0].mxu0 %v660
        %v794 = vpop.f32.mrb[0].mxu0
        %v795 = vadd.f32 %v686, %v794
        %v796 = vpop.f32.mrb[0].mxu0
        %v797 = vpop.f32.mrb[0].mxu0
        %v798 = vadd.f32 %v686, %v797
        %v799 = vpop.f32.mrb[0].mxu0
        %800 = vdwg.mxu0
        %v801 = vmul.f32 %v771, 0.17677669
        %v802 = vmul.f32 %v774, 0.17677669
        %v803 = vmul.f32 %v779, 0.17677669
        %v804 = vmul.f32 %v782, 0.17677669
        %v805 = vmul.f32 %v787, 0.17677669
        %v806 = vmul.f32 %v790, 0.17677669
        %v807 = vmul.f32 %v795, 0.17677669
        %v808 = vmul.f32 %v798, 0.17677669
        %v809 = vld [vmem:[%s5] sm:$0xf]
        %v810 = vld [vmem:[%s5 + $0x4] sm:$0xf]
        %v811 = vld [vmem:[%s5 + $0x8] sm:$0xf]
        %v812 = vld [vmem:[%s5 + $0xc] sm:$0xf]
        %v813 = vld [vmem:[%s5 + $0x10] sm:$0xf]
        %v814 = vld [vmem:[%s5 + $0x14] sm:$0xf]
        %v815 = vld [vmem:[%s5 + $0x18] sm:$0xf]
        %v816 = vld [vmem:[%s5 + $0x1c] sm:$0xf]
        %v817 = vld [vmem:[%s5 + $0x20] sm:$0xf]
        %v818 = vld [vmem:[%s5 + $0x24] sm:$0xf]
        %v819 = vld [vmem:[%s5 + $0x28] sm:$0xf]
        %v820 = vld [vmem:[%s5 + $0x2c] sm:$0xf]
        %v821 = vld [vmem:[%s5 + $0x30] sm:$0xf]
        %v822 = vld [vmem:[%s5 + $0x34] sm:$0xf]
        %v823 = vld [vmem:[%s5 + $0x38] sm:$0xf]
        %v824 = vld [vmem:[%s5 + $0x3c] sm:$0xf]
        %v825 = vld [vmem:[%s6] sm:$0x1]
        %v827 = vlaneseq
        %v828 = vshrl.u32 %v827, 7
        %v829 = vsub.s32 0, %v828
        %v830 = vrot.slane %v825, %v829
        %v848 = vunpack.c.l.b16 %v809
        %v849 = vunpack.c.l.b16 %v810
        %v850 = vunpack.c.l.b16 %v811
        %v851 = vunpack.c.l.b16 %v812
        %v852 = vunpack.c.l.b16 %v813
        %v853 = vunpack.c.l.b16 %v814
        %v854 = vunpack.c.l.b16 %v815
        %v855 = vunpack.c.l.b16 %v816
        %v856 = vunpack.c.l.b16 %v817
        %v857 = vunpack.c.l.b16 %v818
        %v858 = vunpack.c.l.b16 %v819
        %v859 = vunpack.c.l.b16 %v820
        %v860 = vunpack.c.l.b16 %v821
        %v861 = vunpack.c.l.b16 %v822
        %v862 = vunpack.c.l.b16 %v823
        %v863 = vunpack.c.l.b16 %v824
        %v864 = vpack.c.b16 %v849, %v848
        %v865 = vpack.c.b16 %v851, %v850
        %v866 = vpack.c.b16 %v853, %v852
        %v867 = vpack.c.b16 %v855, %v854
        %v868 = vpack.c.b16 %v857, %v856
        %v869 = vpack.c.b16 %v859, %v858
        %v870 = vpack.c.b16 %v861, %v860
        %v871 = vpack.c.b16 %v863, %v862
        %880 = vmatprep.subr.bf16.mxu0 0
        %881 = vmatpush1.bf16.msra.mxu0 %v864
        %882 = vmatprep.subr.bf16.mxu0 0
        %883 = vmatpush1.bf16.msra.mxu0 %v865
        %884 = vmatprep.subr.bf16.mxu0 0
        %885 = vmatpush1.bf16.msra.mxu0 %v866
        %886 = vmatprep.subr.bf16.mxu0 0
        %887 = vmatpush1.bf16.msra.mxu0 %v867
        %888 = vmatprep.subr.bf16.mxu0 0
        %889 = vmatpush1.bf16.msra.mxu0 %v868
        %890 = vmatprep.subr.bf16.mxu0 0
        %891 = vmatpush1.bf16.msra.mxu0 %v869
        %892 = vmatprep.subr.bf16.mxu0 0
        %893 = vmatpush1.bf16.msra.mxu0 %v870
        %894 = vmatprep.subr.bf16.mxu0 0
        %895 = vmatpush1.bf16.msra.mxu0 %v871
        %896 = vmatprep.subr.bf16.mxu0 0
        %897 = vmatpush1.bf16.msra.mxu0 0
        %898 = vmatprep.subr.bf16.mxu0 0
        %899 = vmatpush1.bf16.msra.mxu0 0
        %900 = vmatprep.subr.bf16.mxu0 0
        %901 = vmatpush1.bf16.msra.mxu0 0
        %902 = vmatprep.subr.bf16.mxu0 0
        %903 = vmatpush1.bf16.msra.mxu0 0
        %904 = vmatprep.subr.bf16.mxu0 0
        %905 = vmatpush1.bf16.msra.mxu0 0
        %906 = vmatprep.subr.bf16.mxu0 0
        %907 = vmatpush1.bf16.msra.mxu0 0
        %908 = vmatprep.subr.bf16.mxu0 0
        %909 = vmatpush1.bf16.msra.mxu0 0
        %910 = vmatprep.subr.bf16.mxu0 0
        %911 = vmatpush1.bf16.msra.mxu0 0
        %912 = vmatprep.mubr.bf16.mxu0 0
        %913 = vmatmul.mubr.bf16.gmra.mrb[0].mxu0 %v657
        %v914 = vpop.f32.mrb[0].mxu0
        %v915 = vadd.f32 %v830, %v914
        %v916 = vpop.f32.mrb[0].mxu0
        %v917 = vpop.f32.mrb[0].mxu0
        %v918 = vadd.f32 %v830, %v917
        %v919 = vpop.f32.mrb[0].mxu0
        %920 = vmatprep.mubr.bf16.mxu0 0
        %921 = vmatmul.mubr.bf16.gmra.mrb[0].mxu0 %v658
        %v922 = vpop.f32.mrb[0].mxu0
        %v923 = vadd.f32 %v830, %v922
        %v924 = vpop.f32.mrb[0].mxu0
        %v925 = vpop.f32.mrb[0].mxu0
        %v926 = vadd.f32 %v830, %v925
        %v927 = vpop.f32.mrb[0].mxu0
        %928 = vmatprep.mubr.bf16.mxu0 0
        %929 = vmatmul.mubr.bf16.gmra.mrb[0].mxu0 %v659
        %v930 = vpop.f32.mrb[0].mxu0
        %v931 = vadd.f32 %v830, %v930
        %v932 = vpop.f32.mrb[0].mxu0
        %v933 = vpop.f32.mrb[0].mxu0
        %v934 = vadd.f32 %v830, %v933
        %v935 = vpop.f32.mrb[0].mxu0
        %936 = vmatprep.mubr.bf16.mxu0 0
        %937 = vmatmul.mubr.bf16.gmra.mrb[0].mxu0 %v660
        %v938 = vpop.f32.mrb[0].mxu0
        %v939 = vadd.f32 %v830, %v938
        %v940 = vpop.f32.mrb[0].mxu0
        %v941 = vpop.f32.mrb[0].mxu0
        %v942 = vadd.f32 %v830, %v941
        %v943 = vpop.f32.mrb[0].mxu0
        %944 = vdwg.mxu0
        %v945 = vld [vmem:[%s7] sm:$0xf]
        %v946 = vld [vmem:[%s7 + $0x4] sm:$0xf]
        %v947 = vld [vmem:[%s7 + $0x8] sm:$0xf]
        %v948 = vld [vmem:[%s7 + $0xc] sm:$0xf]
        %v949 = vld [vmem:[%s7 + $0x10] sm:$0xf]
        %v950 = vld [vmem:[%s7 + $0x14] sm:$0xf]
        %v951 = vld [vmem:[%s7 + $0x18] sm:$0xf]
        %v952 = vld [vmem:[%s7 + $0x1c] sm:$0xf]
        %v953 = vld [vmem:[%s7 + $0x20] sm:$0xf]
        %v954 = vld [vmem:[%s7 + $0x24] sm:$0xf]
        %v955 = vld [vmem:[%s7 + $0x28] sm:$0xf]
        %v956 = vld [vmem:[%s7 + $0x2c] sm:$0xf]
        %v957 = vld [vmem:[%s7 + $0x30] sm:$0xf]
        %v958 = vld [vmem:[%s7 + $0x34] sm:$0xf]
        %v959 = vld [vmem:[%s7 + $0x38] sm:$0xf]
        %v960 = vld [vmem:[%s7 + $0x3c] sm:$0xf]
        %v961 = vld [vmem:[%s8] sm:$0x1]
        %v963 = vlaneseq
        %v964 = vshrl.u32 %v963, 7
        %v965 = vsub.s32 0, %v964
        %v966 = vrot.slane %v961, %v965
        %v984 = vunpack.c.l.b16 %v945
        %v985 = vunpack.c.l.b16 %v946
        %v986 = vunpack.c.l.b16 %v947
        %v987 = vunpack.c.l.b16 %v948
        %v988 = vunpack.c.l.b16 %v949
        %v989 = vunpack.c.l.b16 %v950
        %v990 = vunpack.c.l.b16 %v951
        %v991 = vunpack.c.l.b16 %v952
        %v992 = vunpack.c.l.b16 %v953
        %v993 = vunpack.c.l.b16 %v954
        %v994 = vunpack.c.l.b16 %v955
        %v995 = vunpack.c.l.b16 %v956
        %v996 = vunpack.c.l.b16 %v957
        %v997 = vunpack.c.l.b16 %v958
        %v998 = vunpack.c.l.b16 %v959
        %v999 = vunpack.c.l.b16 %v960
        %v1000 = vpack.c.b16 %v985, %v984
        %v1001 = vpack.c.b16 %v987, %v986
        %v1002 = vpack.c.b16 %v989, %v988
        %v1003 = vpack.c.b16 %v991, %v990
        %v1004 = vpack.c.b16 %v993, %v992
        %v1005 = vpack.c.b16 %v995, %v994
        %v1006 = vpack.c.b16 %v997, %v996
        %v1007 = vpack.c.b16 %v999, %v998
        %1016 = vmatprep.subr.bf16.mxu0 0
        %1017 = vmatpush1.bf16.msra.mxu0 %v1000
        %1018 = vmatprep.subr.bf16.mxu0 0
        %1019 = vmatpush1.bf16.msra.mxu0 %v1001
        %1020 = vmatprep.subr.bf16.mxu0 0
        %1021 = vmatpush1.bf16.msra.mxu0 %v1002
        %1022 = vmatprep.subr.bf16.mxu0 0
        %1023 = vmatpush1.bf16.msra.mxu0 %v1003
        %1024 = vmatprep.subr.bf16.mxu0 0
        %1025 = vmatpush1.bf16.msra.mxu0 %v1004
        %1026 = vmatprep.subr.bf16.mxu0 0
        %1027 = vmatpush1.bf16.msra.mxu0 %v1005
        %1028 = vmatprep.subr.bf16.mxu0 0
        %1029 = vmatpush1.bf16.msra.mxu0 %v1006
        %1030 = vmatprep.subr.bf16.mxu0 0
        %1031 = vmatpush1.bf16.msra.mxu0 %v1007
        %1032 = vmatprep.subr.bf16.mxu0 0
        %1033 = vmatpush1.bf16.msra.mxu0 0
        %1034 = vmatprep.subr.bf16.mxu0 0
        %1035 = vmatpush1.bf16.msra.mxu0 0
        %1036 = vmatprep.subr.bf16.mxu0 0
        %1037 = vmatpush1.bf16.msra.mxu0 0
        %1038 = vmatprep.subr.bf16.mxu0 0
        %1039 = vmatpush1.bf16.msra.mxu0 0
        %1040 = vmatprep.subr.bf16.mxu0 0
        %1041 = vmatpush1.bf16.msra.mxu0 0
        %1042 = vmatprep.subr.bf16.mxu0 0
        %1043 = vmatpush1.bf16.msra.mxu0 0
        %1044 = vmatprep.subr.bf16.mxu0 0
        %1045 = vmatpush1.bf16.msra.mxu0 0
        %1046 = vmatprep.subr.bf16.mxu0 0
        %1047 = vmatpush1.bf16.msra.mxu0 0
        %1048 = vmatprep.mubr.bf16.mxu0 0
        %1049 = vmatmul.mubr.bf16.gmra.mrb[0].mxu0 %v657
        %v1050 = vpop.f32.mrb[0].mxu0
        %v1051 = vadd.f32 %v966, %v1050
        %v1052 = vpop.f32.mrb[0].mxu0
        %v1053 = vpop.f32.mrb[0].mxu0
        %v1054 = vadd.f32 %v966, %v1053
        %v1055 = vpop.f32.mrb[0].mxu0
        %1056 = vmatprep.mubr.bf16.mxu0 0
        %1057 = vmatmul.mubr.bf16.gmra.mrb[0].mxu0 %v658
        %v1058 = vpop.f32.mrb[0].mxu0
        %v1059 = vadd.f32 %v966, %v1058
        %v1060 = vpop.f32.mrb[0].mxu0
        %v1061 = vpop.f32.mrb[0].mxu0
        %v1062 = vadd.f32 %v966, %v1061
        %v1063 = vpop.f32.mrb[0].mxu0
        %1064 = vmatprep.mubr.bf16.mxu0 0
        %1065 = vmatmul.mubr.bf16.gmra.mrb[0].mxu0 %v659
        %v1066 = vpop.f32.mrb[0].mxu0
        %v1067 = vadd.f32 %v966, %v1066
        %v1068 = vpop.f32.mrb[0].mxu0
        %v1069 = vpop.f32.mrb[0].mxu0
        %v1070 = vadd.f32 %v966, %v1069
        %v1071 = vpop.f32.mrb[0].mxu0
        %1072 = vmatprep.mubr.bf16.mxu0 0
        %1073 = vmatmul.mubr.bf16.gmra.mrb[0].mxu0 %v660
        %v1074 = vpop.f32.mrb[0].mxu0
        %v1075 = vadd.f32 %v966, %v1074
        %v1076 = vpop.f32.mrb[0].mxu0
        %v1077 = vpop.f32.mrb[0].mxu0
        %v1078 = vadd.f32 %v966, %v1077
        %v1079 = vpop.f32.mrb[0].mxu0
        %1080 = vdwg.mxu0
        %v1081 = vpack.c.bf16 %v802, %v801
        %v1082 = vpack.c.bf16 %v804, %v803
        %v1083 = vpack.c.bf16 %v806, %v805
        %v1084 = vpack.c.bf16 %v808, %v807
        %v1085 = vpack.c.bf16 %v918, %v915
        %v1086 = vpack.c.bf16 %v926, %v923
        %v1087 = vpack.c.bf16 %v934, %v931
        %v1088 = vpack.c.bf16 %v942, %v939
        %v1089 = vpack.c.bf16 %v1054, %v1051
        %v1090 = vpack.c.bf16 %v1062, %v1059
        %v1091 = vpack.c.bf16 %v1070, %v1067
        %v1092 = vpack.c.bf16 %v1078, %v1075
        %vm1093 = vcmask 261120
        %v1095 = vsel %vm1093, %v1081, 0
        %v1098 = vsel %vm1093, %v1085, 0
        %1100 = vmatprep.subr.bf16.mxu0 0
        %1101 = vmatpush1.bf16.xpose.msra.mxu0 %v1098
        %1102 = vmatprep.subr.bf16.mxu0 0
        %1103 = vmatpush1.bf16.xpose.msra.mxu0 0
        %1104 = vmatprep.subr.bf16.mxu0 0
        %1105 = vmatpush1.bf16.xpose.msra.mxu0 0
        %1106 = vmatprep.subr.bf16.mxu0 0
        %1107 = vmatpush1.bf16.xpose.msra.mxu0 0
        %1108 = vmatprep.subr.bf16.mxu0 0
        %1109 = vmatpush1.bf16.xpose.msra.mxu0 0
        %1110 = vmatprep.subr.bf16.mxu0 0
        %1111 = vmatpush1.bf16.xpose.msra.mxu0 0
        %1112 = vmatprep.subr.bf16.mxu0 0
        %1113 = vmatpush1.bf16.xpose.msra.mxu0 0
        %1114 = vmatprep.subr.bf16.mxu0 0
        %1115 = vmatpush1.bf16.xpose.msra.mxu0 0
        %1116 = vmatprep.subr.bf16.mxu0 0
        %1117 = vmatpush1.bf16.xpose.msra.mxu0 0
        %1118 = vmatprep.subr.bf16.mxu0 0
        %1119 = vmatpush1.bf16.xpose.msra.mxu0 0
        %1120 = vmatprep.subr.bf16.mxu0 0
        %1121 = vmatpush1.bf16.xpose.msra.mxu0 0
        %1122 = vmatprep.subr.bf16.mxu0 0
        %1123 = vmatpush1.bf16.xpose.msra.mxu0 0
        %1124 = vmatprep.subr.bf16.mxu0 0
        %1125 = vmatpush1.bf16.xpose.msra.mxu0 0
        %1126 = vmatprep.subr.bf16.mxu0 0
        %1127 = vmatpush1.bf16.xpose.msra.mxu0 0
        %1128 = vmatprep.subr.bf16.mxu0 0
        %1129 = vmatpush1.bf16.xpose.msra.mxu0 0
        %1130 = vmatprep.subr.bf16.mxu0 0
        %1131 = vmatpush1.bf16.xpose.msra.mxu0 0
        %1132 = vmatprep.mubr.bf16.mxu0 0
        %1133 = vmatmul.mubr.bf16.gmra.mrb[0].mxu0 %v1095
        %v1134 = vpop.f32.mrb[0].mxu0
        %v1135 = vadd.f32 0.0, %v1134
        %v1136 = vpop.f32.mrb[0].mxu0
        %v1137 = vpop.f32.mrb[0].mxu0
        %v1138 = vadd.f32 0.0, %v1137
        %v1139 = vpop.f32.mrb[0].mxu0
        %1140 = vdwg.mxu0
        %v1142 = vsel %vm1093, %v1082, 0
        %v1145 = vsel %vm1093, %v1086, 0
        %1147 = vmatprep.subr.bf16.mxu0 0
        %1148 = vmatpush1.bf16.xpose.msra.mxu0 %v1145
        %1149 = vmatprep.subr.bf16.mxu0 0
        %1150 = vmatpush1.bf16.xpose.msra.mxu0 0
        %1151 = vmatprep.subr.bf16.mxu0 0
        %1152 = vmatpush1.bf16.xpose.msra.mxu0 0
        %1153 = vmatprep.subr.bf16.mxu0 0
        %1154 = vmatpush1.bf16.xpose.msra.mxu0 0
        %1155 = vmatprep.subr.bf16.mxu0 0
        %1156 = vmatpush1.bf16.xpose.msra.mxu0 0
        %1157 = vmatprep.subr.bf16.mxu0 0
        %1158 = vmatpush1.bf16.xpose.msra.mxu0 0
        %1159 = vmatprep.subr.bf16.mxu0 0
        %1160 = vmatpush1.bf16.xpose.msra.mxu0 0
        %1161 = vmatprep.subr.bf16.mxu0 0
        %1162 = vmatpush1.bf16.xpose.msra.mxu0 0
        %1163 = vmatprep.subr.bf16.mxu0 0
        %1164 = vmatpush1.bf16.xpose.msra.mxu0 0
        %1165 = vmatprep.subr.bf16.mxu0 0
        %1166 = vmatpush1.bf16.xpose.msra.mxu0 0
        %1167 = vmatprep.subr.bf16.mxu0 0
        %1168 = vmatpush1.bf16.xpose.msra.mxu0 0
        %1169 = vmatprep.subr.bf16.mxu0 0
        %1170 = vmatpush1.bf16.xpose.msra.mxu0 0
        %1171 = vmatprep.subr.bf16.mxu0 0
        %1172 = vmatpush1.bf16.xpose.msra.mxu0 0
        %1173 = vmatprep.subr.bf16.mxu0 0
        %1174 = vmatpush1.bf16.xpose.msra.mxu0 0
        %1175 = vmatprep.subr.bf16.mxu0 0
        %1176 = vmatpush1.bf16.xpose.msra.mxu0 0
        %1177 = vmatprep.subr.bf16.mxu0 0
        %1178 = vmatpush1.bf16.xpose.msra.mxu0 0
        %1179 = vmatprep.mubr.bf16.mxu0 0
        %1180 = vmatmul.mubr.bf16.gmra.mrb[0].mxu0 %v1142
        %v1181 = vpop.f32.mrb[0].mxu0
        %v1182 = vadd.f32 0.0, %v1181
        %v1183 = vpop.f32.mrb[0].mxu0
        %v1184 = vpop.f32.mrb[0].mxu0
        %v1185 = vadd.f32 0.0, %v1184
        %v1186 = vpop.f32.mrb[0].mxu0
        %1187 = vdwg.mxu0
        %v1189 = vsel %vm1093, %v1083, 0
        %v1192 = vsel %vm1093, %v1087, 0
        %1194 = vmatprep.subr.bf16.mxu0 0
        %1195 = vmatpush1.bf16.xpose.msra.mxu0 %v1192
        %1196 = vmatprep.subr.bf16.mxu0 0
        %1197 = vmatpush1.bf16.xpose.msra.mxu0 0
        %1198 = vmatprep.subr.bf16.mxu0 0
        %1199 = vmatpush1.bf16.xpose.msra.mxu0 0
        %1200 = vmatprep.subr.bf16.mxu0 0
        %1201 = vmatpush1.bf16.xpose.msra.mxu0 0
        %1202 = vmatprep.subr.bf16.mxu0 0
        %1203 = vmatpush1.bf16.xpose.msra.mxu0 0
        %1204 = vmatprep.subr.bf16.mxu0 0
        %1205 = vmatpush1.bf16.xpose.msra.mxu0 0
        %1206 = vmatprep.subr.bf16.mxu0 0
        %1207 = vmatpush1.bf16.xpose.msra.mxu0 0
        %1208 = vmatprep.subr.bf16.mxu0 0
        %1209 = vmatpush1.bf16.xpose.msra.mxu0 0
        %1210 = vmatprep.subr.bf16.mxu0 0
        %1211 = vmatpush1.bf16.xpose.msra.mxu0 0
        %1212 = vmatprep.subr.bf16.mxu0 0
        %1213 = vmatpush1.bf16.xpose.msra.mxu0 0
        %1214 = vmatprep.subr.bf16.mxu0 0
        %1215 = vmatpush1.bf16.xpose.msra.mxu0 0
        %1216 = vmatprep.subr.bf16.mxu0 0
        %1217 = vmatpush1.bf16.xpose.msra.mxu0 0
        %1218 = vmatprep.subr.bf16.mxu0 0
        %1219 = vmatpush1.bf16.xpose.msra.mxu0 0
        %1220 = vmatprep.subr.bf16.mxu0 0
        %1221 = vmatpush1.bf16.xpose.msra.mxu0 0
        %1222 = vmatprep.subr.bf16.mxu0 0
        %1223 = vmatpush1.bf16.xpose.msra.mxu0 0
        %1224 = vmatprep.subr.bf16.mxu0 0
        %1225 = vmatpush1.bf16.xpose.msra.mxu0 0
        %1226 = vmatprep.mubr.bf16.mxu0 0
        %1227 = vmatmul.mubr.bf16.gmra.mrb[0].mxu0 %v1189
        %v1228 = vpop.f32.mrb[0].mxu0
        %v1229 = vadd.f32 0.0, %v1228
        %v1230 = vpop.f32.mrb[0].mxu0
        %v1231 = vpop.f32.mrb[0].mxu0
        %v1232 = vadd.f32 0.0, %v1231
        %v1233 = vpop.f32.mrb[0].mxu0
        %1234 = vdwg.mxu0
        %v1236 = vsel %vm1093, %v1084, 0
        %v1239 = vsel %vm1093, %v1088, 0
        %1241 = vmatprep.subr.bf16.mxu0 0
        %1242 = vmatpush1.bf16.xpose.msra.mxu0 %v1239
        %1243 = vmatprep.subr.bf16.mxu0 0
        %1244 = vmatpush1.bf16.xpose.msra.mxu0 0
        %1245 = vmatprep.subr.bf16.mxu0 0
        %1246 = vmatpush1.bf16.xpose.msra.mxu0 0
        %1247 = vmatprep.subr.bf16.mxu0 0
        %1248 = vmatpush1.bf16.xpose.msra.mxu0 0
        %1249 = vmatprep.subr.bf16.mxu0 0
        %1250 = vmatpush1.bf16.xpose.msra.mxu0 0
        %1251 = vmatprep.subr.bf16.mxu0 0
        %1252 = vmatpush1.bf16.xpose.msra.mxu0 0
        %1253 = vmatprep.subr.bf16.mxu0 0
        %1254 = vmatpush1.bf16.xpose.msra.mxu0 0
        %1255 = vmatprep.subr.bf16.mxu0 0
        %1256 = vmatpush1.bf16.xpose.msra.mxu0 0
        %1257 = vmatprep.subr.bf16.mxu0 0
        %1258 = vmatpush1.bf16.xpose.msra.mxu0 0
        %1259 = vmatprep.subr.bf16.mxu0 0
        %1260 = vmatpush1.bf16.xpose.msra.mxu0 0
        %1261 = vmatprep.subr.bf16.mxu0 0
        %1262 = vmatpush1.bf16.xpose.msra.mxu0 0
        %1263 = vmatprep.subr.bf16.mxu0 0
        %1264 = vmatpush1.bf16.xpose.msra.mxu0 0
        %1265 = vmatprep.subr.bf16.mxu0 0
        %1266 = vmatpush1.bf16.xpose.msra.mxu0 0
        %1267 = vmatprep.subr.bf16.mxu0 0
        %1268 = vmatpush1.bf16.xpose.msra.mxu0 0
        %1269 = vmatprep.subr.bf16.mxu0 0
        %1270 = vmatpush1.bf16.xpose.msra.mxu0 0
        %1271 = vmatprep.subr.bf16.mxu0 0
        %1272 = vmatpush1.bf16.xpose.msra.mxu0 0
        %1273 = vmatprep.mubr.bf16.mxu0 0
        %1274 = vmatmul.mubr.bf16.gmra.mrb[0].mxu0 %v1236
        %v1275 = vpop.f32.mrb[0].mxu0
        %v1276 = vadd.f32 0.0, %v1275
        %v1277 = vpop.f32.mrb[0].mxu0
        %v1278 = vpop.f32.mrb[0].mxu0
        %v1279 = vadd.f32 0.0, %v1278
        %v1280 = vpop.f32.mrb[0].mxu0
        %1281 = vdwg.mxu0
        %vm1282 = vcmp.eq.f32.partialorder %v661, 0.0
        %vm1283 = vcmp.eq.f32.partialorder %v662, 0.0
        %vm1284 = vcmp.eq.f32.partialorder %v663, 0.0
        %vm1285 = vcmp.eq.f32.partialorder %v664, 0.0
        %v1286 = vsel %vm1282, 1, 0
        %v1287 = vsel %vm1283, 1, 0
        %v1288 = vsel %vm1284, 1, 0
        %v1289 = vsel %vm1285, 1, 0
        %v1290 = vlaneseq
        %v1291 = vshrl.u32 %v1290, 7
        %v1292 = vsub.s32 0, %v1291
        %v1293 = vrot.slane %v1286, %v1292
        %v1294 = vlaneseq
        %v1295 = vshrl.u32 %v1294, 7
        %v1296 = vsub.s32 0, %v1295
        %v1297 = vrot.slane %v1287, %v1296
        %v1298 = vlaneseq
        %v1299 = vshrl.u32 %v1298, 7
        %v1300 = vsub.s32 0, %v1299
        %v1301 = vrot.slane %v1288, %v1300
        %v1302 = vlaneseq
        %v1303 = vshrl.u32 %v1302, 7
        %v1304 = vsub.s32 0, %v1303
        %v1305 = vrot.slane %v1289, %v1304
        %vm1306 = vcmp.eq.s32.totalorder %v1293, 1
        %vm1307 = vcmp.eq.s32.totalorder %v1297, 1
        %vm1308 = vcmp.eq.s32.totalorder %v1301, 1
        %vm1309 = vcmp.eq.s32.totalorder %v1305, 1
        %v1310 = vsel %vm1306, -1e+20, %v1135
        %v1311 = vsel %vm1306, -1e+20, %v1138
        %v1312 = vsel %vm1307, -1e+20, %v1182
        %v1313 = vsel %vm1307, -1e+20, %v1185
        %v1314 = vsel %vm1308, -1e+20, %v1229
        %v1315 = vsel %vm1308, -1e+20, %v1232
        %v1316 = vsel %vm1309, -1e+20, %v1276
        %v1317 = vsel %vm1309, -1e+20, %v1279
        %vm1318 = vcmask 130048
        %v1319 = vsel %vm1318, %v1310, -inf
        %1320 = vmax.xlane.f32.xlu0 %v1319
        %v1321 = vpop.xlane.xlu0 %1320
        %v1322 = vsel %vm1318, %v1311, -inf
        %1323 = vmax.xlane.f32.xlu0 %v1322
        %v1324 = vpop.xlane.xlu0 %1323
        %v1325 = vsel %vm1318, %v1312, -inf
        %1326 = vmax.xlane.f32.xlu0 %v1325
        %v1327 = vpop.xlane.xlu0 %1326
        %v1328 = vsel %vm1318, %v1313, -inf
        %1329 = vmax.xlane.f32.xlu0 %v1328
        %v1330 = vpop.xlane.xlu0 %1329
        %v1331 = vsel %vm1318, %v1314, -inf
        %1332 = vmax.xlane.f32.xlu0 %v1331
        %v1333 = vpop.xlane.xlu0 %1332
        %v1334 = vsel %vm1318, %v1315, -inf
        %1335 = vmax.xlane.f32.xlu0 %v1334
        %v1336 = vpop.xlane.xlu0 %1335
        %v1337 = vsel %vm1318, %v1316, -inf
        %1338 = vmax.xlane.f32.xlu0 %v1337
        %v1339 = vpop.xlane.xlu0 %1338
        %v1340 = vsel %vm1318, %v1317, -inf
        %1341 = vmax.xlane.f32.xlu0 %v1340
        %v1342 = vpop.xlane.xlu0 %1341
        %v1343 = vsub.f32 %v1310, %v1321
        %v1344 = vsub.f32 %v1311, %v1324
        %v1345 = vsub.f32 %v1312, %v1327
        %v1346 = vsub.f32 %v1313, %v1330
        %v1347 = vsub.f32 %v1314, %v1333
        %v1348 = vsub.f32 %v1315, %v1336
        %v1349 = vsub.f32 %v1316, %v1339
        %v1350 = vsub.f32 %v1317, %v1342
        %v1351 = vmul.f32 %v1343, 1.442695
        %v1352 = vpow.pop %v1351
        %v1353 = vmul.f32 %v1344, 1.442695
        %v1354 = vpow.pop %v1353
        %v1355 = vmul.f32 %v1345, 1.442695
        %v1356 = vpow.pop %v1355
        %v1357 = vmul.f32 %v1346, 1.442695
        %v1358 = vpow.pop %v1357
        %v1359 = vmul.f32 %v1347, 1.442695
        %v1360 = vpow.pop %v1359
        %v1361 = vmul.f32 %v1348, 1.442695
        %v1362 = vpow.pop %v1361
        %v1363 = vmul.f32 %v1349, 1.442695
        %v1364 = vpow.pop %v1363
        %v1365 = vmul.f32 %v1350, 1.442695
        %v1366 = vpow.pop %v1365
        %v1367 = vsel %vm1318, %v1352, 0.0
        %1368 = vadd.xlane.f32.xlu0 %v1367
        %v1369 = vpop.xlane.xlu0 %1368
        %v1370 = vsel %vm1318, %v1354, 0.0
        %1371 = vadd.xlane.f32.xlu0 %v1370
        %v1372 = vpop.xlane.xlu0 %1371
        %v1373 = vsel %vm1318, %v1356, 0.0
        %1374 = vadd.xlane.f32.xlu0 %v1373
        %v1375 = vpop.xlane.xlu0 %1374
        %v1376 = vsel %vm1318, %v1358, 0.0
        %1377 = vadd.xlane.f32.xlu0 %v1376
        %v1378 = vpop.xlane.xlu0 %1377
        %v1379 = vsel %vm1318, %v1360, 0.0
        %1380 = vadd.xlane.f32.xlu0 %v1379
        %v1381 = vpop.xlane.xlu0 %1380
        %v1382 = vsel %vm1318, %v1362, 0.0
        %1383 = vadd.xlane.f32.xlu0 %v1382
        %v1384 = vpop.xlane.xlu0 %1383
        %v1385 = vsel %vm1318, %v1364, 0.0
        %1386 = vadd.xlane.f32.xlu0 %v1385
        %v1387 = vpop.xlane.xlu0 %1386
        %v1388 = vsel %vm1318, %v1366, 0.0
        %1389 = vadd.xlane.f32.xlu0 %v1388
        %v1390 = vpop.xlane.xlu0 %1389
        %v1391 = vrcp.pop %v1369
        %v1392 = vrcp.pop %v1372
        %v1393 = vrcp.pop %v1375
        %v1394 = vrcp.pop %v1378
        %v1395 = vrcp.pop %v1381
        %v1396 = vrcp.pop %v1384
        %v1397 = vrcp.pop %v1387
        %v1398 = vrcp.pop %v1390
        %v1399 = vmul.f32 %v1352, %v1391
        %v1400 = vmul.f32 %v1354, %v1392
        %v1401 = vmul.f32 %v1356, %v1393
        %v1402 = vmul.f32 %v1358, %v1394
        %v1403 = vmul.f32 %v1360, %v1395
        %v1404 = vmul.f32 %v1362, %v1396
        %v1405 = vmul.f32 %v1364, %v1397
        %v1406 = vmul.f32 %v1366, %v1398
        %v1407 = vpack.c.bf16 %v1400, %v1399
        %v1408 = vpack.c.bf16 %v1402, %v1401
        %v1409 = vpack.c.bf16 %v1404, %v1403
        %v1410 = vpack.c.bf16 %v1406, %v1405
        %v1412 = vsel %vm1318, %v1407, 0
        %1414 = vmatprep.subr.bf16.mxu0 0
        %1415 = vmatpush1.bf16.msra.mxu0 %v1089
        %1416 = vmatprep.subr.bf16.mxu0 0
        %1417 = vmatpush1.bf16.msra.mxu0 0
        %1418 = vmatprep.subr.bf16.mxu0 0
        %1419 = vmatpush1.bf16.msra.mxu0 0
        %1420 = vmatprep.subr.bf16.mxu0 0
        %1421 = vmatpush1.bf16.msra.mxu0 0
        %1422 = vmatprep.subr.bf16.mxu0 0
        %1423 = vmatpush1.bf16.msra.mxu0 0
        %1424 = vmatprep.subr.bf16.mxu0 0
        %1425 = vmatpush1.bf16.msra.mxu0 0
        %1426 = vmatprep.subr.bf16.mxu0 0
        %1427 = vmatpush1.bf16.msra.mxu0 0
        %1428 = vmatprep.subr.bf16.mxu0 0
        %1429 = vmatpush1.bf16.msra.mxu0 0
        %1430 = vmatprep.subr.bf16.mxu0 0
        %1431 = vmatpush1.bf16.msra.mxu0 0
        %1432 = vmatprep.subr.bf16.mxu0 0
        %1433 = vmatpush1.bf16.msra.mxu0 0
        %1434 = vmatprep.subr.bf16.mxu0 0
        %1435 = vmatpush1.bf16.msra.mxu0 0
        %1436 = vmatprep.subr.bf16.mxu0 0
        %1437 = vmatpush1.bf16.msra.mxu0 0
        %1438 = vmatprep.subr.bf16.mxu0 0
        %1439 = vmatpush1.bf16.msra.mxu0 0
        %1440 = vmatprep.subr.bf16.mxu0 0
        %1441 = vmatpush1.bf16.msra.mxu0 0
        %1442 = vmatprep.subr.bf16.mxu0 0
        %1443 = vmatpush1.bf16.msra.mxu0 0
        %1444 = vmatprep.subr.bf16.mxu0 0
        %1445 = vmatpush1.bf16.msra.mxu0 0
        %1446 = vmatprep.mubr.bf16.mxu0 0
        %1447 = vmatmul.mubr.bf16.gmra.mrb[0].mxu0 %v1412
        %v1448 = vpop.f32.mrb[0].mxu0
        %v1449 = vadd.f32 0.0, %v1448
        %v1450 = vpop.f32.mrb[0].mxu0
        %v1451 = vpop.f32.mrb[0].mxu0
        %v1452 = vadd.f32 0.0, %v1451
        %v1453 = vpop.f32.mrb[0].mxu0
        %1454 = vdwg.mxu0
        %v1456 = vsel %vm1318, %v1408, 0
        %1458 = vmatprep.subr.bf16.mxu0 0
        %1459 = vmatpush1.bf16.msra.mxu0 %v1090
        %1460 = vmatprep.subr.bf16.mxu0 0
        %1461 = vmatpush1.bf16.msra.mxu0 0
        %1462 = vmatprep.subr.bf16.mxu0 0
        %1463 = vmatpush1.bf16.msra.mxu0 0
        %1464 = vmatprep.subr.bf16.mxu0 0
        %1465 = vmatpush1.bf16.msra.mxu0 0
        %1466 = vmatprep.subr.bf16.mxu0 0
        %1467 = vmatpush1.bf16.msra.mxu0 0
        %1468 = vmatprep.subr.bf16.mxu0 0
        %1469 = vmatpush1.bf16.msra.mxu0 0
        %1470 = vmatprep.subr.bf16.mxu0 0
        %1471 = vmatpush1.bf16.msra.mxu0 0
        %1472 = vmatprep.subr.bf16.mxu0 0
        %1473 = vmatpush1.bf16.msra.mxu0 0
        %1474 = vmatprep.subr.bf16.mxu0 0
        %1475 = vmatpush1.bf16.msra.mxu0 0
        %1476 = vmatprep.subr.bf16.mxu0 0
        %1477 = vmatpush1.bf16.msra.mxu0 0
        %1478 = vmatprep.subr.bf16.mxu0 0
        %1479 = vmatpush1.bf16.msra.mxu0 0
        %1480 = vmatprep.subr.bf16.mxu0 0
        %1481 = vmatpush1.bf16.msra.mxu0 0
        %1482 = vmatprep.subr.bf16.mxu0 0
        %1483 = vmatpush1.bf16.msra.mxu0 0
        %1484 = vmatprep.subr.bf16.mxu0 0
        %1485 = vmatpush1.bf16.msra.mxu0 0
        %1486 = vmatprep.subr.bf16.mxu0 0
        %1487 = vmatpush1.bf16.msra.mxu0 0
        %1488 = vmatprep.subr.bf16.mxu0 0
        %1489 = vmatpush1.bf16.msra.mxu0 0
        %1490 = vmatprep.mubr.bf16.mxu0 0
        %1491 = vmatmul.mubr.bf16.gmra.mrb[0].mxu0 %v1456
        %v1492 = vpop.f32.mrb[0].mxu0
        %v1493 = vadd.f32 0.0, %v1492
        %v1494 = vpop.f32.mrb[0].mxu0
        %v1495 = vpop.f32.mrb[0].mxu0
        %v1496 = vadd.f32 0.0, %v1495
        %v1497 = vpop.f32.mrb[0].mxu0
        %1498 = vdwg.mxu0
        %v1500 = vsel %vm1318, %v1409, 0
        %1502 = vmatprep.subr.bf16.mxu0 0
        %1503 = vmatpush1.bf16.msra.mxu0 %v1091
        %1504 = vmatprep.subr.bf16.mxu0 0
        %1505 = vmatpush1.bf16.msra.mxu0 0
        %1506 = vmatprep.subr.bf16.mxu0 0
        %1507 = vmatpush1.bf16.msra.mxu0 0
        %1508 = vmatprep.subr.bf16.mxu0 0
        %1509 = vmatpush1.bf16.msra.mxu0 0
        %1510 = vmatprep.subr.bf16.mxu0 0
        %1511 = vmatpush1.bf16.msra.mxu0 0
        %1512 = vmatprep.subr.bf16.mxu0 0
        %1513 = vmatpush1.bf16.msra.mxu0 0
        %1514 = vmatprep.subr.bf16.mxu0 0
        %1515 = vmatpush1.bf16.msra.mxu0 0
        %1516 = vmatprep.subr.bf16.mxu0 0
        %1517 = vmatpush1.bf16.msra.mxu0 0
        %1518 = vmatprep.subr.bf16.mxu0 0
        %1519 = vmatpush1.bf16.msra.mxu0 0
        %1520 = vmatprep.subr.bf16.mxu0 0
        %1521 = vmatpush1.bf16.msra.mxu0 0
        %1522 = vmatprep.subr.bf16.mxu0 0
        %1523 = vmatpush1.bf16.msra.mxu0 0
        %1524 = vmatprep.subr.bf16.mxu0 0
        %1525 = vmatpush1.bf16.msra.mxu0 0
        %1526 = vmatprep.subr.bf16.mxu0 0
        %1527 = vmatpush1.bf16.msra.mxu0 0
        %1528 = vmatprep.subr.bf16.mxu0 0
        %1529 = vmatpush1.bf16.msra.mxu0 0
        %1530 = vmatprep.subr.bf16.mxu0 0
        %1531 = vmatpush1.bf16.msra.mxu0 0
        %1532 = vmatprep.subr.bf16.mxu0 0
        %1533 = vmatpush1.bf16.msra.mxu0 0
        %1534 = vmatprep.mubr.bf16.mxu0 0
        %1535 = vmatmul.mubr.bf16.gmra.mrb[0].mxu0 %v1500
        %v1536 = vpop.f32.mrb[0].mxu0
        %v1537 = vadd.f32 0.0, %v1536
        %v1538 = vpop.f32.mrb[0].mxu0
        %v1539 = vpop.f32.mrb[0].mxu0
        %v1540 = vadd.f32 0.0, %v1539
        %v1541 = vpop.f32.mrb[0].mxu0
        %1542 = vdwg.mxu0
        %v1544 = vsel %vm1318, %v1410, 0
        %1546 = vmatprep.subr.bf16.mxu0 0
        %1547 = vmatpush1.bf16.msra.mxu0 %v1092
        %1548 = vmatprep.subr.bf16.mxu0 0
        %1549 = vmatpush1.bf16.msra.mxu0 0
        %1550 = vmatprep.subr.bf16.mxu0 0
        %1551 = vmatpush1.bf16.msra.mxu0 0
        %1552 = vmatprep.subr.bf16.mxu0 0
        %1553 = vmatpush1.bf16.msra.mxu0 0
        %1554 = vmatprep.subr.bf16.mxu0 0
        %1555 = vmatpush1.bf16.msra.mxu0 0
        %1556 = vmatprep.subr.bf16.mxu0 0
        %1557 = vmatpush1.bf16.msra.mxu0 0
        %1558 = vmatprep.subr.bf16.mxu0 0
        %1559 = vmatpush1.bf16.msra.mxu0 0
        %1560 = vmatprep.subr.bf16.mxu0 0
        %1561 = vmatpush1.bf16.msra.mxu0 0
        %1562 = vmatprep.subr.bf16.mxu0 0
        %1563 = vmatpush1.bf16.msra.mxu0 0
        %1564 = vmatprep.subr.bf16.mxu0 0
        %1565 = vmatpush1.bf16.msra.mxu0 0
        %1566 = vmatprep.subr.bf16.mxu0 0
        %1567 = vmatpush1.bf16.msra.mxu0 0
        %1568 = vmatprep.subr.bf16.mxu0 0
        %1569 = vmatpush1.bf16.msra.mxu0 0
        %1570 = vmatprep.subr.bf16.mxu0 0
        %1571 = vmatpush1.bf16.msra.mxu0 0
        %1572 = vmatprep.subr.bf16.mxu0 0
        %1573 = vmatpush1.bf16.msra.mxu0 0
        %1574 = vmatprep.subr.bf16.mxu0 0
        %1575 = vmatpush1.bf16.msra.mxu0 0
        %1576 = vmatprep.subr.bf16.mxu0 0
        %1577 = vmatpush1.bf16.msra.mxu0 0
        %1578 = vmatprep.mubr.bf16.mxu0 0
        %1579 = vmatmul.mubr.bf16.gmra.mrb[0].mxu0 %v1544
        %v1580 = vpop.f32.mrb[0].mxu0
        %v1581 = vadd.f32 0.0, %v1580
        %v1582 = vpop.f32.mrb[0].mxu0
        %v1583 = vpop.f32.mrb[0].mxu0
        %v1584 = vadd.f32 0.0, %v1583
        %v1585 = vpop.f32.mrb[0].mxu0
        %1586 = vdwg.mxu0
        %v1587 = vpack.c.bf16 %v1452, %v1449
        %v1588 = vpack.c.bf16 %v1496, %v1493
        %v1589 = vpack.c.bf16 %v1540, %v1537
        %v1590 = vpack.c.bf16 %v1584, %v1581
        %v1591 = vld [vmem:[%s9] sm:$0xf]
        %v1592 = vld [vmem:[%s9 + $0x4] sm:$0xf]
        %v1593 = vld [vmem:[%s9 + $0x8] sm:$0xf]
        %v1594 = vld [vmem:[%s9 + $0xc] sm:$0xf]
        %s1595 = scalar_lea.vmem %s3, 64
        %v1596 = vld [vmem:[%s1595] sm:$0xf]
        %v1597 = vld [vmem:[%s1595 + $0x4] sm:$0xf]
        %v1598 = vld [vmem:[%s1595 + $0x8] sm:$0xf]
        %v1599 = vld [vmem:[%s1595 + $0xc] sm:$0xf]
        %v1600 = vld [vmem:[%s1595 + $0x10] sm:$0xf]
        %v1601 = vld [vmem:[%s1595 + $0x14] sm:$0xf]
        %v1602 = vld [vmem:[%s1595 + $0x18] sm:$0xf]
        %v1603 = vld [vmem:[%s1595 + $0x1c] sm:$0xf]
        %v1604 = vld [vmem:[%s1595 + $0x20] sm:$0xf]
        %v1605 = vld [vmem:[%s1595 + $0x24] sm:$0xf]
        %v1606 = vld [vmem:[%s1595 + $0x28] sm:$0xf]
        %v1607 = vld [vmem:[%s1595 + $0x2c] sm:$0xf]
        %v1608 = vld [vmem:[%s1595 + $0x30] sm:$0xf]
        %v1609 = vld [vmem:[%s1595 + $0x34] sm:$0xf]
        %v1610 = vld [vmem:[%s1595 + $0x38] sm:$0xf]
        %v1611 = vld [vmem:[%s1595 + $0x3c] sm:$0xf]
        %s1612 = scalar_lea.vmem %s4, 1
        %v1613 = vld [vmem:[%s1612] sm:$0x1]
        %v1615 = vlaneseq
        %v1616 = vshrl.u32 %v1615, 7
        %v1617 = vsub.s32 0, %v1616
        %v1618 = vrot.slane %v1613, %v1617
        %v1636 = vunpack.c.l.b16 %v1596
        %v1637 = vunpack.c.l.b16 %v1597
        %v1638 = vunpack.c.l.b16 %v1598
        %v1639 = vunpack.c.l.b16 %v1599
        %v1640 = vunpack.c.l.b16 %v1600
        %v1641 = vunpack.c.l.b16 %v1601
        %v1642 = vunpack.c.l.b16 %v1602
        %v1643 = vunpack.c.l.b16 %v1603
        %v1644 = vunpack.c.l.b16 %v1604
        %v1645 = vunpack.c.l.b16 %v1605
        %v1646 = vunpack.c.l.b16 %v1606
        %v1647 = vunpack.c.l.b16 %v1607
        %v1648 = vunpack.c.l.b16 %v1608
        %v1649 = vunpack.c.l.b16 %v1609
        %v1650 = vunpack.c.l.b16 %v1610
        %v1651 = vunpack.c.l.b16 %v1611
        %v1652 = vpack.c.b16 %v1637, %v1636
        %v1653 = vpack.c.b16 %v1639, %v1638
        %v1654 = vpack.c.b16 %v1641, %v1640
        %v1655 = vpack.c.b16 %v1643, %v1642
        %v1656 = vpack.c.b16 %v1645, %v1644
        %v1657 = vpack.c.b16 %v1647, %v1646
        %v1658 = vpack.c.b16 %v1649, %v1648
        %v1659 = vpack.c.b16 %v1651, %v1650
        %1668 = vmatprep.subr.bf16.mxu0 0
        %1669 = vmatpush1.bf16.msra.mxu0 %v1652
        %1670 = vmatprep.subr.bf16.mxu0 0
        %1671 = vmatpush1.bf16.msra.mxu0 %v1653
        %1672 = vmatprep.subr.bf16.mxu0 0
        %1673 = vmatpush1.bf16.msra.mxu0 %v1654
        %1674 = vmatprep.subr.bf16.mxu0 0
        %1675 = vmatpush1.bf16.msra.mxu0 %v1655
        %1676 = vmatprep.subr.bf16.mxu0 0
        %1677 = vmatpush1.bf16.msra.mxu0 %v1656
        %1678 = vmatprep.subr.bf16.mxu0 0
        %1679 = vmatpush1.bf16.msra.mxu0 %v1657
        %1680 = vmatprep.subr.bf16.mxu0 0
        %1681 = vmatpush1.bf16.msra.mxu0 %v1658
        %1682 = vmatprep.subr.bf16.mxu0 0
        %1683 = vmatpush1.bf16.msra.mxu0 %v1659
        %1684 = vmatprep.subr.bf16.mxu0 0
        %1685 = vmatpush1.bf16.msra.mxu0 0
        %1686 = vmatprep.subr.bf16.mxu0 0
        %1687 = vmatpush1.bf16.msra.mxu0 0
        %1688 = vmatprep.subr.bf16.mxu0 0
        %1689 = vmatpush1.bf16.msra.mxu0 0
        %1690 = vmatprep.subr.bf16.mxu0 0
        %1691 = vmatpush1.bf16.msra.mxu0 0
        %1692 = vmatprep.subr.bf16.mxu0 0
        %1693 = vmatpush1.bf16.msra.mxu0 0
        %1694 = vmatprep.subr.bf16.mxu0 0
        %1695 = vmatpush1.bf16.msra.mxu0 0
        %1696 = vmatprep.subr.bf16.mxu0 0
        %1697 = vmatpush1.bf16.msra.mxu0 0
        %1698 = vmatprep.subr.bf16.mxu0 0
        %1699 = vmatpush1.bf16.msra.mxu0 0
        %1700 = vmatprep.mubr.bf16.mxu0 0
        %1701 = vmatmul.mubr.bf16.gmra.mrb[0].mxu0 %v657
        %v1702 = vpop.f32.mrb[0].mxu0
        %v1703 = vadd.f32 %v1618, %v1702
        %v1704 = vpop.f32.mrb[0].mxu0
        %v1705 = vpop.f32.mrb[0].mxu0
        %v1706 = vadd.f32 %v1618, %v1705
        %v1707 = vpop.f32.mrb[0].mxu0
        %1708 = vmatprep.mubr.bf16.mxu0 0
        %1709 = vmatmul.mubr.bf16.gmra.mrb[0].mxu0 %v658
        %v1710 = vpop.f32.mrb[0].mxu0
        %v1711 = vadd.f32 %v1618, %v1710
        %v1712 = vpop.f32.mrb[0].mxu0
        %v1713 = vpop.f32.mrb[0].mxu0
        %v1714 = vadd.f32 %v1618, %v1713
        %v1715 = vpop.f32.mrb[0].mxu0
        %1716 = vmatprep.mubr.bf16.mxu0 0
        %1717 = vmatmul.mubr.bf16.gmra.mrb[0].mxu0 %v659
        %v1718 = vpop.f32.mrb[0].mxu0
        %v1719 = vadd.f32 %v1618, %v1718
        %v1720 = vpop.f32.mrb[0].mxu0
        %v1721 = vpop.f32.mrb[0].mxu0
        %v1722 = vadd.f32 %v1618, %v1721
        %v1723 = vpop.f32.mrb[0].mxu0
        %1724 = vmatprep.mubr.bf16.mxu0 0
        %1725 = vmatmul.mubr.bf16.gmra.mrb[0].mxu0 %v660
        %v1726 = vpop.f32.mrb[0].mxu0
        %v1727 = vadd.f32 %v1618, %v1726
        %v1728 = vpop.f32.mrb[0].mxu0
        %v1729 = vpop.f32.mrb[0].mxu0
        %v1730 = vadd.f32 %v1618, %v1729
        %v1731 = vpop.f32.mrb[0].mxu0
        %1732 = vdwg.mxu0
        %v1733 = vmul.f32 %v1703, 0.17677669
        %v1734 = vmul.f32 %v1706, 0.17677669
        %v1735 = vmul.f32 %v1711, 0.17677669
        %v1736 = vmul.f32 %v1714, 0.17677669
        %v1737 = vmul.f32 %v1719, 0.17677669
        %v1738 = vmul.f32 %v1722, 0.17677669
        %v1739 = vmul.f32 %v1727, 0.17677669
        %v1740 = vmul.f32 %v1730, 0.17677669
        %s1741 = scalar_lea.vmem %s5, 64
        %v1742 = vld [vmem:[%s1741] sm:$0xf]
        %v1743 = vld [vmem:[%s1741 + $0x4] sm:$0xf]
        %v1744 = vld [vmem:[%s1741 + $0x8] sm:$0xf]
        %v1745 = vld [vmem:[%s1741 + $0xc] sm:$0xf]
        %v1746 = vld [vmem:[%s1741 + $0x10] sm:$0xf]
        %v1747 = vld [vmem:[%s1741 + $0x14] sm:$0xf]
        %v1748 = vld [vmem:[%s1741 + $0x18] sm:$0xf]
        %v1749 = vld [vmem:[%s1741 + $0x1c] sm:$0xf]
        %v1750 = vld [vmem:[%s1741 + $0x20] sm:$0xf]
        %v1751 = vld [vmem:[%s1741 + $0x24] sm:$0xf]
        %v1752 = vld [vmem:[%s1741 + $0x28] sm:$0xf]
        %v1753 = vld [vmem:[%s1741 + $0x2c] sm:$0xf]
        %v1754 = vld [vmem:[%s1741 + $0x30] sm:$0xf]
        %v1755 = vld [vmem:[%s1741 + $0x34] sm:$0xf]
        %v1756 = vld [vmem:[%s1741 + $0x38] sm:$0xf]
        %v1757 = vld [vmem:[%s1741 + $0x3c] sm:$0xf]
        %s1758 = scalar_lea.vmem %s6, 1
        %v1759 = vld [vmem:[%s1758] sm:$0x1]
        %v1761 = vlaneseq
        %v1762 = vshrl.u32 %v1761, 7
        %v1763 = vsub.s32 0, %v1762
        %v1764 = vrot.slane %v1759, %v1763
        %v1782 = vunpack.c.l.b16 %v1742
        %v1783 = vunpack.c.l.b16 %v1743
        %v1784 = vunpack.c.l.b16 %v1744
        %v1785 = vunpack.c.l.b16 %v1745
        %v1786 = vunpack.c.l.b16 %v1746
        %v1787 = vunpack.c.l.b16 %v1747
        %v1788 = vunpack.c.l.b16 %v1748
        %v1789 = vunpack.c.l.b16 %v1749
        %v1790 = vunpack.c.l.b16 %v1750
        %v1791 = vunpack.c.l.b16 %v1751
        %v1792 = vunpack.c.l.b16 %v1752
        %v1793 = vunpack.c.l.b16 %v1753
        %v1794 = vunpack.c.l.b16 %v1754
        %v1795 = vunpack.c.l.b16 %v1755
        %v1796 = vunpack.c.l.b16 %v1756
        %v1797 = vunpack.c.l.b16 %v1757
        %v1798 = vpack.c.b16 %v1783, %v1782
        %v1799 = vpack.c.b16 %v1785, %v1784
        %v1800 = vpack.c.b16 %v1787, %v1786
        %v1801 = vpack.c.b16 %v1789, %v1788
        %v1802 = vpack.c.b16 %v1791, %v1790
        %v1803 = vpack.c.b16 %v1793, %v1792
        %v1804 = vpack.c.b16 %v1795, %v1794
        %v1805 = vpack.c.b16 %v1797, %v1796
        %1814 = vmatprep.subr.bf16.mxu0 0
        %1815 = vmatpush1.bf16.msra.mxu0 %v1798
        %1816 = vmatprep.subr.bf16.mxu0 0
        %1817 = vmatpush1.bf16.msra.mxu0 %v1799
        %1818 = vmatprep.subr.bf16.mxu0 0
        %1819 = vmatpush1.bf16.msra.mxu0 %v1800
        %1820 = vmatprep.subr.bf16.mxu0 0
        %1821 = vmatpush1.bf16.msra.mxu0 %v1801
        %1822 = vmatprep.subr.bf16.mxu0 0
        %1823 = vmatpush1.bf16.msra.mxu0 %v1802
        %1824 = vmatprep.subr.bf16.mxu0 0
        %1825 = vmatpush1.bf16.msra.mxu0 %v1803
        %1826 = vmatprep.subr.bf16.mxu0 0
        %1827 = vmatpush1.bf16.msra.mxu0 %v1804
        %1828 = vmatprep.subr.bf16.mxu0 0
        %1829 = vmatpush1.bf16.msra.mxu0 %v1805
        %1830 = vmatprep.subr.bf16.mxu0 0
        %1831 = vmatpush1.bf16.msra.mxu0 0
        %1832 = vmatprep.subr.bf16.mxu0 0
        %1833 = vmatpush1.bf16.msra.mxu0 0
        %1834 = vmatprep.subr.bf16.mxu0 0
        %1835 = vmatpush1.bf16.msra.mxu0 0
        %1836 = vmatprep.subr.bf16.mxu0 0
        %1837 = vmatpush1.bf16.msra.mxu0 0
        %1838 = vmatprep.subr.bf16.mxu0 0
        %1839 = vmatpush1.bf16.msra.mxu0 0
        %1840 = vmatprep.subr.bf16.mxu0 0
        %1841 = vmatpush1.bf16.msra.mxu0 0
        %1842 = vmatprep.subr.bf16.mxu0 0
        %1843 = vmatpush1.bf16.msra.mxu0 0
        %1844 = vmatprep.subr.bf16.mxu0 0
        %1845 = vmatpush1.bf16.msra.mxu0 0
        %1846 = vmatprep.mubr.bf16.mxu0 0
        %1847 = vmatmul.mubr.bf16.gmra.mrb[0].mxu0 %v657
        %v1848 = vpop.f32.mrb[0].mxu0
        %v1849 = vadd.f32 %v1764, %v1848
        %v1850 = vpop.f32.mrb[0].mxu0
        %v1851 = vpop.f32.mrb[0].mxu0
        %v1852 = vadd.f32 %v1764, %v1851
        %v1853 = vpop.f32.mrb[0].mxu0
        %1854 = vmatprep.mubr.bf16.mxu0 0
        %1855 = vmatmul.mubr.bf16.gmra.mrb[0].mxu0 %v658
        %v1856 = vpop.f32.mrb[0].mxu0
        %v1857 = vadd.f32 %v1764, %v1856
        %v1858 = vpop.f32.mrb[0].mxu0
        %v1859 = vpop.f32.mrb[0].mxu0
        %v1860 = vadd.f32 %v1764, %v1859
        %v1861 = vpop.f32.mrb[0].mxu0
        %1862 = vmatprep.mubr.bf16.mxu0 0
        %1863 = vmatmul.mubr.bf16.gmra.mrb[0].mxu0 %v659
        %v1864 = vpop.f32.mrb[0].mxu0
        %v1865 = vadd.f32 %v1764, %v1864
        %v1866 = vpop.f32.mrb[0].mxu0
        %v1867 = vpop.f32.mrb[0].mxu0
        %v1868 = vadd.f32 %v1764, %v1867
        %v1869 = vpop.f32.mrb[0].mxu0
        %1870 = vmatprep.mubr.bf16.mxu0 0
        %1871 = vmatmul.mubr.bf16.gmra.mrb[0].mxu0 %v660
        %v1872 = vpop.f32.mrb[0].mxu0
        %v1873 = vadd.f32 %v1764, %v1872
        %v1874 = vpop.f32.mrb[0].mxu0
        %v1875 = vpop.f32.mrb[0].mxu0
        %v1876 = vadd.f32 %v1764, %v1875
        %v1877 = vpop.f32.mrb[0].mxu0
        %1878 = vdwg.mxu0
        %s1879 = scalar_lea.vmem %s7, 64
        %v1880 = vld [vmem:[%s1879] sm:$0xf]
        %v1881 = vld [vmem:[%s1879 + $0x4] sm:$0xf]
        %v1882 = vld [vmem:[%s1879 + $0x8] sm:$0xf]
        %v1883 = vld [vmem:[%s1879 + $0xc] sm:$0xf]
        %v1884 = vld [vmem:[%s1879 + $0x10] sm:$0xf]
        %v1885 = vld [vmem:[%s1879 + $0x14] sm:$0xf]
        %v1886 = vld [vmem:[%s1879 + $0x18] sm:$0xf]
        %v1887 = vld [vmem:[%s1879 + $0x1c] sm:$0xf]
        %v1888 = vld [vmem:[%s1879 + $0x20] sm:$0xf]
        %v1889 = vld [vmem:[%s1879 + $0x24] sm:$0xf]
        %v1890 = vld [vmem:[%s1879 + $0x28] sm:$0xf]
        %v1891 = vld [vmem:[%s1879 + $0x2c] sm:$0xf]
        %v1892 = vld [vmem:[%s1879 + $0x30] sm:$0xf]
        %v1893 = vld [vmem:[%s1879 + $0x34] sm:$0xf]
        %v1894 = vld [vmem:[%s1879 + $0x38] sm:$0xf]
        %v1895 = vld [vmem:[%s1879 + $0x3c] sm:$0xf]
        %s1896 = scalar_lea.vmem %s8, 1
        %v1897 = vld [vmem:[%s1896] sm:$0x1]
        %v1899 = vlaneseq
        %v1900 = vshrl.u32 %v1899, 7
        %v1901 = vsub.s32 0, %v1900
        %v1902 = vrot.slane %v1897, %v1901
        %v1920 = vunpack.c.l.b16 %v1880
        %v1921 = vunpack.c.l.b16 %v1881
        %v1922 = vunpack.c.l.b16 %v1882
        %v1923 = vunpack.c.l.b16 %v1883
        %v1924 = vunpack.c.l.b16 %v1884
        %v1925 = vunpack.c.l.b16 %v1885
        %v1926 = vunpack.c.l.b16 %v1886
        %v1927 = vunpack.c.l.b16 %v1887
        %v1928 = vunpack.c.l.b16 %v1888
        %v1929 = vunpack.c.l.b16 %v1889
        %v1930 = vunpack.c.l.b16 %v1890
        %v1931 = vunpack.c.l.b16 %v1891
        %v1932 = vunpack.c.l.b16 %v1892
        %v1933 = vunpack.c.l.b16 %v1893
        %v1934 = vunpack.c.l.b16 %v1894
        %v1935 = vunpack.c.l.b16 %v1895
        %v1936 = vpack.c.b16 %v1921, %v1920
        %v1937 = vpack.c.b16 %v1923, %v1922
        %v1938 = vpack.c.b16 %v1925, %v1924
        %v1939 = vpack.c.b16 %v1927, %v1926
        %v1940 = vpack.c.b16 %v1929, %v1928
        %v1941 = vpack.c.b16 %v1931, %v1930
        %v1942 = vpack.c.b16 %v1933, %v1932
        %v1943 = vpack.c.b16 %v1935, %v1934
        %1952 = vmatprep.subr.bf16.mxu0 0
        %1953 = vmatpush1.bf16.msra.mxu0 %v1936
        %1954 = vmatprep.subr.bf16.mxu0 0
        %1955 = vmatpush1.bf16.msra.mxu0 %v1937
        %1956 = vmatprep.subr.bf16.mxu0 0
        %1957 = vmatpush1.bf16.msra.mxu0 %v1938
        %1958 = vmatprep.subr.bf16.mxu0 0
        %1959 = vmatpush1.bf16.msra.mxu0 %v1939
        %1960 = vmatprep.subr.bf16.mxu0 0
        %1961 = vmatpush1.bf16.msra.mxu0 %v1940
        %1962 = vmatprep.subr.bf16.mxu0 0
        %1963 = vmatpush1.bf16.msra.mxu0 %v1941
        %1964 = vmatprep.subr.bf16.mxu0 0
        %1965 = vmatpush1.bf16.msra.mxu0 %v1942
        %1966 = vmatprep.subr.bf16.mxu0 0
        %1967 = vmatpush1.bf16.msra.mxu0 %v1943
        %1968 = vmatprep.subr.bf16.mxu0 0
        %1969 = vmatpush1.bf16.msra.mxu0 0
        %1970 = vmatprep.subr.bf16.mxu0 0
        %1971 = vmatpush1.bf16.msra.mxu0 0
        %1972 = vmatprep.subr.bf16.mxu0 0
        %1973 = vmatpush1.bf16.msra.mxu0 0
        %1974 = vmatprep.subr.bf16.mxu0 0
        %1975 = vmatpush1.bf16.msra.mxu0 0
        %1976 = vmatprep.subr.bf16.mxu0 0
        %1977 = vmatpush1.bf16.msra.mxu0 0
        %1978 = vmatprep.subr.bf16.mxu0 0
        %1979 = vmatpush1.bf16.msra.mxu0 0
        %1980 = vmatprep.subr.bf16.mxu0 0
        %1981 = vmatpush1.bf16.msra.mxu0 0
        %1982 = vmatprep.subr.bf16.mxu0 0
        %1983 = vmatpush1.bf16.msra.mxu0 0
        %1984 = vmatprep.mubr.bf16.mxu0 0
        %1985 = vmatmul.mubr.bf16.gmra.mrb[0].mxu0 %v657
        %v1986 = vpop.f32.mrb[0].mxu0
        %v1987 = vadd.f32 %v1902, %v1986
        %v1988 = vpop.f32.mrb[0].mxu0
        %v1989 = vpop.f32.mrb[0].mxu0
        %v1990 = vadd.f32 %v1902, %v1989
        %v1991 = vpop.f32.mrb[0].mxu0
        %1992 = vmatprep.mubr.bf16.mxu0 0
        %1993 = vmatmul.mubr.bf16.gmra.mrb[0].mxu0 %v658
        %v1994 = vpop.f32.mrb[0].mxu0
        %v1995 = vadd.f32 %v1902, %v1994
        %v1996 = vpop.f32.mrb[0].mxu0
        %v1997 = vpop.f32.mrb[0].mxu0
        %v1998 = vadd.f32 %v1902, %v1997
        %v1999 = vpop.f32.mrb[0].mxu0
        %2000 = vmatprep.mubr.bf16.mxu0 0
        %2001 = vmatmul.mubr.bf16.gmra.mrb[0].mxu0 %v659
        %v2002 = vpop.f32.mrb[0].mxu0
        %v2003 = vadd.f32 %v1902, %v2002
        %v2004 = vpop.f32.mrb[0].mxu0
        %v2005 = vpop.f32.mrb[0].mxu0
        %v2006 = vadd.f32 %v1902, %v2005
        %v2007 = vpop.f32.mrb[0].mxu0
        %2008 = vmatprep.mubr.bf16.mxu0 0
        %2009 = vmatmul.mubr.bf16.gmra.mrb[0].mxu0 %v660
        %v2010 = vpop.f32.mrb[0].mxu0
        %v2011 = vadd.f32 %v1902, %v2010
        %v2012 = vpop.f32.mrb[0].mxu0
        %v2013 = vpop.f32.mrb[0].mxu0
        %v2014 = vadd.f32 %v1902, %v2013
        %v2015 = vpop.f32.mrb[0].mxu0
        %2016 = vdwg.mxu0
        %v2017 = vpack.c.bf16 %v1734, %v1733
        %v2018 = vpack.c.bf16 %v1736, %v1735
        %v2019 = vpack.c.bf16 %v1738, %v1737
        %v2020 = vpack.c.bf16 %v1740, %v1739
        %v2021 = vpack.c.bf16 %v1852, %v1849
        %v2022 = vpack.c.bf16 %v1860, %v1857
        %v2023 = vpack.c.bf16 %v1868, %v1865
        %v2024 = vpack.c.bf16 %v1876, %v1873
        %v2025 = vpack.c.bf16 %v1990, %v1987
        %v2026 = vpack.c.bf16 %v1998, %v1995
        %v2027 = vpack.c.bf16 %v2006, %v2003
        %v2028 = vpack.c.bf16 %v2014, %v2011
        %v2030 = vsel %vm1093, %v2017, 0
        %v2033 = vsel %vm1093, %v2021, 0
        %2035 = vmatprep.subr.bf16.mxu0 0
        %2036 = vmatpush1.bf16.xpose.msra.mxu0 %v2033
        %2037 = vmatprep.subr.bf16.mxu0 0
        %2038 = vmatpush1.bf16.xpose.msra.mxu0 0
        %2039 = vmatprep.subr.bf16.mxu0 0
        %2040 = vmatpush1.bf16.xpose.msra.mxu0 0
        %2041 = vmatprep.subr.bf16.mxu0 0
        %2042 = vmatpush1.bf16.xpose.msra.mxu0 0
        %2043 = vmatprep.subr.bf16.mxu0 0
        %2044 = vmatpush1.bf16.xpose.msra.mxu0 0
        %2045 = vmatprep.subr.bf16.mxu0 0
        %2046 = vmatpush1.bf16.xpose.msra.mxu0 0
        %2047 = vmatprep.subr.bf16.mxu0 0
        %2048 = vmatpush1.bf16.xpose.msra.mxu0 0
        %2049 = vmatprep.subr.bf16.mxu0 0
        %2050 = vmatpush1.bf16.xpose.msra.mxu0 0
        %2051 = vmatprep.subr.bf16.mxu0 0
        %2052 = vmatpush1.bf16.xpose.msra.mxu0 0
        %2053 = vmatprep.subr.bf16.mxu0 0
        %2054 = vmatpush1.bf16.xpose.msra.mxu0 0
        %2055 = vmatprep.subr.bf16.mxu0 0
        %2056 = vmatpush1.bf16.xpose.msra.mxu0 0
        %2057 = vmatprep.subr.bf16.mxu0 0
        %2058 = vmatpush1.bf16.xpose.msra.mxu0 0
        %2059 = vmatprep.subr.bf16.mxu0 0
        %2060 = vmatpush1.bf16.xpose.msra.mxu0 0
        %2061 = vmatprep.subr.bf16.mxu0 0
        %2062 = vmatpush1.bf16.xpose.msra.mxu0 0
        %2063 = vmatprep.subr.bf16.mxu0 0
        %2064 = vmatpush1.bf16.xpose.msra.mxu0 0
        %2065 = vmatprep.subr.bf16.mxu0 0
        %2066 = vmatpush1.bf16.xpose.msra.mxu0 0
        %2067 = vmatprep.mubr.bf16.mxu0 0
        %2068 = vmatmul.mubr.bf16.gmra.mrb[0].mxu0 %v2030
        %v2069 = vpop.f32.mrb[0].mxu0
        %v2070 = vadd.f32 0.0, %v2069
        %v2071 = vpop.f32.mrb[0].mxu0
        %v2072 = vpop.f32.mrb[0].mxu0
        %v2073 = vadd.f32 0.0, %v2072
        %v2074 = vpop.f32.mrb[0].mxu0
        %2075 = vdwg.mxu0
        %v2077 = vsel %vm1093, %v2018, 0
        %v2080 = vsel %vm1093, %v2022, 0
        %2082 = vmatprep.subr.bf16.mxu0 0
        %2083 = vmatpush1.bf16.xpose.msra.mxu0 %v2080
        %2084 = vmatprep.subr.bf16.mxu0 0
        %2085 = vmatpush1.bf16.xpose.msra.mxu0 0
        %2086 = vmatprep.subr.bf16.mxu0 0
        %2087 = vmatpush1.bf16.xpose.msra.mxu0 0
        %2088 = vmatprep.subr.bf16.mxu0 0
        %2089 = vmatpush1.bf16.xpose.msra.mxu0 0
        %2090 = vmatprep.subr.bf16.mxu0 0
        %2091 = vmatpush1.bf16.xpose.msra.mxu0 0
        %2092 = vmatprep.subr.bf16.mxu0 0
        %2093 = vmatpush1.bf16.xpose.msra.mxu0 0
        %2094 = vmatprep.subr.bf16.mxu0 0
        %2095 = vmatpush1.bf16.xpose.msra.mxu0 0
        %2096 = vmatprep.subr.bf16.mxu0 0
        %2097 = vmatpush1.bf16.xpose.msra.mxu0 0
        %2098 = vmatprep.subr.bf16.mxu0 0
        %2099 = vmatpush1.bf16.xpose.msra.mxu0 0
        %2100 = vmatprep.subr.bf16.mxu0 0
        %2101 = vmatpush1.bf16.xpose.msra.mxu0 0
        %2102 = vmatprep.subr.bf16.mxu0 0
        %2103 = vmatpush1.bf16.xpose.msra.mxu0 0
        %2104 = vmatprep.subr.bf16.mxu0 0
        %2105 = vmatpush1.bf16.xpose.msra.mxu0 0
        %2106 = vmatprep.subr.bf16.mxu0 0
        %2107 = vmatpush1.bf16.xpose.msra.mxu0 0
        %2108 = vmatprep.subr.bf16.mxu0 0
        %2109 = vmatpush1.bf16.xpose.msra.mxu0 0
        %2110 = vmatprep.subr.bf16.mxu0 0
        %2111 = vmatpush1.bf16.xpose.msra.mxu0 0
        %2112 = vmatprep.subr.bf16.mxu0 0
        %2113 = vmatpush1.bf16.xpose.msra.mxu0 0
        %2114 = vmatprep.mubr.bf16.mxu0 0
        %2115 = vmatmul.mubr.bf16.gmra.mrb[0].mxu0 %v2077
        %v2116 = vpop.f32.mrb[0].mxu0
        %v2117 = vadd.f32 0.0, %v2116
        %v2118 = vpop.f32.mrb[0].mxu0
        %v2119 = vpop.f32.mrb[0].mxu0
        %v2120 = vadd.f32 0.0, %v2119
        %v2121 = vpop.f32.mrb[0].mxu0
        %2122 = vdwg.mxu0
        %v2124 = vsel %vm1093, %v2019, 0
        %v2127 = vsel %vm1093, %v2023, 0
        %2129 = vmatprep.subr.bf16.mxu0 0
        %2130 = vmatpush1.bf16.xpose.msra.mxu0 %v2127
        %2131 = vmatprep.subr.bf16.mxu0 0
        %2132 = vmatpush1.bf16.xpose.msra.mxu0 0
        %2133 = vmatprep.subr.bf16.mxu0 0
        %2134 = vmatpush1.bf16.xpose.msra.mxu0 0
        %2135 = vmatprep.subr.bf16.mxu0 0
        %2136 = vmatpush1.bf16.xpose.msra.mxu0 0
        %2137 = vmatprep.subr.bf16.mxu0 0
        %2138 = vmatpush1.bf16.xpose.msra.mxu0 0
        %2139 = vmatprep.subr.bf16.mxu0 0
        %2140 = vmatpush1.bf16.xpose.msra.mxu0 0
        %2141 = vmatprep.subr.bf16.mxu0 0
        %2142 = vmatpush1.bf16.xpose.msra.mxu0 0
        %2143 = vmatprep.subr.bf16.mxu0 0
        %2144 = vmatpush1.bf16.xpose.msra.mxu0 0
        %2145 = vmatprep.subr.bf16.mxu0 0
        %2146 = vmatpush1.bf16.xpose.msra.mxu0 0
        %2147 = vmatprep.subr.bf16.mxu0 0
        %2148 = vmatpush1.bf16.xpose.msra.mxu0 0
        %2149 = vmatprep.subr.bf16.mxu0 0
        %2150 = vmatpush1.bf16.xpose.msra.mxu0 0
        %2151 = vmatprep.subr.bf16.mxu0 0
        %2152 = vmatpush1.bf16.xpose.msra.mxu0 0
        %2153 = vmatprep.subr.bf16.mxu0 0
        %2154 = vmatpush1.bf16.xpose.msra.mxu0 0
        %2155 = vmatprep.subr.bf16.mxu0 0
        %2156 = vmatpush1.bf16.xpose.msra.mxu0 0
        %2157 = vmatprep.subr.bf16.mxu0 0
        %2158 = vmatpush1.bf16.xpose.msra.mxu0 0
        %2159 = vmatprep.subr.bf16.mxu0 0
        %2160 = vmatpush1.bf16.xpose.msra.mxu0 0
        %2161 = vmatprep.mubr.bf16.mxu0 0
        %2162 = vmatmul.mubr.bf16.gmra.mrb[0].mxu0 %v2124
        %v2163 = vpop.f32.mrb[0].mxu0
        %v2164 = vadd.f32 0.0, %v2163
        %v2165 = vpop.f32.mrb[0].mxu0
        %v2166 = vpop.f32.mrb[0].mxu0
        %v2167 = vadd.f32 0.0, %v2166
        %v2168 = vpop.f32.mrb[0].mxu0
        %2169 = vdwg.mxu0
        %v2171 = vsel %vm1093, %v2020, 0
        %v2174 = vsel %vm1093, %v2024, 0
        %2176 = vmatprep.subr.bf16.mxu0 0
        %2177 = vmatpush1.bf16.xpose.msra.mxu0 %v2174
        %2178 = vmatprep.subr.bf16.mxu0 0
        %2179 = vmatpush1.bf16.xpose.msra.mxu0 0
        %2180 = vmatprep.subr.bf16.mxu0 0
        %2181 = vmatpush1.bf16.xpose.msra.mxu0 0
        %2182 = vmatprep.subr.bf16.mxu0 0
        %2183 = vmatpush1.bf16.xpose.msra.mxu0 0
        %2184 = vmatprep.subr.bf16.mxu0 0
        %2185 = vmatpush1.bf16.xpose.msra.mxu0 0
        %2186 = vmatprep.subr.bf16.mxu0 0
        %2187 = vmatpush1.bf16.xpose.msra.mxu0 0
        %2188 = vmatprep.subr.bf16.mxu0 0
        %2189 = vmatpush1.bf16.xpose.msra.mxu0 0
        %2190 = vmatprep.subr.bf16.mxu0 0
        %2191 = vmatpush1.bf16.xpose.msra.mxu0 0
        %2192 = vmatprep.subr.bf16.mxu0 0
        %2193 = vmatpush1.bf16.xpose.msra.mxu0 0
        %2194 = vmatprep.subr.bf16.mxu0 0
        %2195 = vmatpush1.bf16.xpose.msra.mxu0 0
        %2196 = vmatprep.subr.bf16.mxu0 0
        %2197 = vmatpush1.bf16.xpose.msra.mxu0 0
        %2198 = vmatprep.subr.bf16.mxu0 0
        %2199 = vmatpush1.bf16.xpose.msra.mxu0 0
        %2200 = vmatprep.subr.bf16.mxu0 0
        %2201 = vmatpush1.bf16.xpose.msra.mxu0 0
        %2202 = vmatprep.subr.bf16.mxu0 0
        %2203 = vmatpush1.bf16.xpose.msra.mxu0 0
        %2204 = vmatprep.subr.bf16.mxu0 0
        %2205 = vmatpush1.bf16.xpose.msra.mxu0 0
        %2206 = vmatprep.subr.bf16.mxu0 0
        %2207 = vmatpush1.bf16.xpose.msra.mxu0 0
        %2208 = vmatprep.mubr.bf16.mxu0 0
        %2209 = vmatmul.mubr.bf16.gmra.mrb[0].mxu0 %v2171
        %v2210 = vpop.f32.mrb[0].mxu0
        %v2211 = vadd.f32 0.0, %v2210
        %v2212 = vpop.f32.mrb[0].mxu0
        %v2213 = vpop.f32.mrb[0].mxu0
        %v2214 = vadd.f32 0.0, %v2213
        %v2215 = vpop.f32.mrb[0].mxu0
        %2216 = vdwg.mxu0
        %v2217 = vsel %vm1306, -1e+20, %v2070
        %v2218 = vsel %vm1306, -1e+20, %v2073
        %v2219 = vsel %vm1307, -1e+20, %v2117
        %v2220 = vsel %vm1307, -1e+20, %v2120
        %v2221 = vsel %vm1308, -1e+20, %v2164
        %v2222 = vsel %vm1308, -1e+20, %v2167
        %v2223 = vsel %vm1309, -1e+20, %v2211
        %v2224 = vsel %vm1309, -1e+20, %v2214
        %v2225 = vsel %vm1318, %v2217, -inf
        %2226 = vmax.xlane.f32.xlu0 %v2225
        %v2227 = vpop.xlane.xlu0 %2226
        %v2228 = vsel %vm1318, %v2218, -inf
        %2229 = vmax.xlane.f32.xlu0 %v2228
        %v2230 = vpop.xlane.xlu0 %2229
        %v2231 = vsel %vm1318, %v2219, -inf
        %2232 = vmax.xlane.f32.xlu0 %v2231
        %v2233 = vpop.xlane.xlu0 %2232
        %v2234 = vsel %vm1318, %v2220, -inf
        %2235 = vmax.xlane.f32.xlu0 %v2234
        %v2236 = vpop.xlane.xlu0 %2235
        %v2237 = vsel %vm1318, %v2221, -inf
        %2238 = vmax.xlane.f32.xlu0 %v2237
        %v2239 = vpop.xlane.xlu0 %2238
        %v2240 = vsel %vm1318, %v2222, -inf
        %2241 = vmax.xlane.f32.xlu0 %v2240
        %v2242 = vpop.xlane.xlu0 %2241
        %v2243 = vsel %vm1318, %v2223, -inf
        %2244 = vmax.xlane.f32.xlu0 %v2243
        %v2245 = vpop.xlane.xlu0 %2244
        %v2246 = vsel %vm1318, %v2224, -inf
        %2247 = vmax.xlane.f32.xlu0 %v2246
        %v2248 = vpop.xlane.xlu0 %2247
        %v2249 = vsub.f32 %v2217, %v2227
        %v2250 = vsub.f32 %v2218, %v2230
        %v2251 = vsub.f32 %v2219, %v2233
        %v2252 = vsub.f32 %v2220, %v2236
        %v2253 = vsub.f32 %v2221, %v2239
        %v2254 = vsub.f32 %v2222, %v2242
        %v2255 = vsub.f32 %v2223, %v2245
        %v2256 = vsub.f32 %v2224, %v2248
        %v2257 = vmul.f32 %v2249, 1.442695
        %v2258 = vpow.pop %v2257
        %v2259 = vmul.f32 %v2250, 1.442695
        %v2260 = vpow.pop %v2259
        %v2261 = vmul.f32 %v2251, 1.442695
        %v2262 = vpow.pop %v2261
        %v2263 = vmul.f32 %v2252, 1.442695
        %v2264 = vpow.pop %v2263
        %v2265 = vmul.f32 %v2253, 1.442695
        %v2266 = vpow.pop %v2265
        %v2267 = vmul.f32 %v2254, 1.442695
        %v2268 = vpow.pop %v2267
        %v2269 = vmul.f32 %v2255, 1.442695
        %v2270 = vpow.pop %v2269
        %v2271 = vmul.f32 %v2256, 1.442695
        %v2272 = vpow.pop %v2271
        %v2273 = vsel %vm1318, %v2258, 0.0
        %2274 = vadd.xlane.f32.xlu0 %v2273
        %v2275 = vpop.xlane.xlu0 %2274
        %v2276 = vsel %vm1318, %v2260, 0.0
        %2277 = vadd.xlane.f32.xlu0 %v2276
        %v2278 = vpop.xlane.xlu0 %2277
        %v2279 = vsel %vm1318, %v2262, 0.0
        %2280 = vadd.xlane.f32.xlu0 %v2279
        %v2281 = vpop.xlane.xlu0 %2280
        %v2282 = vsel %vm1318, %v2264, 0.0
        %2283 = vadd.xlane.f32.xlu0 %v2282
        %v2284 = vpop.xlane.xlu0 %2283
        %v2285 = vsel %vm1318, %v2266, 0.0
        %2286 = vadd.xlane.f32.xlu0 %v2285
        %v2287 = vpop.xlane.xlu0 %2286
        %v2288 = vsel %vm1318, %v2268, 0.0
        %2289 = vadd.xlane.f32.xlu0 %v2288
        %v2290 = vpop.xlane.xlu0 %2289
        %v2291 = vsel %vm1318, %v2270, 0.0
        %2292 = vadd.xlane.f32.xlu0 %v2291
        %v2293 = vpop.xlane.xlu0 %2292
        %v2294 = vsel %vm1318, %v2272, 0.0
        %2295 = vadd.xlane.f32.xlu0 %v2294
        %v2296 = vpop.xlane.xlu0 %2295
        %v2297 = vrcp.pop %v2275
        %v2298 = vrcp.pop %v2278
        %v2299 = vrcp.pop %v2281
        %v2300 = vrcp.pop %v2284
        %v2301 = vrcp.pop %v2287
        %v2302 = vrcp.pop %v2290
        %v2303 = vrcp.pop %v2293
        %v2304 = vrcp.pop %v2296
        %v2305 = vmul.f32 %v2258, %v2297
        %v2306 = vmul.f32 %v2260, %v2298
        %v2307 = vmul.f32 %v2262, %v2299
        %v2308 = vmul.f32 %v2264, %v2300
        %v2309 = vmul.f32 %v2266, %v2301
        %v2310 = vmul.f32 %v2268, %v2302
        %v2311 = vmul.f32 %v2270, %v2303
        %v2312 = vmul.f32 %v2272, %v2304
        %v2313 = vpack.c.bf16 %v2306, %v2305
        %v2314 = vpack.c.bf16 %v2308, %v2307
        %v2315 = vpack.c.bf16 %v2310, %v2309
        %v2316 = vpack.c.bf16 %v2312, %v2311
        %v2318 = vsel %vm1318, %v2313, 0
        %2320 = vmatprep.subr.bf16.mxu0 0
        %2321 = vmatpush1.bf16.msra.mxu0 %v2025
        %2322 = vmatprep.subr.bf16.mxu0 0
        %2323 = vmatpush1.bf16.msra.mxu0 0
        %2324 = vmatprep.subr.bf16.mxu0 0
        %2325 = vmatpush1.bf16.msra.mxu0 0
        %2326 = vmatprep.subr.bf16.mxu0 0
        %2327 = vmatpush1.bf16.msra.mxu0 0
        %2328 = vmatprep.subr.bf16.mxu0 0
        %2329 = vmatpush1.bf16.msra.mxu0 0
        %2330 = vmatprep.subr.bf16.mxu0 0
        %2331 = vmatpush1.bf16.msra.mxu0 0
        %2332 = vmatprep.subr.bf16.mxu0 0
        %2333 = vmatpush1.bf16.msra.mxu0 0
        %2334 = vmatprep.subr.bf16.mxu0 0
        %2335 = vmatpush1.bf16.msra.mxu0 0
        %2336 = vmatprep.subr.bf16.mxu0 0
        %2337 = vmatpush1.bf16.msra.mxu0 0
        %2338 = vmatprep.subr.bf16.mxu0 0
        %2339 = vmatpush1.bf16.msra.mxu0 0
        %2340 = vmatprep.subr.bf16.mxu0 0
        %2341 = vmatpush1.bf16.msra.mxu0 0
        %2342 = vmatprep.subr.bf16.mxu0 0
        %2343 = vmatpush1.bf16.msra.mxu0 0
        %2344 = vmatprep.subr.bf16.mxu0 0
        %2345 = vmatpush1.bf16.msra.mxu0 0
        %2346 = vmatprep.subr.bf16.mxu0 0
        %2347 = vmatpush1.bf16.msra.mxu0 0
        %2348 = vmatprep.subr.bf16.mxu0 0
        %2349 = vmatpush1.bf16.msra.mxu0 0
        %2350 = vmatprep.subr.bf16.mxu0 0
        %2351 = vmatpush1.bf16.msra.mxu0 0
        %2352 = vmatprep.mubr.bf16.mxu0 0
        %2353 = vmatmul.mubr.bf16.gmra.mrb[0].mxu0 %v2318
        %v2354 = vpop.f32.mrb[0].mxu0
        %v2355 = vadd.f32 0.0, %v2354
        %v2356 = vpop.f32.mrb[0].mxu0
        %v2357 = vpop.f32.mrb[0].mxu0
        %v2358 = vadd.f32 0.0, %v2357
        %v2359 = vpop.f32.mrb[0].mxu0
        %2360 = vdwg.mxu0
        %v2362 = vsel %vm1318, %v2314, 0
        %2364 = vmatprep.subr.bf16.mxu0 0
        %2365 = vmatpush1.bf16.msra.mxu0 %v2026
        %2366 = vmatprep.subr.bf16.mxu0 0
        %2367 = vmatpush1.bf16.msra.mxu0 0
        %2368 = vmatprep.subr.bf16.mxu0 0
        %2369 = vmatpush1.bf16.msra.mxu0 0
        %2370 = vmatprep.subr.bf16.mxu0 0
        %2371 = vmatpush1.bf16.msra.mxu0 0
        %2372 = vmatprep.subr.bf16.mxu0 0
        %2373 = vmatpush1.bf16.msra.mxu0 0
        %2374 = vmatprep.subr.bf16.mxu0 0
        %2375 = vmatpush1.bf16.msra.mxu0 0
        %2376 = vmatprep.subr.bf16.mxu0 0
        %2377 = vmatpush1.bf16.msra.mxu0 0
        %2378 = vmatprep.subr.bf16.mxu0 0
        %2379 = vmatpush1.bf16.msra.mxu0 0
        %2380 = vmatprep.subr.bf16.mxu0 0
        %2381 = vmatpush1.bf16.msra.mxu0 0
        %2382 = vmatprep.subr.bf16.mxu0 0
        %2383 = vmatpush1.bf16.msra.mxu0 0
        %2384 = vmatprep.subr.bf16.mxu0 0
        %2385 = vmatpush1.bf16.msra.mxu0 0
        %2386 = vmatprep.subr.bf16.mxu0 0
        %2387 = vmatpush1.bf16.msra.mxu0 0
        %2388 = vmatprep.subr.bf16.mxu0 0
        %2389 = vmatpush1.bf16.msra.mxu0 0
        %2390 = vmatprep.subr.bf16.mxu0 0
        %2391 = vmatpush1.bf16.msra.mxu0 0
        %2392 = vmatprep.subr.bf16.mxu0 0
        %2393 = vmatpush1.bf16.msra.mxu0 0
        %2394 = vmatprep.subr.bf16.mxu0 0
        %2395 = vmatpush1.bf16.msra.mxu0 0
        %2396 = vmatprep.mubr.bf16.mxu0 0
        %2397 = vmatmul.mubr.bf16.gmra.mrb[0].mxu0 %v2362
        %v2398 = vpop.f32.mrb[0].mxu0
        %v2399 = vadd.f32 0.0, %v2398
        %v2400 = vpop.f32.mrb[0].mxu0
        %v2401 = vpop.f32.mrb[0].mxu0
        %v2402 = vadd.f32 0.0, %v2401
        %v2403 = vpop.f32.mrb[0].mxu0
        %2404 = vdwg.mxu0
        %v2406 = vsel %vm1318, %v2315, 0
        %2408 = vmatprep.subr.bf16.mxu0 0
        %2409 = vmatpush1.bf16.msra.mxu0 %v2027
        %2410 = vmatprep.subr.bf16.mxu0 0
        %2411 = vmatpush1.bf16.msra.mxu0 0
        %2412 = vmatprep.subr.bf16.mxu0 0
        %2413 = vmatpush1.bf16.msra.mxu0 0
        %2414 = vmatprep.subr.bf16.mxu0 0
        %2415 = vmatpush1.bf16.msra.mxu0 0
        %2416 = vmatprep.subr.bf16.mxu0 0
        %2417 = vmatpush1.bf16.msra.mxu0 0
        %2418 = vmatprep.subr.bf16.mxu0 0
        %2419 = vmatpush1.bf16.msra.mxu0 0
        %2420 = vmatprep.subr.bf16.mxu0 0
        %2421 = vmatpush1.bf16.msra.mxu0 0
        %2422 = vmatprep.subr.bf16.mxu0 0
        %2423 = vmatpush1.bf16.msra.mxu0 0
        %2424 = vmatprep.subr.bf16.mxu0 0
        %2425 = vmatpush1.bf16.msra.mxu0 0
        %2426 = vmatprep.subr.bf16.mxu0 0
        %2427 = vmatpush1.bf16.msra.mxu0 0
        %2428 = vmatprep.subr.bf16.mxu0 0
        %2429 = vmatpush1.bf16.msra.mxu0 0
        %2430 = vmatprep.subr.bf16.mxu0 0
        %2431 = vmatpush1.bf16.msra.mxu0 0
        %2432 = vmatprep.subr.bf16.mxu0 0
        %2433 = vmatpush1.bf16.msra.mxu0 0
        %2434 = vmatprep.subr.bf16.mxu0 0
        %2435 = vmatpush1.bf16.msra.mxu0 0
        %2436 = vmatprep.subr.bf16.mxu0 0
        %2437 = vmatpush1.bf16.msra.mxu0 0
        %2438 = vmatprep.subr.bf16.mxu0 0
        %2439 = vmatpush1.bf16.msra.mxu0 0
        %2440 = vmatprep.mubr.bf16.mxu0 0
        %2441 = vmatmul.mubr.bf16.gmra.mrb[0].mxu0 %v2406
        %v2442 = vpop.f32.mrb[0].mxu0
        %v2443 = vadd.f32 0.0, %v2442
        %v2444 = vpop.f32.mrb[0].mxu0
        %v2445 = vpop.f32.mrb[0].mxu0
        %v2446 = vadd.f32 0.0, %v2445
        %v2447 = vpop.f32.mrb[0].mxu0
        %2448 = vdwg.mxu0
        %v2450 = vsel %vm1318, %v2316, 0
        %2452 = vmatprep.subr.bf16.mxu0 0
        %2453 = vmatpush1.bf16.msra.mxu0 %v2028
        %2454 = vmatprep.subr.bf16.mxu0 0
        %2455 = vmatpush1.bf16.msra.mxu0 0
        %2456 = vmatprep.subr.bf16.mxu0 0
        %2457 = vmatpush1.bf16.msra.mxu0 0
        %2458 = vmatprep.subr.bf16.mxu0 0
        %2459 = vmatpush1.bf16.msra.mxu0 0
        %2460 = vmatprep.subr.bf16.mxu0 0
        %2461 = vmatpush1.bf16.msra.mxu0 0
        %2462 = vmatprep.subr.bf16.mxu0 0
        %2463 = vmatpush1.bf16.msra.mxu0 0
        %2464 = vmatprep.subr.bf16.mxu0 0
        %2465 = vmatpush1.bf16.msra.mxu0 0
        %2466 = vmatprep.subr.bf16.mxu0 0
        %2467 = vmatpush1.bf16.msra.mxu0 0
        %2468 = vmatprep.subr.bf16.mxu0 0
        %2469 = vmatpush1.bf16.msra.mxu0 0
        %2470 = vmatprep.subr.bf16.mxu0 0
        %2471 = vmatpush1.bf16.msra.mxu0 0
        %2472 = vmatprep.subr.bf16.mxu0 0
        %2473 = vmatpush1.bf16.msra.mxu0 0
        %2474 = vmatprep.subr.bf16.mxu0 0
        %2475 = vmatpush1.bf16.msra.mxu0 0
        %2476 = vmatprep.subr.bf16.mxu0 0
        %2477 = vmatpush1.bf16.msra.mxu0 0
        %2478 = vmatprep.subr.bf16.mxu0 0
        %2479 = vmatpush1.bf16.msra.mxu0 0
        %2480 = vmatprep.subr.bf16.mxu0 0
        %2481 = vmatpush1.bf16.msra.mxu0 0
        %2482 = vmatprep.subr.bf16.mxu0 0
        %2483 = vmatpush1.bf16.msra.mxu0 0
        %2484 = vmatprep.mubr.bf16.mxu0 0
        %2485 = vmatmul.mubr.bf16.gmra.mrb[0].mxu0 %v2450
        %v2486 = vpop.f32.mrb[0].mxu0
        %v2487 = vadd.f32 0.0, %v2486
        %v2488 = vpop.f32.mrb[0].mxu0
        %v2489 = vpop.f32.mrb[0].mxu0
        %v2490 = vadd.f32 0.0, %v2489
        %v2491 = vpop.f32.mrb[0].mxu0
        %2492 = vdwg.mxu0
        %v2493 = vpack.c.bf16 %v2358, %v2355
        %v2494 = vpack.c.bf16 %v2402, %v2399
        %v2495 = vpack.c.bf16 %v2446, %v2443
        %v2496 = vpack.c.bf16 %v2490, %v2487
        %s2497 = scalar_lea.vmem %s9, 16
        %v2498 = vld [vmem:[%s2497] sm:$0xf]
        %v2499 = vld [vmem:[%s2497 + $0x4] sm:$0xf]
        %v2500 = vld [vmem:[%s2497 + $0x8] sm:$0xf]
        %v2501 = vld [vmem:[%s2497 + $0xc] sm:$0xf]
        %v2506 = vunpack.c.l.b16 %v2498
        %v2507 = vunpack.c.l.b16 %v2499
        %v2508 = vunpack.c.l.b16 %v2500
        %v2509 = vunpack.c.l.b16 %v2501
        %v2510 = vpack.c.b16 %v2507, %v2506
        %v2511 = vpack.c.b16 %v2509, %v2508
        %v2515 = vsel %vm1093, %v2493, 0
        %v2518 = vsel %vm1093, %v2494, 0
        %v2521 = vsel %vm1093, %v2495, 0
        %v2524 = vsel %vm1093, %v2496, 0
        %2526 = vmatprep.subr.bf16.mxu0 0
        %2527 = vmatpush1.bf16.msra.mxu0 %v2510
        %2528 = vmatprep.subr.bf16.mxu0 0
        %2529 = vmatpush1.bf16.msra.mxu0 %v2511
        %2530 = vmatprep.subr.bf16.mxu0 0
        %2531 = vmatpush1.bf16.msra.mxu0 0
        %2532 = vmatprep.subr.bf16.mxu0 0
        %2533 = vmatpush1.bf16.msra.mxu0 0
        %2534 = vmatprep.subr.bf16.mxu0 0
        %2535 = vmatpush1.bf16.msra.mxu0 0
        %2536 = vmatprep.subr.bf16.mxu0 0
        %2537 = vmatpush1.bf16.msra.mxu0 0
        %2538 = vmatprep.subr.bf16.mxu0 0
        %2539 = vmatpush1.bf16.msra.mxu0 0
        %2540 = vmatprep.subr.bf16.mxu0 0
        %2541 = vmatpush1.bf16.msra.mxu0 0
        %2542 = vmatprep.subr.bf16.mxu0 0
        %2543 = vmatpush1.bf16.msra.mxu0 0
        %2544 = vmatprep.subr.bf16.mxu0 0
        %2545 = vmatpush1.bf16.msra.mxu0 0
        %2546 = vmatprep.subr.bf16.mxu0 0
        %2547 = vmatpush1.bf16.msra.mxu0 0
        %2548 = vmatprep.subr.bf16.mxu0 0
        %2549 = vmatpush1.bf16.msra.mxu0 0
        %2550 = vmatprep.subr.bf16.mxu0 0
        %2551 = vmatpush1.bf16.msra.mxu0 0
        %2552 = vmatprep.subr.bf16.mxu0 0
        %2553 = vmatpush1.bf16.msra.mxu0 0
        %2554 = vmatprep.subr.bf16.mxu0 0
        %2555 = vmatpush1.bf16.msra.mxu0 0
        %2556 = vmatprep.subr.bf16.mxu0 0
        %2557 = vmatpush1.bf16.msra.mxu0 0
        %2558 = vmatprep.mubr.bf16.mxu0 0
        %2559 = vmatmul.mubr.bf16.gmra.mrb[0].mxu0 %v2515
        %v2560 = vpop.f32.mrb[0].mxu0
        %v2561 = vadd.f32 0.0, %v2560
        %v2562 = vpop.f32.mrb[0].mxu0
        %v2563 = vpop.f32.mrb[0].mxu0
        %v2564 = vadd.f32 0.0, %v2563
        %v2565 = vpop.f32.mrb[0].mxu0
        %2566 = vmatprep.mubr.bf16.mxu0 0
        %2567 = vmatmul.mubr.bf16.gmra.mrb[0].mxu0 %v2518
        %v2568 = vpop.f32.mrb[0].mxu0
        %v2569 = vadd.f32 0.0, %v2568
        %v2570 = vpop.f32.mrb[0].mxu0
        %v2571 = vpop.f32.mrb[0].mxu0
        %v2572 = vadd.f32 0.0, %v2571
        %v2573 = vpop.f32.mrb[0].mxu0
        %2574 = vmatprep.mubr.bf16.mxu0 0
        %2575 = vmatmul.mubr.bf16.gmra.mrb[0].mxu0 %v2521
        %v2576 = vpop.f32.mrb[0].mxu0
        %v2577 = vadd.f32 0.0, %v2576
        %v2578 = vpop.f32.mrb[0].mxu0
        %v2579 = vpop.f32.mrb[0].mxu0
        %v2580 = vadd.f32 0.0, %v2579
        %v2581 = vpop.f32.mrb[0].mxu0
        %2582 = vmatprep.mubr.bf16.mxu0 0
        %2583 = vmatmul.mubr.bf16.gmra.mrb[0].mxu0 %v2524
        %v2584 = vpop.f32.mrb[0].mxu0
        %v2585 = vadd.f32 0.0, %v2584
        %v2586 = vpop.f32.mrb[0].mxu0
        %v2587 = vpop.f32.mrb[0].mxu0
        %v2588 = vadd.f32 0.0, %v2587
        %v2589 = vpop.f32.mrb[0].mxu0
        %2590 = vdwg.mxu0
        %v2595 = vunpack.c.l.b16 %v1591
        %v2596 = vunpack.c.l.b16 %v1592
        %v2597 = vunpack.c.l.b16 %v1593
        %v2598 = vunpack.c.l.b16 %v1594
        %v2599 = vpack.c.b16 %v2596, %v2595
        %v2600 = vpack.c.b16 %v2598, %v2597
        %v2604 = vsel %vm1093, %v1587, 0
        %v2607 = vsel %vm1093, %v1588, 0
        %v2610 = vsel %vm1093, %v1589, 0
        %v2613 = vsel %vm1093, %v1590, 0
        %2615 = vmatprep.subr.bf16.mxu0 0
        %2616 = vmatpush1.bf16.msra.mxu0 %v2599
        %2617 = vmatprep.subr.bf16.mxu0 0
        %2618 = vmatpush1.bf16.msra.mxu0 %v2600
        %2619 = vmatprep.subr.bf16.mxu0 0
        %2620 = vmatpush1.bf16.msra.mxu0 0
        %2621 = vmatprep.subr.bf16.mxu0 0
        %2622 = vmatpush1.bf16.msra.mxu0 0
        %2623 = vmatprep.subr.bf16.mxu0 0
        %2624 = vmatpush1.bf16.msra.mxu0 0
        %2625 = vmatprep.subr.bf16.mxu0 0
        %2626 = vmatpush1.bf16.msra.mxu0 0
        %2627 = vmatprep.subr.bf16.mxu0 0
        %2628 = vmatpush1.bf16.msra.mxu0 0
        %2629 = vmatprep.subr.bf16.mxu0 0
        %2630 = vmatpush1.bf16.msra.mxu0 0
        %2631 = vmatprep.subr.bf16.mxu0 0
        %2632 = vmatpush1.bf16.msra.mxu0 0
        %2633 = vmatprep.subr.bf16.mxu0 0
        %2634 = vmatpush1.bf16.msra.mxu0 0
        %2635 = vmatprep.subr.bf16.mxu0 0
        %2636 = vmatpush1.bf16.msra.mxu0 0
        %2637 = vmatprep.subr.bf16.mxu0 0
        %2638 = vmatpush1.bf16.msra.mxu0 0
        %2639 = vmatprep.subr.bf16.mxu0 0
        %2640 = vmatpush1.bf16.msra.mxu0 0
        %2641 = vmatprep.subr.bf16.mxu0 0
        %2642 = vmatpush1.bf16.msra.mxu0 0
        %2643 = vmatprep.subr.bf16.mxu0 0
        %2644 = vmatpush1.bf16.msra.mxu0 0
        %2645 = vmatprep.subr.bf16.mxu0 0
        %2646 = vmatpush1.bf16.msra.mxu0 0
        %2647 = vmatprep.mubr.bf16.mxu0 0
        %2648 = vmatmul.mubr.bf16.gmra.mrb[0].mxu0 %v2604
        %v2649 = vpop.f32.mrb[0].mxu0
        %v2650 = vadd.f32 %v2561, %v2649
        %v2651 = vpop.f32.mrb[0].mxu0
        %v2652 = vpop.f32.mrb[0].mxu0
        %v2653 = vadd.f32 %v2564, %v2652
        %v2654 = vpop.f32.mrb[0].mxu0
        %2655 = vmatprep.mubr.bf16.mxu0 0
        %2656 = vmatmul.mubr.bf16.gmra.mrb[0].mxu0 %v2607
        %v2657 = vpop.f32.mrb[0].mxu0
        %v2658 = vadd.f32 %v2569, %v2657
        %v2659 = vpop.f32.mrb[0].mxu0
        %v2660 = vpop.f32.mrb[0].mxu0
        %v2661 = vadd.f32 %v2572, %v2660
        %v2662 = vpop.f32.mrb[0].mxu0
        %2663 = vmatprep.mubr.bf16.mxu0 0
        %2664 = vmatmul.mubr.bf16.gmra.mrb[0].mxu0 %v2610
        %v2665 = vpop.f32.mrb[0].mxu0
        %v2666 = vadd.f32 %v2577, %v2665
        %v2667 = vpop.f32.mrb[0].mxu0
        %v2668 = vpop.f32.mrb[0].mxu0
        %v2669 = vadd.f32 %v2580, %v2668
        %v2670 = vpop.f32.mrb[0].mxu0
        %2671 = vmatprep.mubr.bf16.mxu0 0
        %2672 = vmatmul.mubr.bf16.gmra.mrb[0].mxu0 %v2613
        %v2673 = vpop.f32.mrb[0].mxu0
        %v2674 = vadd.f32 %v2585, %v2673
        %v2675 = vpop.f32.mrb[0].mxu0
        %v2676 = vpop.f32.mrb[0].mxu0
        %v2677 = vadd.f32 %v2588, %v2676
        %v2678 = vpop.f32.mrb[0].mxu0
        %2679 = vdwg.mxu0
        %s2680 = scalar_lea.vmem %s3, 128
        %v2681 = vld [vmem:[%s2680] sm:$0xf]
        %v2682 = vld [vmem:[%s2680 + $0x4] sm:$0xf]
        %v2683 = vld [vmem:[%s2680 + $0x8] sm:$0xf]
        %v2684 = vld [vmem:[%s2680 + $0xc] sm:$0xf]
        %v2685 = vld [vmem:[%s2680 + $0x10] sm:$0xf]
        %v2686 = vld [vmem:[%s2680 + $0x14] sm:$0xf]
        %v2687 = vld [vmem:[%s2680 + $0x18] sm:$0xf]
        %v2688 = vld [vmem:[%s2680 + $0x1c] sm:$0xf]
        %v2689 = vld [vmem:[%s2680 + $0x20] sm:$0xf]
        %v2690 = vld [vmem:[%s2680 + $0x24] sm:$0xf]
        %v2691 = vld [vmem:[%s2680 + $0x28] sm:$0xf]
        %v2692 = vld [vmem:[%s2680 + $0x2c] sm:$0xf]
        %v2693 = vld [vmem:[%s2680 + $0x30] sm:$0xf]
        %v2694 = vld [vmem:[%s2680 + $0x34] sm:$0xf]
        %v2695 = vld [vmem:[%s2680 + $0x38] sm:$0xf]
        %v2696 = vld [vmem:[%s2680 + $0x3c] sm:$0xf]
        %s2697 = scalar_lea.vmem %s4, 2
        %v2698 = vld [vmem:[%s2697] sm:$0x1]
        %v2700 = vlaneseq
        %v2701 = vshrl.u32 %v2700, 7
        %v2702 = vsub.s32 0, %v2701
        %v2703 = vrot.slane %v2698, %v2702
        %v2721 = vunpack.c.l.b16 %v2681
        %v2722 = vunpack.c.l.b16 %v2682
        %v2723 = vunpack.c.l.b16 %v2683
        %v2724 = vunpack.c.l.b16 %v2684
        %v2725 = vunpack.c.l.b16 %v2685
        %v2726 = vunpack.c.l.b16 %v2686
        %v2727 = vunpack.c.l.b16 %v2687
        %v2728 = vunpack.c.l.b16 %v2688
        %v2729 = vunpack.c.l.b16 %v2689
        %v2730 = vunpack.c.l.b16 %v2690
        %v2731 = vunpack.c.l.b16 %v2691
        %v2732 = vunpack.c.l.b16 %v2692
        %v2733 = vunpack.c.l.b16 %v2693
        %v2734 = vunpack.c.l.b16 %v2694
        %v2735 = vunpack.c.l.b16 %v2695
        %v2736 = vunpack.c.l.b16 %v2696
        %v2737 = vpack.c.b16 %v2722, %v2721
        %v2738 = vpack.c.b16 %v2724, %v2723
        %v2739 = vpack.c.b16 %v2726, %v2725
        %v2740 = vpack.c.b16 %v2728, %v2727
        %v2741 = vpack.c.b16 %v2730, %v2729
        %v2742 = vpack.c.b16 %v2732, %v2731
        %v2743 = vpack.c.b16 %v2734, %v2733
        %v2744 = vpack.c.b16 %v2736, %v2735
        %2753 = vmatprep.subr.bf16.mxu0 0
        %2754 = vmatpush1.bf16.msra.mxu0 %v2737
        %2755 = vmatprep.subr.bf16.mxu0 0
        %2756 = vmatpush1.bf16.msra.mxu0 %v2738
        %2757 = vmatprep.subr.bf16.mxu0 0
        %2758 = vmatpush1.bf16.msra.mxu0 %v2739
        %2759 = vmatprep.subr.bf16.mxu0 0
        %2760 = vmatpush1.bf16.msra.mxu0 %v2740
        %2761 = vmatprep.subr.bf16.mxu0 0
        %2762 = vmatpush1.bf16.msra.mxu0 %v2741
        %2763 = vmatprep.subr.bf16.mxu0 0
        %2764 = vmatpush1.bf16.msra.mxu0 %v2742
        %2765 = vmatprep.subr.bf16.mxu0 0
        %2766 = vmatpush1.bf16.msra.mxu0 %v2743
        %2767 = vmatprep.subr.bf16.mxu0 0
        %2768 = vmatpush1.bf16.msra.mxu0 %v2744
        %2769 = vmatprep.subr.bf16.mxu0 0
        %2770 = vmatpush1.bf16.msra.mxu0 0
        %2771 = vmatprep.subr.bf16.mxu0 0
        %2772 = vmatpush1.bf16.msra.mxu0 0
        %2773 = vmatprep.subr.bf16.mxu0 0
        %2774 = vmatpush1.bf16.msra.mxu0 0
        %2775 = vmatprep.subr.bf16.mxu0 0
        %2776 = vmatpush1.bf16.msra.mxu0 0
        %2777 = vmatprep.subr.bf16.mxu0 0
        %2778 = vmatpush1.bf16.msra.mxu0 0
        %2779 = vmatprep.subr.bf16.mxu0 0
        %2780 = vmatpush1.bf16.msra.mxu0 0
        %2781 = vmatprep.subr.bf16.mxu0 0
        %2782 = vmatpush1.bf16.msra.mxu0 0
        %2783 = vmatprep.subr.bf16.mxu0 0
        %2784 = vmatpush1.bf16.msra.mxu0 0
        %2785 = vmatprep.mubr.bf16.mxu0 0
        %2786 = vmatmul.mubr.bf16.gmra.mrb[0].mxu0 %v657
        %v2787 = vpop.f32.mrb[0].mxu0
        %v2788 = vadd.f32 %v2703, %v2787
        %v2789 = vpop.f32.mrb[0].mxu0
        %v2790 = vpop.f32.mrb[0].mxu0
        %v2791 = vadd.f32 %v2703, %v2790
        %v2792 = vpop.f32.mrb[0].mxu0
        %2793 = vmatprep.mubr.bf16.mxu0 0
        %2794 = vmatmul.mubr.bf16.gmra.mrb[0].mxu0 %v658
        %v2795 = vpop.f32.mrb[0].mxu0
        %v2796 = vadd.f32 %v2703, %v2795
        %v2797 = vpop.f32.mrb[0].mxu0
        %v2798 = vpop.f32.mrb[0].mxu0
        %v2799 = vadd.f32 %v2703, %v2798
        %v2800 = vpop.f32.mrb[0].mxu0
        %2801 = vmatprep.mubr.bf16.mxu0 0
        %2802 = vmatmul.mubr.bf16.gmra.mrb[0].mxu0 %v659
        %v2803 = vpop.f32.mrb[0].mxu0
        %v2804 = vadd.f32 %v2703, %v2803
        %v2805 = vpop.f32.mrb[0].mxu0
        %v2806 = vpop.f32.mrb[0].mxu0
        %v2807 = vadd.f32 %v2703, %v2806
        %v2808 = vpop.f32.mrb[0].mxu0
        %2809 = vmatprep.mubr.bf16.mxu0 0
        %2810 = vmatmul.mubr.bf16.gmra.mrb[0].mxu0 %v660
        %v2811 = vpop.f32.mrb[0].mxu0
        %v2812 = vadd.f32 %v2703, %v2811
        %v2813 = vpop.f32.mrb[0].mxu0
        %v2814 = vpop.f32.mrb[0].mxu0
        %v2815 = vadd.f32 %v2703, %v2814
        %v2816 = vpop.f32.mrb[0].mxu0
        %2817 = vdwg.mxu0
        %v2818 = vmul.f32 %v2788, 0.17677669
        %v2819 = vmul.f32 %v2791, 0.17677669
        %v2820 = vmul.f32 %v2796, 0.17677669
        %v2821 = vmul.f32 %v2799, 0.17677669
        %v2822 = vmul.f32 %v2804, 0.17677669
        %v2823 = vmul.f32 %v2807, 0.17677669
        %v2824 = vmul.f32 %v2812, 0.17677669
        %v2825 = vmul.f32 %v2815, 0.17677669
        %s2826 = scalar_lea.vmem %s5, 128
        %v2827 = vld [vmem:[%s2826] sm:$0xf]
        %v2828 = vld [vmem:[%s2826 + $0x4] sm:$0xf]
        %v2829 = vld [vmem:[%s2826 + $0x8] sm:$0xf]
        %v2830 = vld [vmem:[%s2826 + $0xc] sm:$0xf]
        %v2831 = vld [vmem:[%s2826 + $0x10] sm:$0xf]
        %v2832 = vld [vmem:[%s2826 + $0x14] sm:$0xf]
        %v2833 = vld [vmem:[%s2826 + $0x18] sm:$0xf]
        %v2834 = vld [vmem:[%s2826 + $0x1c] sm:$0xf]
        %v2835 = vld [vmem:[%s2826 + $0x20] sm:$0xf]
        %v2836 = vld [vmem:[%s2826 + $0x24] sm:$0xf]
        %v2837 = vld [vmem:[%s2826 + $0x28] sm:$0xf]
        %v2838 = vld [vmem:[%s2826 + $0x2c] sm:$0xf]
        %v2839 = vld [vmem:[%s2826 + $0x30] sm:$0xf]
        %v2840 = vld [vmem:[%s2826 + $0x34] sm:$0xf]
        %v2841 = vld [vmem:[%s2826 + $0x38] sm:$0xf]
        %v2842 = vld [vmem:[%s2826 + $0x3c] sm:$0xf]
        %s2843 = scalar_lea.vmem %s6, 2
        %v2844 = vld [vmem:[%s2843] sm:$0x1]
        %v2846 = vlaneseq
        %v2847 = vshrl.u32 %v2846, 7
        %v2848 = vsub.s32 0, %v2847
        %v2849 = vrot.slane %v2844, %v2848
        %v2867 = vunpack.c.l.b16 %v2827
        %v2868 = vunpack.c.l.b16 %v2828
        %v2869 = vunpack.c.l.b16 %v2829
        %v2870 = vunpack.c.l.b16 %v2830
        %v2871 = vunpack.c.l.b16 %v2831
        %v2872 = vunpack.c.l.b16 %v2832
        %v2873 = vunpack.c.l.b16 %v2833
        %v2874 = vunpack.c.l.b16 %v2834
        %v2875 = vunpack.c.l.b16 %v2835
        %v2876 = vunpack.c.l.b16 %v2836
        %v2877 = vunpack.c.l.b16 %v2837
        %v2878 = vunpack.c.l.b16 %v2838
        %v2879 = vunpack.c.l.b16 %v2839
        %v2880 = vunpack.c.l.b16 %v2840
        %v2881 = vunpack.c.l.b16 %v2841
        %v2882 = vunpack.c.l.b16 %v2842
        %v2883 = vpack.c.b16 %v2868, %v2867
        %v2884 = vpack.c.b16 %v2870, %v2869
        %v2885 = vpack.c.b16 %v2872, %v2871
        %v2886 = vpack.c.b16 %v2874, %v2873
        %v2887 = vpack.c.b16 %v2876, %v2875
        %v2888 = vpack.c.b16 %v2878, %v2877
        %v2889 = vpack.c.b16 %v2880, %v2879
        %v2890 = vpack.c.b16 %v2882, %v2881
        %2899 = vmatprep.subr.bf16.mxu0 0
        %2900 = vmatpush1.bf16.msra.mxu0 %v2883
        %2901 = vmatprep.subr.bf16.mxu0 0
        %2902 = vmatpush1.bf16.msra.mxu0 %v2884
        %2903 = vmatprep.subr.bf16.mxu0 0
        %2904 = vmatpush1.bf16.msra.mxu0 %v2885
        %2905 = vmatprep.subr.bf16.mxu0 0
        %2906 = vmatpush1.bf16.msra.mxu0 %v2886
        %2907 = vmatprep.subr.bf16.mxu0 0
        %2908 = vmatpush1.bf16.msra.mxu0 %v2887
        %2909 = vmatprep.subr.bf16.mxu0 0
        %2910 = vmatpush1.bf16.msra.mxu0 %v2888
        %2911 = vmatprep.subr.bf16.mxu0 0
        %2912 = vmatpush1.bf16.msra.mxu0 %v2889
        %2913 = vmatprep.subr.bf16.mxu0 0
        %2914 = vmatpush1.bf16.msra.mxu0 %v2890
        %2915 = vmatprep.subr.bf16.mxu0 0
        %2916 = vmatpush1.bf16.msra.mxu0 0
        %2917 = vmatprep.subr.bf16.mxu0 0
        %2918 = vmatpush1.bf16.msra.mxu0 0
        %2919 = vmatprep.subr.bf16.mxu0 0
        %2920 = vmatpush1.bf16.msra.mxu0 0
        %2921 = vmatprep.subr.bf16.mxu0 0
        %2922 = vmatpush1.bf16.msra.mxu0 0
        %2923 = vmatprep.subr.bf16.mxu0 0
        %2924 = vmatpush1.bf16.msra.mxu0 0
        %2925 = vmatprep.subr.bf16.mxu0 0
        %2926 = vmatpush1.bf16.msra.mxu0 0
        %2927 = vmatprep.subr.bf16.mxu0 0
        %2928 = vmatpush1.bf16.msra.mxu0 0
        %2929 = vmatprep.subr.bf16.mxu0 0
        %2930 = vmatpush1.bf16.msra.mxu0 0
        %2931 = vmatprep.mubr.bf16.mxu0 0
        %2932 = vmatmul.mubr.bf16.gmra.mrb[0].mxu0 %v657
        %v2933 = vpop.f32.mrb[0].mxu0
        %v2934 = vadd.f32 %v2849, %v2933
        %v2935 = vpop.f32.mrb[0].mxu0
        %v2936 = vpop.f32.mrb[0].mxu0
        %v2937 = vadd.f32 %v2849, %v2936
        %v2938 = vpop.f32.mrb[0].mxu0
        %2939 = vmatprep.mubr.bf16.mxu0 0
        %2940 = vmatmul.mubr.bf16.gmra.mrb[0].mxu0 %v658
        %v2941 = vpop.f32.mrb[0].mxu0
        %v2942 = vadd.f32 %v2849, %v2941
        %v2943 = vpop.f32.mrb[0].mxu0
        %v2944 = vpop.f32.mrb[0].mxu0
        %v2945 = vadd.f32 %v2849, %v2944
        %v2946 = vpop.f32.mrb[0].mxu0
        %2947 = vmatprep.mubr.bf16.mxu0 0
        %2948 = vmatmul.mubr.bf16.gmra.mrb[0].mxu0 %v659
        %v2949 = vpop.f32.mrb[0].mxu0
        %v2950 = vadd.f32 %v2849, %v2949
        %v2951 = vpop.f32.mrb[0].mxu0
        %v2952 = vpop.f32.mrb[0].mxu0
        %v2953 = vadd.f32 %v2849, %v2952
        %v2954 = vpop.f32.mrb[0].mxu0
        %2955 = vmatprep.mubr.bf16.mxu0 0
        %2956 = vmatmul.mubr.bf16.gmra.mrb[0].mxu0 %v660
        %v2957 = vpop.f32.mrb[0].mxu0
        %v2958 = vadd.f32 %v2849, %v2957
        %v2959 = vpop.f32.mrb[0].mxu0
        %v2960 = vpop.f32.mrb[0].mxu0
        %v2961 = vadd.f32 %v2849, %v2960
        %v2962 = vpop.f32.mrb[0].mxu0
        %2963 = vdwg.mxu0
        %s2964 = scalar_lea.vmem %s7, 128
        %v2965 = vld [vmem:[%s2964] sm:$0xf]
        %v2966 = vld [vmem:[%s2964 + $0x4] sm:$0xf]
        %v2967 = vld [vmem:[%s2964 + $0x8] sm:$0xf]
        %v2968 = vld [vmem:[%s2964 + $0xc] sm:$0xf]
        %v2969 = vld [vmem:[%s2964 + $0x10] sm:$0xf]
        %v2970 = vld [vmem:[%s2964 + $0x14] sm:$0xf]
        %v2971 = vld [vmem:[%s2964 + $0x18] sm:$0xf]
        %v2972 = vld [vmem:[%s2964 + $0x1c] sm:$0xf]
        %v2973 = vld [vmem:[%s2964 + $0x20] sm:$0xf]
        %v2974 = vld [vmem:[%s2964 + $0x24] sm:$0xf]
        %v2975 = vld [vmem:[%s2964 + $0x28] sm:$0xf]
        %v2976 = vld [vmem:[%s2964 + $0x2c] sm:$0xf]
        %v2977 = vld [vmem:[%s2964 + $0x30] sm:$0xf]
        %v2978 = vld [vmem:[%s2964 + $0x34] sm:$0xf]
        %v2979 = vld [vmem:[%s2964 + $0x38] sm:$0xf]
        %v2980 = vld [vmem:[%s2964 + $0x3c] sm:$0xf]
        %s2981 = scalar_lea.vmem %s8, 2
        %v2982 = vld [vmem:[%s2981] sm:$0x1]
        %v2984 = vlaneseq
        %v2985 = vshrl.u32 %v2984, 7
        %v2986 = vsub.s32 0, %v2985
        %v2987 = vrot.slane %v2982, %v2986
        %v3005 = vunpack.c.l.b16 %v2965
        %v3006 = vunpack.c.l.b16 %v2966
        %v3007 = vunpack.c.l.b16 %v2967
        %v3008 = vunpack.c.l.b16 %v2968
        %v3009 = vunpack.c.l.b16 %v2969
        %v3010 = vunpack.c.l.b16 %v2970
        %v3011 = vunpack.c.l.b16 %v2971
        %v3012 = vunpack.c.l.b16 %v2972
        %v3013 = vunpack.c.l.b16 %v2973
        %v3014 = vunpack.c.l.b16 %v2974
        %v3015 = vunpack.c.l.b16 %v2975
        %v3016 = vunpack.c.l.b16 %v2976
        %v3017 = vunpack.c.l.b16 %v2977
        %v3018 = vunpack.c.l.b16 %v2978
        %v3019 = vunpack.c.l.b16 %v2979
        %v3020 = vunpack.c.l.b16 %v2980
        %v3021 = vpack.c.b16 %v3006, %v3005
        %v3022 = vpack.c.b16 %v3008, %v3007
        %v3023 = vpack.c.b16 %v3010, %v3009
        %v3024 = vpack.c.b16 %v3012, %v3011
        %v3025 = vpack.c.b16 %v3014, %v3013
        %v3026 = vpack.c.b16 %v3016, %v3015
        %v3027 = vpack.c.b16 %v3018, %v3017
        %v3028 = vpack.c.b16 %v3020, %v3019
        %3037 = vmatprep.subr.bf16.mxu0 0
        %3038 = vmatpush1.bf16.msra.mxu0 %v3021
        %3039 = vmatprep.subr.bf16.mxu0 0
        %3040 = vmatpush1.bf16.msra.mxu0 %v3022
        %3041 = vmatprep.subr.bf16.mxu0 0
        %3042 = vmatpush1.bf16.msra.mxu0 %v3023
        %3043 = vmatprep.subr.bf16.mxu0 0
        %3044 = vmatpush1.bf16.msra.mxu0 %v3024
        %3045 = vmatprep.subr.bf16.mxu0 0
        %3046 = vmatpush1.bf16.msra.mxu0 %v3025
        %3047 = vmatprep.subr.bf16.mxu0 0
        %3048 = vmatpush1.bf16.msra.mxu0 %v3026
        %3049 = vmatprep.subr.bf16.mxu0 0
        %3050 = vmatpush1.bf16.msra.mxu0 %v3027
        %3051 = vmatprep.subr.bf16.mxu0 0
        %3052 = vmatpush1.bf16.msra.mxu0 %v3028
        %3053 = vmatprep.subr.bf16.mxu0 0
        %3054 = vmatpush1.bf16.msra.mxu0 0
        %3055 = vmatprep.subr.bf16.mxu0 0
        %3056 = vmatpush1.bf16.msra.mxu0 0
        %3057 = vmatprep.subr.bf16.mxu0 0
        %3058 = vmatpush1.bf16.msra.mxu0 0
        %3059 = vmatprep.subr.bf16.mxu0 0
        %3060 = vmatpush1.bf16.msra.mxu0 0
        %3061 = vmatprep.subr.bf16.mxu0 0
        %3062 = vmatpush1.bf16.msra.mxu0 0
        %3063 = vmatprep.subr.bf16.mxu0 0
        %3064 = vmatpush1.bf16.msra.mxu0 0
        %3065 = vmatprep.subr.bf16.mxu0 0
        %3066 = vmatpush1.bf16.msra.mxu0 0
        %3067 = vmatprep.subr.bf16.mxu0 0
        %3068 = vmatpush1.bf16.msra.mxu0 0
        %3069 = vmatprep.mubr.bf16.mxu0 0
        %3070 = vmatmul.mubr.bf16.gmra.mrb[0].mxu0 %v657
        %v3071 = vpop.f32.mrb[0].mxu0
        %v3072 = vadd.f32 %v2987, %v3071
        %v3073 = vpop.f32.mrb[0].mxu0
        %v3074 = vpop.f32.mrb[0].mxu0
        %v3075 = vadd.f32 %v2987, %v3074
        %v3076 = vpop.f32.mrb[0].mxu0
        %3077 = vmatprep.mubr.bf16.mxu0 0
        %3078 = vmatmul.mubr.bf16.gmra.mrb[0].mxu0 %v658
        %v3079 = vpop.f32.mrb[0].mxu0
        %v3080 = vadd.f32 %v2987, %v3079
        %v3081 = vpop.f32.mrb[0].mxu0
        %v3082 = vpop.f32.mrb[0].mxu0
        %v3083 = vadd.f32 %v2987, %v3082
        %v3084 = vpop.f32.mrb[0].mxu0
        %3085 = vmatprep.mubr.bf16.mxu0 0
        %3086 = vmatmul.mubr.bf16.gmra.mrb[0].mxu0 %v659
        %v3087 = vpop.f32.mrb[0].mxu0
        %v3088 = vadd.f32 %v2987, %v3087
        %v3089 = vpop.f32.mrb[0].mxu0
        %v3090 = vpop.f32.mrb[0].mxu0
        %v3091 = vadd.f32 %v2987, %v3090
        %v3092 = vpop.f32.mrb[0].mxu0
        %3093 = vmatprep.mubr.bf16.mxu0 0
        %3094 = vmatmul.mubr.bf16.gmra.mrb[0].mxu0 %v660
        %v3095 = vpop.f32.mrb[0].mxu0
        %v3096 = vadd.f32 %v2987, %v3095
        %v3097 = vpop.f32.mrb[0].mxu0
        %v3098 = vpop.f32.mrb[0].mxu0
        %v3099 = vadd.f32 %v2987, %v3098
        %v3100 = vpop.f32.mrb[0].mxu0
        %3101 = vdwg.mxu0
        %v3102 = vpack.c.bf16 %v2819, %v2818
        %v3103 = vpack.c.bf16 %v2821, %v2820
        %v3104 = vpack.c.bf16 %v2823, %v2822
        %v3105 = vpack.c.bf16 %v2825, %v2824
        %v3106 = vpack.c.bf16 %v2937, %v2934
        %v3107 = vpack.c.bf16 %v2945, %v2942
        %v3108 = vpack.c.bf16 %v2953, %v2950
        %v3109 = vpack.c.bf16 %v2961, %v2958
        %v3110 = vpack.c.bf16 %v3075, %v3072
        %v3111 = vpack.c.bf16 %v3083, %v3080
        %v3112 = vpack.c.bf16 %v3091, %v3088
        %v3113 = vpack.c.bf16 %v3099, %v3096
        %v3115 = vsel %vm1093, %v3102, 0
        %v3118 = vsel %vm1093, %v3106, 0
        %3120 = vmatprep.subr.bf16.mxu0 0
        %3121 = vmatpush1.bf16.xpose.msra.mxu0 %v3118
        %3122 = vmatprep.subr.bf16.mxu0 0
        %3123 = vmatpush1.bf16.xpose.msra.mxu0 0
        %3124 = vmatprep.subr.bf16.mxu0 0
        %3125 = vmatpush1.bf16.xpose.msra.mxu0 0
        %3126 = vmatprep.subr.bf16.mxu0 0
        %3127 = vmatpush1.bf16.xpose.msra.mxu0 0
        %3128 = vmatprep.subr.bf16.mxu0 0
        %3129 = vmatpush1.bf16.xpose.msra.mxu0 0
        %3130 = vmatprep.subr.bf16.mxu0 0
        %3131 = vmatpush1.bf16.xpose.msra.mxu0 0
        %3132 = vmatprep.subr.bf16.mxu0 0
        %3133 = vmatpush1.bf16.xpose.msra.mxu0 0
        %3134 = vmatprep.subr.bf16.mxu0 0
        %3135 = vmatpush1.bf16.xpose.msra.mxu0 0
        %3136 = vmatprep.subr.bf16.mxu0 0
        %3137 = vmatpush1.bf16.xpose.msra.mxu0 0
        %3138 = vmatprep.subr.bf16.mxu0 0
        %3139 = vmatpush1.bf16.xpose.msra.mxu0 0
        %3140 = vmatprep.subr.bf16.mxu0 0
        %3141 = vmatpush1.bf16.xpose.msra.mxu0 0
        %3142 = vmatprep.subr.bf16.mxu0 0
        %3143 = vmatpush1.bf16.xpose.msra.mxu0 0
        %3144 = vmatprep.subr.bf16.mxu0 0
        %3145 = vmatpush1.bf16.xpose.msra.mxu0 0
        %3146 = vmatprep.subr.bf16.mxu0 0
        %3147 = vmatpush1.bf16.xpose.msra.mxu0 0
        %3148 = vmatprep.subr.bf16.mxu0 0
        %3149 = vmatpush1.bf16.xpose.msra.mxu0 0
        %3150 = vmatprep.subr.bf16.mxu0 0
        %3151 = vmatpush1.bf16.xpose.msra.mxu0 0
        %3152 = vmatprep.mubr.bf16.mxu0 0
        %3153 = vmatmul.mubr.bf16.gmra.mrb[0].mxu0 %v3115
        %v3154 = vpop.f32.mrb[0].mxu0
        %v3155 = vadd.f32 0.0, %v3154
        %v3156 = vpop.f32.mrb[0].mxu0
        %v3157 = vpop.f32.mrb[0].mxu0
        %v3158 = vadd.f32 0.0, %v3157
        %v3159 = vpop.f32.mrb[0].mxu0
        %3160 = vdwg.mxu0
        %v3162 = vsel %vm1093, %v3103, 0
        %v3165 = vsel %vm1093, %v3107, 0
        %3167 = vmatprep.subr.bf16.mxu0 0
        %3168 = vmatpush1.bf16.xpose.msra.mxu0 %v3165
        %3169 = vmatprep.subr.bf16.mxu0 0
        %3170 = vmatpush1.bf16.xpose.msra.mxu0 0
        %3171 = vmatprep.subr.bf16.mxu0 0
        %3172 = vmatpush1.bf16.xpose.msra.mxu0 0
        %3173 = vmatprep.subr.bf16.mxu0 0
        %3174 = vmatpush1.bf16.xpose.msra.mxu0 0
        %3175 = vmatprep.subr.bf16.mxu0 0
        %3176 = vmatpush1.bf16.xpose.msra.mxu0 0
        %3177 = vmatprep.subr.bf16.mxu0 0
        %3178 = vmatpush1.bf16.xpose.msra.mxu0 0
        %3179 = vmatprep.subr.bf16.mxu0 0
        %3180 = vmatpush1.bf16.xpose.msra.mxu0 0
        %3181 = vmatprep.subr.bf16.mxu0 0
        %3182 = vmatpush1.bf16.xpose.msra.mxu0 0
        %3183 = vmatprep.subr.bf16.mxu0 0
        %3184 = vmatpush1.bf16.xpose.msra.mxu0 0
        %3185 = vmatprep.subr.bf16.mxu0 0
        %3186 = vmatpush1.bf16.xpose.msra.mxu0 0
        %3187 = vmatprep.subr.bf16.mxu0 0
        %3188 = vmatpush1.bf16.xpose.msra.mxu0 0
        %3189 = vmatprep.subr.bf16.mxu0 0
        %3190 = vmatpush1.bf16.xpose.msra.mxu0 0
        %3191 = vmatprep.subr.bf16.mxu0 0
        %3192 = vmatpush1.bf16.xpose.msra.mxu0 0
        %3193 = vmatprep.subr.bf16.mxu0 0
        %3194 = vmatpush1.bf16.xpose.msra.mxu0 0
        %3195 = vmatprep.subr.bf16.mxu0 0
        %3196 = vmatpush1.bf16.xpose.msra.mxu0 0
        %3197 = vmatprep.subr.bf16.mxu0 0
        %3198 = vmatpush1.bf16.xpose.msra.mxu0 0
        %3199 = vmatprep.mubr.bf16.mxu0 0
        %3200 = vmatmul.mubr.bf16.gmra.mrb[0].mxu0 %v3162
        %v3201 = vpop.f32.mrb[0].mxu0
        %v3202 = vadd.f32 0.0, %v3201
        %v3203 = vpop.f32.mrb[0].mxu0
        %v3204 = vpop.f32.mrb[0].mxu0
        %v3205 = vadd.f32 0.0, %v3204
        %v3206 = vpop.f32.mrb[0].mxu0
        %3207 = vdwg.mxu0
        %v3209 = vsel %vm1093, %v3104, 0
        %v3212 = vsel %vm1093, %v3108, 0
        %3214 = vmatprep.subr.bf16.mxu0 0
        %3215 = vmatpush1.bf16.xpose.msra.mxu0 %v3212
        %3216 = vmatprep.subr.bf16.mxu0 0
        %3217 = vmatpush1.bf16.xpose.msra.mxu0 0
        %3218 = vmatprep.subr.bf16.mxu0 0
        %3219 = vmatpush1.bf16.xpose.msra.mxu0 0
        %3220 = vmatprep.subr.bf16.mxu0 0
        %3221 = vmatpush1.bf16.xpose.msra.mxu0 0
        %3222 = vmatprep.subr.bf16.mxu0 0
        %3223 = vmatpush1.bf16.xpose.msra.mxu0 0
        %3224 = vmatprep.subr.bf16.mxu0 0
        %3225 = vmatpush1.bf16.xpose.msra.mxu0 0
        %3226 = vmatprep.subr.bf16.mxu0 0
        %3227 = vmatpush1.bf16.xpose.msra.mxu0 0
        %3228 = vmatprep.subr.bf16.mxu0 0
        %3229 = vmatpush1.bf16.xpose.msra.mxu0 0
        %3230 = vmatprep.subr.bf16.mxu0 0
        %3231 = vmatpush1.bf16.xpose.msra.mxu0 0
        %3232 = vmatprep.subr.bf16.mxu0 0
        %3233 = vmatpush1.bf16.xpose.msra.mxu0 0
        %3234 = vmatprep.subr.bf16.mxu0 0
        %3235 = vmatpush1.bf16.xpose.msra.mxu0 0
        %3236 = vmatprep.subr.bf16.mxu0 0
        %3237 = vmatpush1.bf16.xpose.msra.mxu0 0
        %3238 = vmatprep.subr.bf16.mxu0 0
        %3239 = vmatpush1.bf16.xpose.msra.mxu0 0
        %3240 = vmatprep.subr.bf16.mxu0 0
        %3241 = vmatpush1.bf16.xpose.msra.mxu0 0
        %3242 = vmatprep.subr.bf16.mxu0 0
        %3243 = vmatpush1.bf16.xpose.msra.mxu0 0
        %3244 = vmatprep.subr.bf16.mxu0 0
        %3245 = vmatpush1.bf16.xpose.msra.mxu0 0
        %3246 = vmatprep.mubr.bf16.mxu0 0
        %3247 = vmatmul.mubr.bf16.gmra.mrb[0].mxu0 %v3209
        %v3248 = vpop.f32.mrb[0].mxu0
        %v3249 = vadd.f32 0.0, %v3248
        %v3250 = vpop.f32.mrb[0].mxu0
        %v3251 = vpop.f32.mrb[0].mxu0
        %v3252 = vadd.f32 0.0, %v3251
        %v3253 = vpop.f32.mrb[0].mxu0
        %3254 = vdwg.mxu0
        %v3256 = vsel %vm1093, %v3105, 0
        %v3259 = vsel %vm1093, %v3109, 0
        %3261 = vmatprep.subr.bf16.mxu0 0
        %3262 = vmatpush1.bf16.xpose.msra.mxu0 %v3259
        %3263 = vmatprep.subr.bf16.mxu0 0
        %3264 = vmatpush1.bf16.xpose.msra.mxu0 0
        %3265 = vmatprep.subr.bf16.mxu0 0
        %3266 = vmatpush1.bf16.xpose.msra.mxu0 0
        %3267 = vmatprep.subr.bf16.mxu0 0
        %3268 = vmatpush1.bf16.xpose.msra.mxu0 0
        %3269 = vmatprep.subr.bf16.mxu0 0
        %3270 = vmatpush1.bf16.xpose.msra.mxu0 0
        %3271 = vmatprep.subr.bf16.mxu0 0
        %3272 = vmatpush1.bf16.xpose.msra.mxu0 0
        %3273 = vmatprep.subr.bf16.mxu0 0
        %3274 = vmatpush1.bf16.xpose.msra.mxu0 0
        %3275 = vmatprep.subr.bf16.mxu0 0
        %3276 = vmatpush1.bf16.xpose.msra.mxu0 0
        %3277 = vmatprep.subr.bf16.mxu0 0
        %3278 = vmatpush1.bf16.xpose.msra.mxu0 0
        %3279 = vmatprep.subr.bf16.mxu0 0
        %3280 = vmatpush1.bf16.xpose.msra.mxu0 0
        %3281 = vmatprep.subr.bf16.mxu0 0
        %3282 = vmatpush1.bf16.xpose.msra.mxu0 0
        %3283 = vmatprep.subr.bf16.mxu0 0
        %3284 = vmatpush1.bf16.xpose.msra.mxu0 0
        %3285 = vmatprep.subr.bf16.mxu0 0
        %3286 = vmatpush1.bf16.xpose.msra.mxu0 0
        %3287 = vmatprep.subr.bf16.mxu0 0
        %3288 = vmatpush1.bf16.xpose.msra.mxu0 0
        %3289 = vmatprep.subr.bf16.mxu0 0
        %3290 = vmatpush1.bf16.xpose.msra.mxu0 0
        %3291 = vmatprep.subr.bf16.mxu0 0
        %3292 = vmatpush1.bf16.xpose.msra.mxu0 0
        %3293 = vmatprep.mubr.bf16.mxu0 0
        %3294 = vmatmul.mubr.bf16.gmra.mrb[0].mxu0 %v3256
        %v3295 = vpop.f32.mrb[0].mxu0
        %v3296 = vadd.f32 0.0, %v3295
        %v3297 = vpop.f32.mrb[0].mxu0
        %v3298 = vpop.f32.mrb[0].mxu0
        %v3299 = vadd.f32 0.0, %v3298
        %v3300 = vpop.f32.mrb[0].mxu0
        %3301 = vdwg.mxu0
        %v3302 = vsel %vm1306, -1e+20, %v3155
        %v3303 = vsel %vm1306, -1e+20, %v3158
        %v3304 = vsel %vm1307, -1e+20, %v3202
        %v3305 = vsel %vm1307, -1e+20, %v3205
        %v3306 = vsel %vm1308, -1e+20, %v3249
        %v3307 = vsel %vm1308, -1e+20, %v3252
        %v3308 = vsel %vm1309, -1e+20, %v3296
        %v3309 = vsel %vm1309, -1e+20, %v3299
        %v3310 = vsel %vm1318, %v3302, -inf
        %3311 = vmax.xlane.f32.xlu0 %v3310
        %v3312 = vpop.xlane.xlu0 %3311
        %v3313 = vsel %vm1318, %v3303, -inf
        %3314 = vmax.xlane.f32.xlu0 %v3313
        %v3315 = vpop.xlane.xlu0 %3314
        %v3316 = vsel %vm1318, %v3304, -inf
        %3317 = vmax.xlane.f32.xlu0 %v3316
        %v3318 = vpop.xlane.xlu0 %3317
        %v3319 = vsel %vm1318, %v3305, -inf
        %3320 = vmax.xlane.f32.xlu0 %v3319
        %v3321 = vpop.xlane.xlu0 %3320
        %v3322 = vsel %vm1318, %v3306, -inf
        %3323 = vmax.xlane.f32.xlu0 %v3322
        %v3324 = vpop.xlane.xlu0 %3323
        %v3325 = vsel %vm1318, %v3307, -inf
        %3326 = vmax.xlane.f32.xlu0 %v3325
        %v3327 = vpop.xlane.xlu0 %3326
        %v3328 = vsel %vm1318, %v3308, -inf
        %3329 = vmax.xlane.f32.xlu0 %v3328
        %v3330 = vpop.xlane.xlu0 %3329
        %v3331 = vsel %vm1318, %v3309, -inf
        %3332 = vmax.xlane.f32.xlu0 %v3331
        %v3333 = vpop.xlane.xlu0 %3332
        %v3334 = vsub.f32 %v3302, %v3312
        %v3335 = vsub.f32 %v3303, %v3315
        %v3336 = vsub.f32 %v3304, %v3318
        %v3337 = vsub.f32 %v3305, %v3321
        %v3338 = vsub.f32 %v3306, %v3324
        %v3339 = vsub.f32 %v3307, %v3327
        %v3340 = vsub.f32 %v3308, %v3330
        %v3341 = vsub.f32 %v3309, %v3333
        %v3342 = vmul.f32 %v3334, 1.442695
        %v3343 = vpow.pop %v3342
        %v3344 = vmul.f32 %v3335, 1.442695
        %v3345 = vpow.pop %v3344
        %v3346 = vmul.f32 %v3336, 1.442695
        %v3347 = vpow.pop %v3346
        %v3348 = vmul.f32 %v3337, 1.442695
        %v3349 = vpow.pop %v3348
        %v3350 = vmul.f32 %v3338, 1.442695
        %v3351 = vpow.pop %v3350
        %v3352 = vmul.f32 %v3339, 1.442695
        %v3353 = vpow.pop %v3352
        %v3354 = vmul.f32 %v3340, 1.442695
        %v3355 = vpow.pop %v3354
        %v3356 = vmul.f32 %v3341, 1.442695
        %v3357 = vpow.pop %v3356
        %v3358 = vsel %vm1318, %v3343, 0.0
        %3359 = vadd.xlane.f32.xlu0 %v3358
        %v3360 = vpop.xlane.xlu0 %3359
        %v3361 = vsel %vm1318, %v3345, 0.0
        %3362 = vadd.xlane.f32.xlu0 %v3361
        %v3363 = vpop.xlane.xlu0 %3362
        %v3364 = vsel %vm1318, %v3347, 0.0
        %3365 = vadd.xlane.f32.xlu0 %v3364
        %v3366 = vpop.xlane.xlu0 %3365
        %v3367 = vsel %vm1318, %v3349, 0.0
        %3368 = vadd.xlane.f32.xlu0 %v3367
        %v3369 = vpop.xlane.xlu0 %3368
        %v3370 = vsel %vm1318, %v3351, 0.0
        %3371 = vadd.xlane.f32.xlu0 %v3370
        %v3372 = vpop.xlane.xlu0 %3371
        %v3373 = vsel %vm1318, %v3353, 0.0
        %3374 = vadd.xlane.f32.xlu0 %v3373
        %v3375 = vpop.xlane.xlu0 %3374
        %v3376 = vsel %vm1318, %v3355, 0.0
        %3377 = vadd.xlane.f32.xlu0 %v3376
        %v3378 = vpop.xlane.xlu0 %3377
        %v3379 = vsel %vm1318, %v3357, 0.0
        %3380 = vadd.xlane.f32.xlu0 %v3379
        %v3381 = vpop.xlane.xlu0 %3380
        %v3382 = vrcp.pop %v3360
        %v3383 = vrcp.pop %v3363
        %v3384 = vrcp.pop %v3366
        %v3385 = vrcp.pop %v3369
        %v3386 = vrcp.pop %v3372
        %v3387 = vrcp.pop %v3375
        %v3388 = vrcp.pop %v3378
        %v3389 = vrcp.pop %v3381
        %v3390 = vmul.f32 %v3343, %v3382
        %v3391 = vmul.f32 %v3345, %v3383
        %v3392 = vmul.f32 %v3347, %v3384
        %v3393 = vmul.f32 %v3349, %v3385
        %v3394 = vmul.f32 %v3351, %v3386
        %v3395 = vmul.f32 %v3353, %v3387
        %v3396 = vmul.f32 %v3355, %v3388
        %v3397 = vmul.f32 %v3357, %v3389
        %v3398 = vpack.c.bf16 %v3391, %v3390
        %v3399 = vpack.c.bf16 %v3393, %v3392
        %v3400 = vpack.c.bf16 %v3395, %v3394
        %v3401 = vpack.c.bf16 %v3397, %v3396
        %v3403 = vsel %vm1318, %v3398, 0
        %3405 = vmatprep.subr.bf16.mxu0 0
        %3406 = vmatpush1.bf16.msra.mxu0 %v3110
        %3407 = vmatprep.subr.bf16.mxu0 0
        %3408 = vmatpush1.bf16.msra.mxu0 0
        %3409 = vmatprep.subr.bf16.mxu0 0
        %3410 = vmatpush1.bf16.msra.mxu0 0
        %3411 = vmatprep.subr.bf16.mxu0 0
        %3412 = vmatpush1.bf16.msra.mxu0 0
        %3413 = vmatprep.subr.bf16.mxu0 0
        %3414 = vmatpush1.bf16.msra.mxu0 0
        %3415 = vmatprep.subr.bf16.mxu0 0
        %3416 = vmatpush1.bf16.msra.mxu0 0
        %3417 = vmatprep.subr.bf16.mxu0 0
        %3418 = vmatpush1.bf16.msra.mxu0 0
        %3419 = vmatprep.subr.bf16.mxu0 0
        %3420 = vmatpush1.bf16.msra.mxu0 0
        %3421 = vmatprep.subr.bf16.mxu0 0
        %3422 = vmatpush1.bf16.msra.mxu0 0
        %3423 = vmatprep.subr.bf16.mxu0 0
        %3424 = vmatpush1.bf16.msra.mxu0 0
        %3425 = vmatprep.subr.bf16.mxu0 0
        %3426 = vmatpush1.bf16.msra.mxu0 0
        %3427 = vmatprep.subr.bf16.mxu0 0
        %3428 = vmatpush1.bf16.msra.mxu0 0
        %3429 = vmatprep.subr.bf16.mxu0 0
        %3430 = vmatpush1.bf16.msra.mxu0 0
        %3431 = vmatprep.subr.bf16.mxu0 0
        %3432 = vmatpush1.bf16.msra.mxu0 0
        %3433 = vmatprep.subr.bf16.mxu0 0
        %3434 = vmatpush1.bf16.msra.mxu0 0
        %3435 = vmatprep.subr.bf16.mxu0 0
        %3436 = vmatpush1.bf16.msra.mxu0 0
        %3437 = vmatprep.mubr.bf16.mxu0 0
        %3438 = vmatmul.mubr.bf16.gmra.mrb[0].mxu0 %v3403
        %v3439 = vpop.f32.mrb[0].mxu0
        %v3440 = vadd.f32 0.0, %v3439
        %v3441 = vpop.f32.mrb[0].mxu0
        %v3442 = vpop.f32.mrb[0].mxu0
        %v3443 = vadd.f32 0.0, %v3442
        %v3444 = vpop.f32.mrb[0].mxu0
        %3445 = vdwg.mxu0
        %v3447 = vsel %vm1318, %v3399, 0
        %3449 = vmatprep.subr.bf16.mxu0 0
        %3450 = vmatpush1.bf16.msra.mxu0 %v3111
        %3451 = vmatprep.subr.bf16.mxu0 0
        %3452 = vmatpush1.bf16.msra.mxu0 0
        %3453 = vmatprep.subr.bf16.mxu0 0
        %3454 = vmatpush1.bf16.msra.mxu0 0
        %3455 = vmatprep.subr.bf16.mxu0 0
        %3456 = vmatpush1.bf16.msra.mxu0 0
        %3457 = vmatprep.subr.bf16.mxu0 0
        %3458 = vmatpush1.bf16.msra.mxu0 0
        %3459 = vmatprep.subr.bf16.mxu0 0
        %3460 = vmatpush1.bf16.msra.mxu0 0
        %3461 = vmatprep.subr.bf16.mxu0 0
        %3462 = vmatpush1.bf16.msra.mxu0 0
        %3463 = vmatprep.subr.bf16.mxu0 0
        %3464 = vmatpush1.bf16.msra.mxu0 0
        %3465 = vmatprep.subr.bf16.mxu0 0
        %3466 = vmatpush1.bf16.msra.mxu0 0
        %3467 = vmatprep.subr.bf16.mxu0 0
        %3468 = vmatpush1.bf16.msra.mxu0 0
        %3469 = vmatprep.subr.bf16.mxu0 0
        %3470 = vmatpush1.bf16.msra.mxu0 0
        %3471 = vmatprep.subr.bf16.mxu0 0
        %3472 = vmatpush1.bf16.msra.mxu0 0
        %3473 = vmatprep.subr.bf16.mxu0 0
        %3474 = vmatpush1.bf16.msra.mxu0 0
        %3475 = vmatprep.subr.bf16.mxu0 0
        %3476 = vmatpush1.bf16.msra.mxu0 0
        %3477 = vmatprep.subr.bf16.mxu0 0
        %3478 = vmatpush1.bf16.msra.mxu0 0
        %3479 = vmatprep.subr.bf16.mxu0 0
        %3480 = vmatpush1.bf16.msra.mxu0 0
        %3481 = vmatprep.mubr.bf16.mxu0 0
        %3482 = vmatmul.mubr.bf16.gmra.mrb[0].mxu0 %v3447
        %v3483 = vpop.f32.mrb[0].mxu0
        %v3484 = vadd.f32 0.0, %v3483
        %v3485 = vpop.f32.mrb[0].mxu0
        %v3486 = vpop.f32.mrb[0].mxu0
        %v3487 = vadd.f32 0.0, %v3486
        %v3488 = vpop.f32.mrb[0].mxu0
        %3489 = vdwg.mxu0
        %v3491 = vsel %vm1318, %v3400, 0
        %3493 = vmatprep.subr.bf16.mxu0 0
        %3494 = vmatpush1.bf16.msra.mxu0 %v3112
        %3495 = vmatprep.subr.bf16.mxu0 0
        %3496 = vmatpush1.bf16.msra.mxu0 0
        %3497 = vmatprep.subr.bf16.mxu0 0
        %3498 = vmatpush1.bf16.msra.mxu0 0
        %3499 = vmatprep.subr.bf16.mxu0 0
        %3500 = vmatpush1.bf16.msra.mxu0 0
        %3501 = vmatprep.subr.bf16.mxu0 0
        %3502 = vmatpush1.bf16.msra.mxu0 0
        %3503 = vmatprep.subr.bf16.mxu0 0
        %3504 = vmatpush1.bf16.msra.mxu0 0
        %3505 = vmatprep.subr.bf16.mxu0 0
        %3506 = vmatpush1.bf16.msra.mxu0 0
        %3507 = vmatprep.subr.bf16.mxu0 0
        %3508 = vmatpush1.bf16.msra.mxu0 0
        %3509 = vmatprep.subr.bf16.mxu0 0
        %3510 = vmatpush1.bf16.msra.mxu0 0
        %3511 = vmatprep.subr.bf16.mxu0 0
        %3512 = vmatpush1.bf16.msra.mxu0 0
        %3513 = vmatprep.subr.bf16.mxu0 0
        %3514 = vmatpush1.bf16.msra.mxu0 0
        %3515 = vmatprep.subr.bf16.mxu0 0
        %3516 = vmatpush1.bf16.msra.mxu0 0
        %3517 = vmatprep.subr.bf16.mxu0 0
        %3518 = vmatpush1.bf16.msra.mxu0 0
        %3519 = vmatprep.subr.bf16.mxu0 0
        %3520 = vmatpush1.bf16.msra.mxu0 0
        %3521 = vmatprep.subr.bf16.mxu0 0
        %3522 = vmatpush1.bf16.msra.mxu0 0
        %3523 = vmatprep.subr.bf16.mxu0 0
        %3524 = vmatpush1.bf16.msra.mxu0 0
        %3525 = vmatprep.mubr.bf16.mxu0 0
        %3526 = vmatmul.mubr.bf16.gmra.mrb[0].mxu0 %v3491
        %v3527 = vpop.f32.mrb[0].mxu0
        %v3528 = vadd.f32 0.0, %v3527
        %v3529 = vpop.f32.mrb[0].mxu0
        %v3530 = vpop.f32.mrb[0].mxu0
        %v3531 = vadd.f32 0.0, %v3530
        %v3532 = vpop.f32.mrb[0].mxu0
        %3533 = vdwg.mxu0
        %v3535 = vsel %vm1318, %v3401, 0
        %3537 = vmatprep.subr.bf16.mxu0 0
        %3538 = vmatpush1.bf16.msra.mxu0 %v3113
        %3539 = vmatprep.subr.bf16.mxu0 0
        %3540 = vmatpush1.bf16.msra.mxu0 0
        %3541 = vmatprep.subr.bf16.mxu0 0
        %3542 = vmatpush1.bf16.msra.mxu0 0
        %3543 = vmatprep.subr.bf16.mxu0 0
        %3544 = vmatpush1.bf16.msra.mxu0 0
        %3545 = vmatprep.subr.bf16.mxu0 0
        %3546 = vmatpush1.bf16.msra.mxu0 0
        %3547 = vmatprep.subr.bf16.mxu0 0
        %3548 = vmatpush1.bf16.msra.mxu0 0
        %3549 = vmatprep.subr.bf16.mxu0 0
        %3550 = vmatpush1.bf16.msra.mxu0 0
        %3551 = vmatprep.subr.bf16.mxu0 0
        %3552 = vmatpush1.bf16.msra.mxu0 0
        %3553 = vmatprep.subr.bf16.mxu0 0
        %3554 = vmatpush1.bf16.msra.mxu0 0
        %3555 = vmatprep.subr.bf16.mxu0 0
        %3556 = vmatpush1.bf16.msra.mxu0 0
        %3557 = vmatprep.subr.bf16.mxu0 0
        %3558 = vmatpush1.bf16.msra.mxu0 0
        %3559 = vmatprep.subr.bf16.mxu0 0
        %3560 = vmatpush1.bf16.msra.mxu0 0
        %3561 = vmatprep.subr.bf16.mxu0 0
        %3562 = vmatpush1.bf16.msra.mxu0 0
        %3563 = vmatprep.subr.bf16.mxu0 0
        %3564 = vmatpush1.bf16.msra.mxu0 0
        %3565 = vmatprep.subr.bf16.mxu0 0
        %3566 = vmatpush1.bf16.msra.mxu0 0
        %3567 = vmatprep.subr.bf16.mxu0 0
        %3568 = vmatpush1.bf16.msra.mxu0 0
        %3569 = vmatprep.mubr.bf16.mxu0 0
        %3570 = vmatmul.mubr.bf16.gmra.mrb[0].mxu0 %v3535
        %v3571 = vpop.f32.mrb[0].mxu0
        %v3572 = vadd.f32 0.0, %v3571
        %v3573 = vpop.f32.mrb[0].mxu0
        %v3574 = vpop.f32.mrb[0].mxu0
        %v3575 = vadd.f32 0.0, %v3574
        %v3576 = vpop.f32.mrb[0].mxu0
        %3577 = vdwg.mxu0
        %v3578 = vpack.c.bf16 %v3443, %v3440
        %v3579 = vpack.c.bf16 %v3487, %v3484
        %v3580 = vpack.c.bf16 %v3531, %v3528
        %v3581 = vpack.c.bf16 %v3575, %v3572
        %s3582 = scalar_lea.vmem %s9, 32
        %v3583 = vld [vmem:[%s3582] sm:$0xf]
        %v3584 = vld [vmem:[%s3582 + $0x4] sm:$0xf]
        %v3585 = vld [vmem:[%s3582 + $0x8] sm:$0xf]
        %v3586 = vld [vmem:[%s3582 + $0xc] sm:$0xf]
        %v3591 = vunpack.c.l.b16 %v3583
        %v3592 = vunpack.c.l.b16 %v3584
        %v3593 = vunpack.c.l.b16 %v3585
        %v3594 = vunpack.c.l.b16 %v3586
        %v3595 = vpack.c.b16 %v3592, %v3591
        %v3596 = vpack.c.b16 %v3594, %v3593
        %v3600 = vsel %vm1093, %v3578, 0
        %v3603 = vsel %vm1093, %v3579, 0
        %v3606 = vsel %vm1093, %v3580, 0
        %v3609 = vsel %vm1093, %v3581, 0
        %3611 = vmatprep.subr.bf16.mxu0 0
        %3612 = vmatpush1.bf16.msra.mxu0 %v3595
        %3613 = vmatprep.subr.bf16.mxu0 0
        %3614 = vmatpush1.bf16.msra.mxu0 %v3596
        %3615 = vmatprep.subr.bf16.mxu0 0
        %3616 = vmatpush1.bf16.msra.mxu0 0
        %3617 = vmatprep.subr.bf16.mxu0 0
        %3618 = vmatpush1.bf16.msra.mxu0 0
        %3619 = vmatprep.subr.bf16.mxu0 0
        %3620 = vmatpush1.bf16.msra.mxu0 0
        %3621 = vmatprep.subr.bf16.mxu0 0
        %3622 = vmatpush1.bf16.msra.mxu0 0
        %3623 = vmatprep.subr.bf16.mxu0 0
        %3624 = vmatpush1.bf16.msra.mxu0 0
        %3625 = vmatprep.subr.bf16.mxu0 0
        %3626 = vmatpush1.bf16.msra.mxu0 0
        %3627 = vmatprep.subr.bf16.mxu0 0
        %3628 = vmatpush1.bf16.msra.mxu0 0
        %3629 = vmatprep.subr.bf16.mxu0 0
        %3630 = vmatpush1.bf16.msra.mxu0 0
        %3631 = vmatprep.subr.bf16.mxu0 0
        %3632 = vmatpush1.bf16.msra.mxu0 0
        %3633 = vmatprep.subr.bf16.mxu0 0
        %3634 = vmatpush1.bf16.msra.mxu0 0
        %3635 = vmatprep.subr.bf16.mxu0 0
        %3636 = vmatpush1.bf16.msra.mxu0 0
        %3637 = vmatprep.subr.bf16.mxu0 0
        %3638 = vmatpush1.bf16.msra.mxu0 0
        %3639 = vmatprep.subr.bf16.mxu0 0
        %3640 = vmatpush1.bf16.msra.mxu0 0
        %3641 = vmatprep.subr.bf16.mxu0 0
        %3642 = vmatpush1.bf16.msra.mxu0 0
        %3643 = vmatprep.mubr.bf16.mxu0 0
        %3644 = vmatmul.mubr.bf16.gmra.mrb[0].mxu0 %v3600
        %v3645 = vpop.f32.mrb[0].mxu0
        %v3646 = vadd.f32 0.0, %v3645
        %v3647 = vpop.f32.mrb[0].mxu0
        %v3648 = vpop.f32.mrb[0].mxu0
        %v3649 = vadd.f32 0.0, %v3648
        %v3650 = vpop.f32.mrb[0].mxu0
        %3651 = vmatprep.mubr.bf16.mxu0 0
        %3652 = vmatmul.mubr.bf16.gmra.mrb[0].mxu0 %v3603
        %v3653 = vpop.f32.mrb[0].mxu0
        %v3654 = vadd.f32 0.0, %v3653
        %v3655 = vpop.f32.mrb[0].mxu0
        %v3656 = vpop.f32.mrb[0].mxu0
        %v3657 = vadd.f32 0.0, %v3656
        %v3658 = vpop.f32.mrb[0].mxu0
        %3659 = vmatprep.mubr.bf16.mxu0 0
        %3660 = vmatmul.mubr.bf16.gmra.mrb[0].mxu0 %v3606
        %v3661 = vpop.f32.mrb[0].mxu0
        %v3662 = vadd.f32 0.0, %v3661
        %v3663 = vpop.f32.mrb[0].mxu0
        %v3664 = vpop.f32.mrb[0].mxu0
        %v3665 = vadd.f32 0.0, %v3664
        %v3666 = vpop.f32.mrb[0].mxu0
        %3667 = vmatprep.mubr.bf16.mxu0 0
        %3668 = vmatmul.mubr.bf16.gmra.mrb[0].mxu0 %v3609
        %v3669 = vpop.f32.mrb[0].mxu0
        %v3670 = vadd.f32 0.0, %v3669
        %v3671 = vpop.f32.mrb[0].mxu0
        %v3672 = vpop.f32.mrb[0].mxu0
        %v3673 = vadd.f32 0.0, %v3672
        %v3674 = vpop.f32.mrb[0].mxu0
        %3675 = vdwg.mxu0
        %v3676 = vadd.f32 %v2650, %v3646
        %v3677 = vadd.f32 %v2653, %v3649
        %v3678 = vadd.f32 %v2658, %v3654
        %v3679 = vadd.f32 %v2661, %v3657
        %v3680 = vadd.f32 %v2666, %v3662
        %v3681 = vadd.f32 %v2669, %v3665
        %v3682 = vadd.f32 %v2674, %v3670
        %v3683 = vadd.f32 %v2677, %v3673
        %s3684 = scalar_lea.vmem %s3, 192
        %v3685 = vld [vmem:[%s3684] sm:$0xf]
        %v3686 = vld [vmem:[%s3684 + $0x4] sm:$0xf]
        %v3687 = vld [vmem:[%s3684 + $0x8] sm:$0xf]
        %v3688 = vld [vmem:[%s3684 + $0xc] sm:$0xf]
        %v3689 = vld [vmem:[%s3684 + $0x10] sm:$0xf]
        %v3690 = vld [vmem:[%s3684 + $0x14] sm:$0xf]
        %v3691 = vld [vmem:[%s3684 + $0x18] sm:$0xf]
        %v3692 = vld [vmem:[%s3684 + $0x1c] sm:$0xf]
        %v3693 = vld [vmem:[%s3684 + $0x20] sm:$0xf]
        %v3694 = vld [vmem:[%s3684 + $0x24] sm:$0xf]
        %v3695 = vld [vmem:[%s3684 + $0x28] sm:$0xf]
        %v3696 = vld [vmem:[%s3684 + $0x2c] sm:$0xf]
        %v3697 = vld [vmem:[%s3684 + $0x30] sm:$0xf]
        %v3698 = vld [vmem:[%s3684 + $0x34] sm:$0xf]
        %v3699 = vld [vmem:[%s3684 + $0x38] sm:$0xf]
        %v3700 = vld [vmem:[%s3684 + $0x3c] sm:$0xf]
        %s3701 = scalar_lea.vmem %s4, 3
        %v3702 = vld [vmem:[%s3701] sm:$0x1]
        %v3704 = vlaneseq
        %v3705 = vshrl.u32 %v3704, 7
        %v3706 = vsub.s32 0, %v3705
        %v3707 = vrot.slane %v3702, %v3706
        %v3725 = vunpack.c.l.b16 %v3685
        %v3726 = vunpack.c.l.b16 %v3686
        %v3727 = vunpack.c.l.b16 %v3687
        %v3728 = vunpack.c.l.b16 %v3688
        %v3729 = vunpack.c.l.b16 %v3689
        %v3730 = vunpack.c.l.b16 %v3690
        %v3731 = vunpack.c.l.b16 %v3691
        %v3732 = vunpack.c.l.b16 %v3692
        %v3733 = vunpack.c.l.b16 %v3693
        %v3734 = vunpack.c.l.b16 %v3694
        %v3735 = vunpack.c.l.b16 %v3695
        %v3736 = vunpack.c.l.b16 %v3696
        %v3737 = vunpack.c.l.b16 %v3697
        %v3738 = vunpack.c.l.b16 %v3698
        %v3739 = vunpack.c.l.b16 %v3699
        %v3740 = vunpack.c.l.b16 %v3700
        %v3741 = vpack.c.b16 %v3726, %v3725
        %v3742 = vpack.c.b16 %v3728, %v3727
        %v3743 = vpack.c.b16 %v3730, %v3729
        %v3744 = vpack.c.b16 %v3732, %v3731
        %v3745 = vpack.c.b16 %v3734, %v3733
        %v3746 = vpack.c.b16 %v3736, %v3735
        %v3747 = vpack.c.b16 %v3738, %v3737
        %v3748 = vpack.c.b16 %v3740, %v3739
        %3757 = vmatprep.subr.bf16.mxu0 0
        %3758 = vmatpush1.bf16.msra.mxu0 %v3741
        %3759 = vmatprep.subr.bf16.mxu0 0
        %3760 = vmatpush1.bf16.msra.mxu0 %v3742
        %3761 = vmatprep.subr.bf16.mxu0 0
        %3762 = vmatpush1.bf16.msra.mxu0 %v3743
        %3763 = vmatprep.subr.bf16.mxu0 0
        %3764 = vmatpush1.bf16.msra.mxu0 %v3744
        %3765 = vmatprep.subr.bf16.mxu0 0
        %3766 = vmatpush1.bf16.msra.mxu0 %v3745
        %3767 = vmatprep.subr.bf16.mxu0 0
        %3768 = vmatpush1.bf16.msra.mxu0 %v3746
        %3769 = vmatprep.subr.bf16.mxu0 0
        %3770 = vmatpush1.bf16.msra.mxu0 %v3747
        %3771 = vmatprep.subr.bf16.mxu0 0
        %3772 = vmatpush1.bf16.msra.mxu0 %v3748
        %3773 = vmatprep.subr.bf16.mxu0 0
        %3774 = vmatpush1.bf16.msra.mxu0 0
        %3775 = vmatprep.subr.bf16.mxu0 0
        %3776 = vmatpush1.bf16.msra.mxu0 0
        %3777 = vmatprep.subr.bf16.mxu0 0
        %3778 = vmatpush1.bf16.msra.mxu0 0
        %3779 = vmatprep.subr.bf16.mxu0 0
        %3780 = vmatpush1.bf16.msra.mxu0 0
        %3781 = vmatprep.subr.bf16.mxu0 0
        %3782 = vmatpush1.bf16.msra.mxu0 0
        %3783 = vmatprep.subr.bf16.mxu0 0
        %3784 = vmatpush1.bf16.msra.mxu0 0
        %3785 = vmatprep.subr.bf16.mxu0 0
        %3786 = vmatpush1.bf16.msra.mxu0 0
        %3787 = vmatprep.subr.bf16.mxu0 0
        %3788 = vmatpush1.bf16.msra.mxu0 0
        %3789 = vmatprep.mubr.bf16.mxu0 0
        %3790 = vmatmul.mubr.bf16.gmra.mrb[0].mxu0 %v657
        %v3791 = vpop.f32.mrb[0].mxu0
        %v3792 = vadd.f32 %v3707, %v3791
        %v3793 = vpop.f32.mrb[0].mxu0
        %v3794 = vpop.f32.mrb[0].mxu0
        %v3795 = vadd.f32 %v3707, %v3794
        %v3796 = vpop.f32.mrb[0].mxu0
        %3797 = vmatprep.mubr.bf16.mxu0 0
        %3798 = vmatmul.mubr.bf16.gmra.mrb[0].mxu0 %v658
        %v3799 = vpop.f32.mrb[0].mxu0
        %v3800 = vadd.f32 %v3707, %v3799
        %v3801 = vpop.f32.mrb[0].mxu0
        %v3802 = vpop.f32.mrb[0].mxu0
        %v3803 = vadd.f32 %v3707, %v3802
        %v3804 = vpop.f32.mrb[0].mxu0
        %3805 = vmatprep.mubr.bf16.mxu0 0
        %3806 = vmatmul.mubr.bf16.gmra.mrb[0].mxu0 %v659
        %v3807 = vpop.f32.mrb[0].mxu0
        %v3808 = vadd.f32 %v3707, %v3807
        %v3809 = vpop.f32.mrb[0].mxu0
        %v3810 = vpop.f32.mrb[0].mxu0
        %v3811 = vadd.f32 %v3707, %v3810
        %v3812 = vpop.f32.mrb[0].mxu0
        %3813 = vmatprep.mubr.bf16.mxu0 0
        %3814 = vmatmul.mubr.bf16.gmra.mrb[0].mxu0 %v660
        %v3815 = vpop.f32.mrb[0].mxu0
        %v3816 = vadd.f32 %v3707, %v3815
        %v3817 = vpop.f32.mrb[0].mxu0
        %v3818 = vpop.f32.mrb[0].mxu0
        %v3819 = vadd.f32 %v3707, %v3818
        %v3820 = vpop.f32.mrb[0].mxu0
        %3821 = vdwg.mxu0
        %v3822 = vmul.f32 %v3792, 0.17677669
        %v3823 = vmul.f32 %v3795, 0.17677669
        %v3824 = vmul.f32 %v3800, 0.17677669
        %v3825 = vmul.f32 %v3803, 0.17677669
        %v3826 = vmul.f32 %v3808, 0.17677669
        %v3827 = vmul.f32 %v3811, 0.17677669
        %v3828 = vmul.f32 %v3816, 0.17677669
        %v3829 = vmul.f32 %v3819, 0.17677669
        %s3830 = scalar_lea.vmem %s5, 192
        %v3831 = vld [vmem:[%s3830] sm:$0xf]
        %v3832 = vld [vmem:[%s3830 + $0x4] sm:$0xf]
        %v3833 = vld [vmem:[%s3830 + $0x8] sm:$0xf]
        %v3834 = vld [vmem:[%s3830 + $0xc] sm:$0xf]
        %v3835 = vld [vmem:[%s3830 + $0x10] sm:$0xf]
        %v3836 = vld [vmem:[%s3830 + $0x14] sm:$0xf]
        %v3837 = vld [vmem:[%s3830 + $0x18] sm:$0xf]
        %v3838 = vld [vmem:[%s3830 + $0x1c] sm:$0xf]
        %v3839 = vld [vmem:[%s3830 + $0x20] sm:$0xf]
        %v3840 = vld [vmem:[%s3830 + $0x24] sm:$0xf]
        %v3841 = vld [vmem:[%s3830 + $0x28] sm:$0xf]
        %v3842 = vld [vmem:[%s3830 + $0x2c] sm:$0xf]
        %v3843 = vld [vmem:[%s3830 + $0x30] sm:$0xf]
        %v3844 = vld [vmem:[%s3830 + $0x34] sm:$0xf]
        %v3845 = vld [vmem:[%s3830 + $0x38] sm:$0xf]
        %v3846 = vld [vmem:[%s3830 + $0x3c] sm:$0xf]
        %s3847 = scalar_lea.vmem %s6, 3
        %v3848 = vld [vmem:[%s3847] sm:$0x1]
        %v3850 = vlaneseq
        %v3851 = vshrl.u32 %v3850, 7
        %v3852 = vsub.s32 0, %v3851
        %v3853 = vrot.slane %v3848, %v3852
        %v3871 = vunpack.c.l.b16 %v3831
        %v3872 = vunpack.c.l.b16 %v3832
        %v3873 = vunpack.c.l.b16 %v3833
        %v3874 = vunpack.c.l.b16 %v3834
        %v3875 = vunpack.c.l.b16 %v3835
        %v3876 = vunpack.c.l.b16 %v3836
        %v3877 = vunpack.c.l.b16 %v3837
        %v3878 = vunpack.c.l.b16 %v3838
        %v3879 = vunpack.c.l.b16 %v3839
        %v3880 = vunpack.c.l.b16 %v3840
        %v3881 = vunpack.c.l.b16 %v3841
        %v3882 = vunpack.c.l.b16 %v3842
        %v3883 = vunpack.c.l.b16 %v3843
        %v3884 = vunpack.c.l.b16 %v3844
        %v3885 = vunpack.c.l.b16 %v3845
        %v3886 = vunpack.c.l.b16 %v3846
        %v3887 = vpack.c.b16 %v3872, %v3871
        %v3888 = vpack.c.b16 %v3874, %v3873
        %v3889 = vpack.c.b16 %v3876, %v3875
        %v3890 = vpack.c.b16 %v3878, %v3877
        %v3891 = vpack.c.b16 %v3880, %v3879
        %v3892 = vpack.c.b16 %v3882, %v3881
        %v3893 = vpack.c.b16 %v3884, %v3883
        %v3894 = vpack.c.b16 %v3886, %v3885
        %3903 = vmatprep.subr.bf16.mxu0 0
        %3904 = vmatpush1.bf16.msra.mxu0 %v3887
        %3905 = vmatprep.subr.bf16.mxu0 0
        %3906 = vmatpush1.bf16.msra.mxu0 %v3888
        %3907 = vmatprep.subr.bf16.mxu0 0
        %3908 = vmatpush1.bf16.msra.mxu0 %v3889
        %3909 = vmatprep.subr.bf16.mxu0 0
        %3910 = vmatpush1.bf16.msra.mxu0 %v3890
        %3911 = vmatprep.subr.bf16.mxu0 0
        %3912 = vmatpush1.bf16.msra.mxu0 %v3891
        %3913 = vmatprep.subr.bf16.mxu0 0
        %3914 = vmatpush1.bf16.msra.mxu0 %v3892
        %3915 = vmatprep.subr.bf16.mxu0 0
        %3916 = vmatpush1.bf16.msra.mxu0 %v3893
        %3917 = vmatprep.subr.bf16.mxu0 0
        %3918 = vmatpush1.bf16.msra.mxu0 %v3894
        %3919 = vmatprep.subr.bf16.mxu0 0
        %3920 = vmatpush1.bf16.msra.mxu0 0
        %3921 = vmatprep.subr.bf16.mxu0 0
        %3922 = vmatpush1.bf16.msra.mxu0 0
        %3923 = vmatprep.subr.bf16.mxu0 0
        %3924 = vmatpush1.bf16.msra.mxu0 0
        %3925 = vmatprep.subr.bf16.mxu0 0
        %3926 = vmatpush1.bf16.msra.mxu0 0
        %3927 = vmatprep.subr.bf16.mxu0 0
        %3928 = vmatpush1.bf16.msra.mxu0 0
        %3929 = vmatprep.subr.bf16.mxu0 0
        %3930 = vmatpush1.bf16.msra.mxu0 0
        %3931 = vmatprep.subr.bf16.mxu0 0
        %3932 = vmatpush1.bf16.msra.mxu0 0
        %3933 = vmatprep.subr.bf16.mxu0 0
        %3934 = vmatpush1.bf16.msra.mxu0 0
        %3935 = vmatprep.mubr.bf16.mxu0 0
        %3936 = vmatmul.mubr.bf16.gmra.mrb[0].mxu0 %v657
        %v3937 = vpop.f32.mrb[0].mxu0
        %v3938 = vadd.f32 %v3853, %v3937
        %v3939 = vpop.f32.mrb[0].mxu0
        %v3940 = vpop.f32.mrb[0].mxu0
        %v3941 = vadd.f32 %v3853, %v3940
        %v3942 = vpop.f32.mrb[0].mxu0
        %3943 = vmatprep.mubr.bf16.mxu0 0
        %3944 = vmatmul.mubr.bf16.gmra.mrb[0].mxu0 %v658
        %v3945 = vpop.f32.mrb[0].mxu0
        %v3946 = vadd.f32 %v3853, %v3945
        %v3947 = vpop.f32.mrb[0].mxu0
        %v3948 = vpop.f32.mrb[0].mxu0
        %v3949 = vadd.f32 %v3853, %v3948
        %v3950 = vpop.f32.mrb[0].mxu0
        %3951 = vmatprep.mubr.bf16.mxu0 0
        %3952 = vmatmul.mubr.bf16.gmra.mrb[0].mxu0 %v659
        %v3953 = vpop.f32.mrb[0].mxu0
        %v3954 = vadd.f32 %v3853, %v3953
        %v3955 = vpop.f32.mrb[0].mxu0
        %v3956 = vpop.f32.mrb[0].mxu0
        %v3957 = vadd.f32 %v3853, %v3956
        %v3958 = vpop.f32.mrb[0].mxu0
        %3959 = vmatprep.mubr.bf16.mxu0 0
        %3960 = vmatmul.mubr.bf16.gmra.mrb[0].mxu0 %v660
        %v3961 = vpop.f32.mrb[0].mxu0
        %v3962 = vadd.f32 %v3853, %v3961
        %v3963 = vpop.f32.mrb[0].mxu0
        %v3964 = vpop.f32.mrb[0].mxu0
        %v3965 = vadd.f32 %v3853, %v3964
        %v3966 = vpop.f32.mrb[0].mxu0
        %3967 = vdwg.mxu0
        %s3968 = scalar_lea.vmem %s7, 192
        %v3969 = vld [vmem:[%s3968] sm:$0xf]
        %v3970 = vld [vmem:[%s3968 + $0x4] sm:$0xf]
        %v3971 = vld [vmem:[%s3968 + $0x8] sm:$0xf]
        %v3972 = vld [vmem:[%s3968 + $0xc] sm:$0xf]
        %v3973 = vld [vmem:[%s3968 + $0x10] sm:$0xf]
        %v3974 = vld [vmem:[%s3968 + $0x14] sm:$0xf]
        %v3975 = vld [vmem:[%s3968 + $0x18] sm:$0xf]
        %v3976 = vld [vmem:[%s3968 + $0x1c] sm:$0xf]
        %v3977 = vld [vmem:[%s3968 + $0x20] sm:$0xf]
        %v3978 = vld [vmem:[%s3968 + $0x24] sm:$0xf]
        %v3979 = vld [vmem:[%s3968 + $0x28] sm:$0xf]
        %v3980 = vld [vmem:[%s3968 + $0x2c] sm:$0xf]
        %v3981 = vld [vmem:[%s3968 + $0x30] sm:$0xf]
        %v3982 = vld [vmem:[%s3968 + $0x34] sm:$0xf]
        %v3983 = vld [vmem:[%s3968 + $0x38] sm:$0xf]
        %v3984 = vld [vmem:[%s3968 + $0x3c] sm:$0xf]
        %s3985 = scalar_lea.vmem %s8, 3
        %v3986 = vld [vmem:[%s3985] sm:$0x1]
        %v3988 = vlaneseq
        %v3989 = vshrl.u32 %v3988, 7
        %v3990 = vsub.s32 0, %v3989
        %v3991 = vrot.slane %v3986, %v3990
        %v4009 = vunpack.c.l.b16 %v3969
        %v4010 = vunpack.c.l.b16 %v3970
        %v4011 = vunpack.c.l.b16 %v3971
        %v4012 = vunpack.c.l.b16 %v3972
        %v4013 = vunpack.c.l.b16 %v3973
        %v4014 = vunpack.c.l.b16 %v3974
        %v4015 = vunpack.c.l.b16 %v3975
        %v4016 = vunpack.c.l.b16 %v3976
        %v4017 = vunpack.c.l.b16 %v3977
        %v4018 = vunpack.c.l.b16 %v3978
        %v4019 = vunpack.c.l.b16 %v3979
        %v4020 = vunpack.c.l.b16 %v3980
        %v4021 = vunpack.c.l.b16 %v3981
        %v4022 = vunpack.c.l.b16 %v3982
        %v4023 = vunpack.c.l.b16 %v3983
        %v4024 = vunpack.c.l.b16 %v3984
        %v4025 = vpack.c.b16 %v4010, %v4009
        %v4026 = vpack.c.b16 %v4012, %v4011
        %v4027 = vpack.c.b16 %v4014, %v4013
        %v4028 = vpack.c.b16 %v4016, %v4015
        %v4029 = vpack.c.b16 %v4018, %v4017
        %v4030 = vpack.c.b16 %v4020, %v4019
        %v4031 = vpack.c.b16 %v4022, %v4021
        %v4032 = vpack.c.b16 %v4024, %v4023
        %4041 = vmatprep.subr.bf16.mxu0 0
        %4042 = vmatpush1.bf16.msra.mxu0 %v4025
        %4043 = vmatprep.subr.bf16.mxu0 0
        %4044 = vmatpush1.bf16.msra.mxu0 %v4026
        %4045 = vmatprep.subr.bf16.mxu0 0
        %4046 = vmatpush1.bf16.msra.mxu0 %v4027
        %4047 = vmatprep.subr.bf16.mxu0 0
        %4048 = vmatpush1.bf16.msra.mxu0 %v4028
        %4049 = vmatprep.subr.bf16.mxu0 0
        %4050 = vmatpush1.bf16.msra.mxu0 %v4029
        %4051 = vmatprep.subr.bf16.mxu0 0
        %4052 = vmatpush1.bf16.msra.mxu0 %v4030
        %4053 = vmatprep.subr.bf16.mxu0 0
        %4054 = vmatpush1.bf16.msra.mxu0 %v4031
        %4055 = vmatprep.subr.bf16.mxu0 0
        %4056 = vmatpush1.bf16.msra.mxu0 %v4032
        %4057 = vmatprep.subr.bf16.mxu0 0
        %4058 = vmatpush1.bf16.msra.mxu0 0
        %4059 = vmatprep.subr.bf16.mxu0 0
        %4060 = vmatpush1.bf16.msra.mxu0 0
        %4061 = vmatprep.subr.bf16.mxu0 0
        %4062 = vmatpush1.bf16.msra.mxu0 0
        %4063 = vmatprep.subr.bf16.mxu0 0
        %4064 = vmatpush1.bf16.msra.mxu0 0
        %4065 = vmatprep.subr.bf16.mxu0 0
        %4066 = vmatpush1.bf16.msra.mxu0 0
        %4067 = vmatprep.subr.bf16.mxu0 0
        %4068 = vmatpush1.bf16.msra.mxu0 0
        %4069 = vmatprep.subr.bf16.mxu0 0
        %4070 = vmatpush1.bf16.msra.mxu0 0
        %4071 = vmatprep.subr.bf16.mxu0 0
        %4072 = vmatpush1.bf16.msra.mxu0 0
        %4073 = vmatprep.mubr.bf16.mxu0 0
        %4074 = vmatmul.mubr.bf16.gmra.mrb[0].mxu0 %v657
        %v4075 = vpop.f32.mrb[0].mxu0
        %v4076 = vadd.f32 %v3991, %v4075
        %v4077 = vpop.f32.mrb[0].mxu0
        %v4078 = vpop.f32.mrb[0].mxu0
        %v4079 = vadd.f32 %v3991, %v4078
        %v4080 = vpop.f32.mrb[0].mxu0
        %4081 = vmatprep.mubr.bf16.mxu0 0
        %4082 = vmatmul.mubr.bf16.gmra.mrb[0].mxu0 %v658
        %v4083 = vpop.f32.mrb[0].mxu0
        %v4084 = vadd.f32 %v3991, %v4083
        %v4085 = vpop.f32.mrb[0].mxu0
        %v4086 = vpop.f32.mrb[0].mxu0
        %v4087 = vadd.f32 %v3991, %v4086
        %v4088 = vpop.f32.mrb[0].mxu0
        %4089 = vmatprep.mubr.bf16.mxu0 0
        %4090 = vmatmul.mubr.bf16.gmra.mrb[0].mxu0 %v659
        %v4091 = vpop.f32.mrb[0].mxu0
        %v4092 = vadd.f32 %v3991, %v4091
        %v4093 = vpop.f32.mrb[0].mxu0
        %v4094 = vpop.f32.mrb[0].mxu0
        %v4095 = vadd.f32 %v3991, %v4094
        %v4096 = vpop.f32.mrb[0].mxu0
        %4097 = vmatprep.mubr.bf16.mxu0 0
        %4098 = vmatmul.mubr.bf16.gmra.mrb[0].mxu0 %v660
        %v4099 = vpop.f32.mrb[0].mxu0
        %v4100 = vadd.f32 %v3991, %v4099
        %v4101 = vpop.f32.mrb[0].mxu0
        %v4102 = vpop.f32.mrb[0].mxu0
        %v4103 = vadd.f32 %v3991, %v4102
        %v4104 = vpop.f32.mrb[0].mxu0
        %4105 = vdwg.mxu0
        %v4106 = vpack.c.bf16 %v3823, %v3822
        %v4107 = vpack.c.bf16 %v3825, %v3824
        %v4108 = vpack.c.bf16 %v3827, %v3826
        %v4109 = vpack.c.bf16 %v3829, %v3828
        %v4110 = vpack.c.bf16 %v3941, %v3938
        %v4111 = vpack.c.bf16 %v3949, %v3946
        %v4112 = vpack.c.bf16 %v3957, %v3954
        %v4113 = vpack.c.bf16 %v3965, %v3962
        %v4114 = vpack.c.bf16 %v4079, %v4076
        %v4115 = vpack.c.bf16 %v4087, %v4084
        %v4116 = vpack.c.bf16 %v4095, %v4092
        %v4117 = vpack.c.bf16 %v4103, %v4100
        %v4119 = vsel %vm1093, %v4106, 0
        %v4122 = vsel %vm1093, %v4110, 0
        %4124 = vmatprep.subr.bf16.mxu0 0
        %4125 = vmatpush1.bf16.xpose.msra.mxu0 %v4122
        %4126 = vmatprep.subr.bf16.mxu0 0
        %4127 = vmatpush1.bf16.xpose.msra.mxu0 0
        %4128 = vmatprep.subr.bf16.mxu0 0
        %4129 = vmatpush1.bf16.xpose.msra.mxu0 0
        %4130 = vmatprep.subr.bf16.mxu0 0
        %4131 = vmatpush1.bf16.xpose.msra.mxu0 0
        %4132 = vmatprep.subr.bf16.mxu0 0
        %4133 = vmatpush1.bf16.xpose.msra.mxu0 0
        %4134 = vmatprep.subr.bf16.mxu0 0
        %4135 = vmatpush1.bf16.xpose.msra.mxu0 0
        %4136 = vmatprep.subr.bf16.mxu0 0
        %4137 = vmatpush1.bf16.xpose.msra.mxu0 0
        %4138 = vmatprep.subr.bf16.mxu0 0
        %4139 = vmatpush1.bf16.xpose.msra.mxu0 0
        %4140 = vmatprep.subr.bf16.mxu0 0
        %4141 = vmatpush1.bf16.xpose.msra.mxu0 0
        %4142 = vmatprep.subr.bf16.mxu0 0
        %4143 = vmatpush1.bf16.xpose.msra.mxu0 0
        %4144 = vmatprep.subr.bf16.mxu0 0
        %4145 = vmatpush1.bf16.xpose.msra.mxu0 0
        %4146 = vmatprep.subr.bf16.mxu0 0
        %4147 = vmatpush1.bf16.xpose.msra.mxu0 0
        %4148 = vmatprep.subr.bf16.mxu0 0
        %4149 = vmatpush1.bf16.xpose.msra.mxu0 0
        %4150 = vmatprep.subr.bf16.mxu0 0
        %4151 = vmatpush1.bf16.xpose.msra.mxu0 0
        %4152 = vmatprep.subr.bf16.mxu0 0
        %4153 = vmatpush1.bf16.xpose.msra.mxu0 0
        %4154 = vmatprep.subr.bf16.mxu0 0
        %4155 = vmatpush1.bf16.xpose.msra.mxu0 0
        %4156 = vmatprep.mubr.bf16.mxu0 0
        %4157 = vmatmul.mubr.bf16.gmra.mrb[0].mxu0 %v4119
        %v4158 = vpop.f32.mrb[0].mxu0
        %v4159 = vadd.f32 0.0, %v4158
        %v4160 = vpop.f32.mrb[0].mxu0
        %v4161 = vpop.f32.mrb[0].mxu0
        %v4162 = vadd.f32 0.0, %v4161
        %v4163 = vpop.f32.mrb[0].mxu0
        %4164 = vdwg.mxu0
        %v4166 = vsel %vm1093, %v4107, 0
        %v4169 = vsel %vm1093, %v4111, 0
        %4171 = vmatprep.subr.bf16.mxu0 0
        %4172 = vmatpush1.bf16.xpose.msra.mxu0 %v4169
        %4173 = vmatprep.subr.bf16.mxu0 0
        %4174 = vmatpush1.bf16.xpose.msra.mxu0 0
        %4175 = vmatprep.subr.bf16.mxu0 0
        %4176 = vmatpush1.bf16.xpose.msra.mxu0 0
        %4177 = vmatprep.subr.bf16.mxu0 0
        %4178 = vmatpush1.bf16.xpose.msra.mxu0 0
        %4179 = vmatprep.subr.bf16.mxu0 0
        %4180 = vmatpush1.bf16.xpose.msra.mxu0 0
        %4181 = vmatprep.subr.bf16.mxu0 0
        %4182 = vmatpush1.bf16.xpose.msra.mxu0 0
        %4183 = vmatprep.subr.bf16.mxu0 0
        %4184 = vmatpush1.bf16.xpose.msra.mxu0 0
        %4185 = vmatprep.subr.bf16.mxu0 0
        %4186 = vmatpush1.bf16.xpose.msra.mxu0 0
        %4187 = vmatprep.subr.bf16.mxu0 0
        %4188 = vmatpush1.bf16.xpose.msra.mxu0 0
        %4189 = vmatprep.subr.bf16.mxu0 0
        %4190 = vmatpush1.bf16.xpose.msra.mxu0 0
        %4191 = vmatprep.subr.bf16.mxu0 0
        %4192 = vmatpush1.bf16.xpose.msra.mxu0 0
        %4193 = vmatprep.subr.bf16.mxu0 0
        %4194 = vmatpush1.bf16.xpose.msra.mxu0 0
        %4195 = vmatprep.subr.bf16.mxu0 0
        %4196 = vmatpush1.bf16.xpose.msra.mxu0 0
        %4197 = vmatprep.subr.bf16.mxu0 0
        %4198 = vmatpush1.bf16.xpose.msra.mxu0 0
        %4199 = vmatprep.subr.bf16.mxu0 0
        %4200 = vmatpush1.bf16.xpose.msra.mxu0 0
        %4201 = vmatprep.subr.bf16.mxu0 0
        %4202 = vmatpush1.bf16.xpose.msra.mxu0 0
        %4203 = vmatprep.mubr.bf16.mxu0 0
        %4204 = vmatmul.mubr.bf16.gmra.mrb[0].mxu0 %v4166
        %v4205 = vpop.f32.mrb[0].mxu0
        %v4206 = vadd.f32 0.0, %v4205
        %v4207 = vpop.f32.mrb[0].mxu0
        %v4208 = vpop.f32.mrb[0].mxu0
        %v4209 = vadd.f32 0.0, %v4208
        %v4210 = vpop.f32.mrb[0].mxu0
        %4211 = vdwg.mxu0
        %v4213 = vsel %vm1093, %v4108, 0
        %v4216 = vsel %vm1093, %v4112, 0
        %4218 = vmatprep.subr.bf16.mxu0 0
        %4219 = vmatpush1.bf16.xpose.msra.mxu0 %v4216
        %4220 = vmatprep.subr.bf16.mxu0 0
        %4221 = vmatpush1.bf16.xpose.msra.mxu0 0
        %4222 = vmatprep.subr.bf16.mxu0 0
        %4223 = vmatpush1.bf16.xpose.msra.mxu0 0
        %4224 = vmatprep.subr.bf16.mxu0 0
        %4225 = vmatpush1.bf16.xpose.msra.mxu0 0
        %4226 = vmatprep.subr.bf16.mxu0 0
        %4227 = vmatpush1.bf16.xpose.msra.mxu0 0
        %4228 = vmatprep.subr.bf16.mxu0 0
        %4229 = vmatpush1.bf16.xpose.msra.mxu0 0
        %4230 = vmatprep.subr.bf16.mxu0 0
        %4231 = vmatpush1.bf16.xpose.msra.mxu0 0
        %4232 = vmatprep.subr.bf16.mxu0 0
        %4233 = vmatpush1.bf16.xpose.msra.mxu0 0
        %4234 = vmatprep.subr.bf16.mxu0 0
        %4235 = vmatpush1.bf16.xpose.msra.mxu0 0
        %4236 = vmatprep.subr.bf16.mxu0 0
        %4237 = vmatpush1.bf16.xpose.msra.mxu0 0
        %4238 = vmatprep.subr.bf16.mxu0 0
        %4239 = vmatpush1.bf16.xpose.msra.mxu0 0
        %4240 = vmatprep.subr.bf16.mxu0 0
        %4241 = vmatpush1.bf16.xpose.msra.mxu0 0
        %4242 = vmatprep.subr.bf16.mxu0 0
        %4243 = vmatpush1.bf16.xpose.msra.mxu0 0
        %4244 = vmatprep.subr.bf16.mxu0 0
        %4245 = vmatpush1.bf16.xpose.msra.mxu0 0
        %4246 = vmatprep.subr.bf16.mxu0 0
        %4247 = vmatpush1.bf16.xpose.msra.mxu0 0
        %4248 = vmatprep.subr.bf16.mxu0 0
        %4249 = vmatpush1.bf16.xpose.msra.mxu0 0
        %4250 = vmatprep.mubr.bf16.mxu0 0
        %4251 = vmatmul.mubr.bf16.gmra.mrb[0].mxu0 %v4213
        %v4252 = vpop.f32.mrb[0].mxu0
        %v4253 = vadd.f32 0.0, %v4252
        %v4254 = vpop.f32.mrb[0].mxu0
        %v4255 = vpop.f32.mrb[0].mxu0
        %v4256 = vadd.f32 0.0, %v4255
        %v4257 = vpop.f32.mrb[0].mxu0
        %4258 = vdwg.mxu0
        %v4260 = vsel %vm1093, %v4109, 0
        %v4263 = vsel %vm1093, %v4113, 0
        %4265 = vmatprep.subr.bf16.mxu0 0
        %4266 = vmatpush1.bf16.xpose.msra.mxu0 %v4263
        %4267 = vmatprep.subr.bf16.mxu0 0
        %4268 = vmatpush1.bf16.xpose.msra.mxu0 0
        %4269 = vmatprep.subr.bf16.mxu0 0
        %4270 = vmatpush1.bf16.xpose.msra.mxu0 0
        %4271 = vmatprep.subr.bf16.mxu0 0
        %4272 = vmatpush1.bf16.xpose.msra.mxu0 0
        %4273 = vmatprep.subr.bf16.mxu0 0
        %4274 = vmatpush1.bf16.xpose.msra.mxu0 0
        %4275 = vmatprep.subr.bf16.mxu0 0
        %4276 = vmatpush1.bf16.xpose.msra.mxu0 0
        %4277 = vmatprep.subr.bf16.mxu0 0
        %4278 = vmatpush1.bf16.xpose.msra.mxu0 0
        %4279 = vmatprep.subr.bf16.mxu0 0
        %4280 = vmatpush1.bf16.xpose.msra.mxu0 0
        %4281 = vmatprep.subr.bf16.mxu0 0
        %4282 = vmatpush1.bf16.xpose.msra.mxu0 0
        %4283 = vmatprep.subr.bf16.mxu0 0
        %4284 = vmatpush1.bf16.xpose.msra.mxu0 0
        %4285 = vmatprep.subr.bf16.mxu0 0
        %4286 = vmatpush1.bf16.xpose.msra.mxu0 0
        %4287 = vmatprep.subr.bf16.mxu0 0
        %4288 = vmatpush1.bf16.xpose.msra.mxu0 0
        %4289 = vmatprep.subr.bf16.mxu0 0
        %4290 = vmatpush1.bf16.xpose.msra.mxu0 0
        %4291 = vmatprep.subr.bf16.mxu0 0
        %4292 = vmatpush1.bf16.xpose.msra.mxu0 0
        %4293 = vmatprep.subr.bf16.mxu0 0
        %4294 = vmatpush1.bf16.xpose.msra.mxu0 0
        %4295 = vmatprep.subr.bf16.mxu0 0
        %4296 = vmatpush1.bf16.xpose.msra.mxu0 0
        %4297 = vmatprep.mubr.bf16.mxu0 0
        %4298 = vmatmul.mubr.bf16.gmra.mrb[0].mxu0 %v4260
        %v4299 = vpop.f32.mrb[0].mxu0
        %v4300 = vadd.f32 0.0, %v4299
        %v4301 = vpop.f32.mrb[0].mxu0
        %v4302 = vpop.f32.mrb[0].mxu0
        %v4303 = vadd.f32 0.0, %v4302
        %v4304 = vpop.f32.mrb[0].mxu0
        %4305 = vdwg.mxu0
        %v4306 = vsel %vm1306, -1e+20, %v4159
        %v4307 = vsel %vm1306, -1e+20, %v4162
        %v4308 = vsel %vm1307, -1e+20, %v4206
        %v4309 = vsel %vm1307, -1e+20, %v4209
        %v4310 = vsel %vm1308, -1e+20, %v4253
        %v4311 = vsel %vm1308, -1e+20, %v4256
        %v4312 = vsel %vm1309, -1e+20, %v4300
        %v4313 = vsel %vm1309, -1e+20, %v4303
        %v4314 = vsel %vm1318, %v4306, -inf
        %4315 = vmax.xlane.f32.xlu0 %v4314
        %v4316 = vpop.xlane.xlu0 %4315
        %v4317 = vsel %vm1318, %v4307, -inf
        %4318 = vmax.xlane.f32.xlu0 %v4317
        %v4319 = vpop.xlane.xlu0 %4318
        %v4320 = vsel %vm1318, %v4308, -inf
        %4321 = vmax.xlane.f32.xlu0 %v4320
        %v4322 = vpop.xlane.xlu0 %4321
        %v4323 = vsel %vm1318, %v4309, -inf
        %4324 = vmax.xlane.f32.xlu0 %v4323
        %v4325 = vpop.xlane.xlu0 %4324
        %v4326 = vsel %vm1318, %v4310, -inf
        %4327 = vmax.xlane.f32.xlu0 %v4326
        %v4328 = vpop.xlane.xlu0 %4327
        %v4329 = vsel %vm1318, %v4311, -inf
        %4330 = vmax.xlane.f32.xlu0 %v4329
        %v4331 = vpop.xlane.xlu0 %4330
        %v4332 = vsel %vm1318, %v4312, -inf
        %4333 = vmax.xlane.f32.xlu0 %v4332
        %v4334 = vpop.xlane.xlu0 %4333
        %v4335 = vsel %vm1318, %v4313, -inf
        %4336 = vmax.xlane.f32.xlu0 %v4335
        %v4337 = vpop.xlane.xlu0 %4336
        %v4338 = vsub.f32 %v4306, %v4316
        %v4339 = vsub.f32 %v4307, %v4319
        %v4340 = vsub.f32 %v4308, %v4322
        %v4341 = vsub.f32 %v4309, %v4325
        %v4342 = vsub.f32 %v4310, %v4328
        %v4343 = vsub.f32 %v4311, %v4331
        %v4344 = vsub.f32 %v4312, %v4334
        %v4345 = vsub.f32 %v4313, %v4337
        %v4346 = vmul.f32 %v4338, 1.442695
        %v4347 = vpow.pop %v4346
        %v4348 = vmul.f32 %v4339, 1.442695
        %v4349 = vpow.pop %v4348
        %v4350 = vmul.f32 %v4340, 1.442695
        %v4351 = vpow.pop %v4350
        %v4352 = vmul.f32 %v4341, 1.442695
        %v4353 = vpow.pop %v4352
        %v4354 = vmul.f32 %v4342, 1.442695
        %v4355 = vpow.pop %v4354
        %v4356 = vmul.f32 %v4343, 1.442695
        %v4357 = vpow.pop %v4356
        %v4358 = vmul.f32 %v4344, 1.442695
        %v4359 = vpow.pop %v4358
        %v4360 = vmul.f32 %v4345, 1.442695
        %v4361 = vpow.pop %v4360
        %v4362 = vsel %vm1318, %v4347, 0.0
        %4363 = vadd.xlane.f32.xlu0 %v4362
        %v4364 = vpop.xlane.xlu0 %4363
        %v4365 = vsel %vm1318, %v4349, 0.0
        %4366 = vadd.xlane.f32.xlu0 %v4365
        %v4367 = vpop.xlane.xlu0 %4366
        %v4368 = vsel %vm1318, %v4351, 0.0
        %4369 = vadd.xlane.f32.xlu0 %v4368
        %v4370 = vpop.xlane.xlu0 %4369
        %v4371 = vsel %vm1318, %v4353, 0.0
        %4372 = vadd.xlane.f32.xlu0 %v4371
        %v4373 = vpop.xlane.xlu0 %4372
        %v4374 = vsel %vm1318, %v4355, 0.0
        %4375 = vadd.xlane.f32.xlu0 %v4374
        %v4376 = vpop.xlane.xlu0 %4375
        %v4377 = vsel %vm1318, %v4357, 0.0
        %4378 = vadd.xlane.f32.xlu0 %v4377
        %v4379 = vpop.xlane.xlu0 %4378
        %v4380 = vsel %vm1318, %v4359, 0.0
        %4381 = vadd.xlane.f32.xlu0 %v4380
        %v4382 = vpop.xlane.xlu0 %4381
        %v4383 = vsel %vm1318, %v4361, 0.0
        %4384 = vadd.xlane.f32.xlu0 %v4383
        %v4385 = vpop.xlane.xlu0 %4384
        %v4386 = vrcp.pop %v4364
        %v4387 = vrcp.pop %v4367
        %v4388 = vrcp.pop %v4370
        %v4389 = vrcp.pop %v4373
        %v4390 = vrcp.pop %v4376
        %v4391 = vrcp.pop %v4379
        %v4392 = vrcp.pop %v4382
        %v4393 = vrcp.pop %v4385
        %v4394 = vmul.f32 %v4347, %v4386
        %v4395 = vmul.f32 %v4349, %v4387
        %v4396 = vmul.f32 %v4351, %v4388
        %v4397 = vmul.f32 %v4353, %v4389
        %v4398 = vmul.f32 %v4355, %v4390
        %v4399 = vmul.f32 %v4357, %v4391
        %v4400 = vmul.f32 %v4359, %v4392
        %v4401 = vmul.f32 %v4361, %v4393
        %v4402 = vpack.c.bf16 %v4395, %v4394
        %v4403 = vpack.c.bf16 %v4397, %v4396
        %v4404 = vpack.c.bf16 %v4399, %v4398
        %v4405 = vpack.c.bf16 %v4401, %v4400
        %v4407 = vsel %vm1318, %v4402, 0
        %4409 = vmatprep.subr.bf16.mxu0 0
        %4410 = vmatpush1.bf16.msra.mxu0 %v4114
        %4411 = vmatprep.subr.bf16.mxu0 0
        %4412 = vmatpush1.bf16.msra.mxu0 0
        %4413 = vmatprep.subr.bf16.mxu0 0
        %4414 = vmatpush1.bf16.msra.mxu0 0
        %4415 = vmatprep.subr.bf16.mxu0 0
        %4416 = vmatpush1.bf16.msra.mxu0 0
        %4417 = vmatprep.subr.bf16.mxu0 0
        %4418 = vmatpush1.bf16.msra.mxu0 0
        %4419 = vmatprep.subr.bf16.mxu0 0
        %4420 = vmatpush1.bf16.msra.mxu0 0
        %4421 = vmatprep.subr.bf16.mxu0 0
        %4422 = vmatpush1.bf16.msra.mxu0 0
        %4423 = vmatprep.subr.bf16.mxu0 0
        %4424 = vmatpush1.bf16.msra.mxu0 0
        %4425 = vmatprep.subr.bf16.mxu0 0
        %4426 = vmatpush1.bf16.msra.mxu0 0
        %4427 = vmatprep.subr.bf16.mxu0 0
        %4428 = vmatpush1.bf16.msra.mxu0 0
        %4429 = vmatprep.subr.bf16.mxu0 0
        %4430 = vmatpush1.bf16.msra.mxu0 0
        %4431 = vmatprep.subr.bf16.mxu0 0
        %4432 = vmatpush1.bf16.msra.mxu0 0
        %4433 = vmatprep.subr.bf16.mxu0 0
        %4434 = vmatpush1.bf16.msra.mxu0 0
        %4435 = vmatprep.subr.bf16.mxu0 0
        %4436 = vmatpush1.bf16.msra.mxu0 0
        %4437 = vmatprep.subr.bf16.mxu0 0
        %4438 = vmatpush1.bf16.msra.mxu0 0
        %4439 = vmatprep.subr.bf16.mxu0 0
        %4440 = vmatpush1.bf16.msra.mxu0 0
        %4441 = vmatprep.mubr.bf16.mxu0 0
        %4442 = vmatmul.mubr.bf16.gmra.mrb[0].mxu0 %v4407
        %v4443 = vpop.f32.mrb[0].mxu0
        %v4444 = vadd.f32 0.0, %v4443
        %v4445 = vpop.f32.mrb[0].mxu0
        %v4446 = vpop.f32.mrb[0].mxu0
        %v4447 = vadd.f32 0.0, %v4446
        %v4448 = vpop.f32.mrb[0].mxu0
        %4449 = vdwg.mxu0
        %v4451 = vsel %vm1318, %v4403, 0
        %4453 = vmatprep.subr.bf16.mxu0 0
        %4454 = vmatpush1.bf16.msra.mxu0 %v4115
        %4455 = vmatprep.subr.bf16.mxu0 0
        %4456 = vmatpush1.bf16.msra.mxu0 0
        %4457 = vmatprep.subr.bf16.mxu0 0
        %4458 = vmatpush1.bf16.msra.mxu0 0
        %4459 = vmatprep.subr.bf16.mxu0 0
        %4460 = vmatpush1.bf16.msra.mxu0 0
        %4461 = vmatprep.subr.bf16.mxu0 0
        %4462 = vmatpush1.bf16.msra.mxu0 0
        %4463 = vmatprep.subr.bf16.mxu0 0
        %4464 = vmatpush1.bf16.msra.mxu0 0
        %4465 = vmatprep.subr.bf16.mxu0 0
        %4466 = vmatpush1.bf16.msra.mxu0 0
        %4467 = vmatprep.subr.bf16.mxu0 0
        %4468 = vmatpush1.bf16.msra.mxu0 0
        %4469 = vmatprep.subr.bf16.mxu0 0
        %4470 = vmatpush1.bf16.msra.mxu0 0
        %4471 = vmatprep.subr.bf16.mxu0 0
        %4472 = vmatpush1.bf16.msra.mxu0 0
        %4473 = vmatprep.subr.bf16.mxu0 0
        %4474 = vmatpush1.bf16.msra.mxu0 0
        %4475 = vmatprep.subr.bf16.mxu0 0
        %4476 = vmatpush1.bf16.msra.mxu0 0
        %4477 = vmatprep.subr.bf16.mxu0 0
        %4478 = vmatpush1.bf16.msra.mxu0 0
        %4479 = vmatprep.subr.bf16.mxu0 0
        %4480 = vmatpush1.bf16.msra.mxu0 0
        %4481 = vmatprep.subr.bf16.mxu0 0
        %4482 = vmatpush1.bf16.msra.mxu0 0
        %4483 = vmatprep.subr.bf16.mxu0 0
        %4484 = vmatpush1.bf16.msra.mxu0 0
        %4485 = vmatprep.mubr.bf16.mxu0 0
        %4486 = vmatmul.mubr.bf16.gmra.mrb[0].mxu0 %v4451
        %v4487 = vpop.f32.mrb[0].mxu0
        %v4488 = vadd.f32 0.0, %v4487
        %v4489 = vpop.f32.mrb[0].mxu0
        %v4490 = vpop.f32.mrb[0].mxu0
        %v4491 = vadd.f32 0.0, %v4490
        %v4492 = vpop.f32.mrb[0].mxu0
        %4493 = vdwg.mxu0
        %v4495 = vsel %vm1318, %v4404, 0
        %4497 = vmatprep.subr.bf16.mxu0 0
        %4498 = vmatpush1.bf16.msra.mxu0 %v4116
        %4499 = vmatprep.subr.bf16.mxu0 0
        %4500 = vmatpush1.bf16.msra.mxu0 0
        %4501 = vmatprep.subr.bf16.mxu0 0
        %4502 = vmatpush1.bf16.msra.mxu0 0
        %4503 = vmatprep.subr.bf16.mxu0 0
        %4504 = vmatpush1.bf16.msra.mxu0 0
        %4505 = vmatprep.subr.bf16.mxu0 0
        %4506 = vmatpush1.bf16.msra.mxu0 0
        %4507 = vmatprep.subr.bf16.mxu0 0
        %4508 = vmatpush1.bf16.msra.mxu0 0
        %4509 = vmatprep.subr.bf16.mxu0 0
        %4510 = vmatpush1.bf16.msra.mxu0 0
        %4511 = vmatprep.subr.bf16.mxu0 0
        %4512 = vmatpush1.bf16.msra.mxu0 0
        %4513 = vmatprep.subr.bf16.mxu0 0
        %4514 = vmatpush1.bf16.msra.mxu0 0
        %4515 = vmatprep.subr.bf16.mxu0 0
        %4516 = vmatpush1.bf16.msra.mxu0 0
        %4517 = vmatprep.subr.bf16.mxu0 0
        %4518 = vmatpush1.bf16.msra.mxu0 0
        %4519 = vmatprep.subr.bf16.mxu0 0
        %4520 = vmatpush1.bf16.msra.mxu0 0
        %4521 = vmatprep.subr.bf16.mxu0 0
        %4522 = vmatpush1.bf16.msra.mxu0 0
        %4523 = vmatprep.subr.bf16.mxu0 0
        %4524 = vmatpush1.bf16.msra.mxu0 0
        %4525 = vmatprep.subr.bf16.mxu0 0
        %4526 = vmatpush1.bf16.msra.mxu0 0
        %4527 = vmatprep.subr.bf16.mxu0 0
        %4528 = vmatpush1.bf16.msra.mxu0 0
        %4529 = vmatprep.mubr.bf16.mxu0 0
        %4530 = vmatmul.mubr.bf16.gmra.mrb[0].mxu0 %v4495
        %v4531 = vpop.f32.mrb[0].mxu0
        %v4532 = vadd.f32 0.0, %v4531
        %v4533 = vpop.f32.mrb[0].mxu0
        %v4534 = vpop.f32.mrb[0].mxu0
        %v4535 = vadd.f32 0.0, %v4534
        %v4536 = vpop.f32.mrb[0].mxu0
        %4537 = vdwg.mxu0
        %v4539 = vsel %vm1318, %v4405, 0
        %4541 = vmatprep.subr.bf16.mxu0 0
        %4542 = vmatpush1.bf16.msra.mxu0 %v4117
        %4543 = vmatprep.subr.bf16.mxu0 0
        %4544 = vmatpush1.bf16.msra.mxu0 0
        %4545 = vmatprep.subr.bf16.mxu0 0
        %4546 = vmatpush1.bf16.msra.mxu0 0
        %4547 = vmatprep.subr.bf16.mxu0 0
        %4548 = vmatpush1.bf16.msra.mxu0 0
        %4549 = vmatprep.subr.bf16.mxu0 0
        %4550 = vmatpush1.bf16.msra.mxu0 0
        %4551 = vmatprep.subr.bf16.mxu0 0
        %4552 = vmatpush1.bf16.msra.mxu0 0
        %4553 = vmatprep.subr.bf16.mxu0 0
        %4554 = vmatpush1.bf16.msra.mxu0 0
        %4555 = vmatprep.subr.bf16.mxu0 0
        %4556 = vmatpush1.bf16.msra.mxu0 0
        %4557 = vmatprep.subr.bf16.mxu0 0
        %4558 = vmatpush1.bf16.msra.mxu0 0
        %4559 = vmatprep.subr.bf16.mxu0 0
        %4560 = vmatpush1.bf16.msra.mxu0 0
        %4561 = vmatprep.subr.bf16.mxu0 0
        %4562 = vmatpush1.bf16.msra.mxu0 0
        %4563 = vmatprep.subr.bf16.mxu0 0
        %4564 = vmatpush1.bf16.msra.mxu0 0
        %4565 = vmatprep.subr.bf16.mxu0 0
        %4566 = vmatpush1.bf16.msra.mxu0 0
        %4567 = vmatprep.subr.bf16.mxu0 0
        %4568 = vmatpush1.bf16.msra.mxu0 0
        %4569 = vmatprep.subr.bf16.mxu0 0
        %4570 = vmatpush1.bf16.msra.mxu0 0
        %4571 = vmatprep.subr.bf16.mxu0 0
        %4572 = vmatpush1.bf16.msra.mxu0 0
        %4573 = vmatprep.mubr.bf16.mxu0 0
        %4574 = vmatmul.mubr.bf16.gmra.mrb[0].mxu0 %v4539
        %v4575 = vpop.f32.mrb[0].mxu0
        %v4576 = vadd.f32 0.0, %v4575
        %v4577 = vpop.f32.mrb[0].mxu0
        %v4578 = vpop.f32.mrb[0].mxu0
        %v4579 = vadd.f32 0.0, %v4578
        %v4580 = vpop.f32.mrb[0].mxu0
        %4581 = vdwg.mxu0
        %v4582 = vpack.c.bf16 %v4447, %v4444
        %v4583 = vpack.c.bf16 %v4491, %v4488
        %v4584 = vpack.c.bf16 %v4535, %v4532
        %v4585 = vpack.c.bf16 %v4579, %v4576
        %s4586 = scalar_lea.vmem %s9, 48
        %v4587 = vld [vmem:[%s4586] sm:$0xf]
        %v4588 = vld [vmem:[%s4586 + $0x4] sm:$0xf]
        %v4589 = vld [vmem:[%s4586 + $0x8] sm:$0xf]
        %v4590 = vld [vmem:[%s4586 + $0xc] sm:$0xf]
        %v4595 = vunpack.c.l.b16 %v4587
        %v4596 = vunpack.c.l.b16 %v4588
        %v4597 = vunpack.c.l.b16 %v4589
        %v4598 = vunpack.c.l.b16 %v4590
        %v4599 = vpack.c.b16 %v4596, %v4595
        %v4600 = vpack.c.b16 %v4598, %v4597
        %v4604 = vsel %vm1093, %v4582, 0
        %v4607 = vsel %vm1093, %v4583, 0
        %v4610 = vsel %vm1093, %v4584, 0
        %v4613 = vsel %vm1093, %v4585, 0
        %4615 = vmatprep.subr.bf16.mxu0 0
        %4616 = vmatpush1.bf16.msra.mxu0 %v4599
        %4617 = vmatprep.subr.bf16.mxu0 0
        %4618 = vmatpush1.bf16.msra.mxu0 %v4600
        %4619 = vmatprep.subr.bf16.mxu0 0
        %4620 = vmatpush1.bf16.msra.mxu0 0
        %4621 = vmatprep.subr.bf16.mxu0 0
        %4622 = vmatpush1.bf16.msra.mxu0 0
        %4623 = vmatprep.subr.bf16.mxu0 0
        %4624 = vmatpush1.bf16.msra.mxu0 0
        %4625 = vmatprep.subr.bf16.mxu0 0
        %4626 = vmatpush1.bf16.msra.mxu0 0
        %4627 = vmatprep.subr.bf16.mxu0 0
        %4628 = vmatpush1.bf16.msra.mxu0 0
        %4629 = vmatprep.subr.bf16.mxu0 0
        %4630 = vmatpush1.bf16.msra.mxu0 0
        %4631 = vmatprep.subr.bf16.mxu0 0
        %4632 = vmatpush1.bf16.msra.mxu0 0
        %4633 = vmatprep.subr.bf16.mxu0 0
        %4634 = vmatpush1.bf16.msra.mxu0 0
        %4635 = vmatprep.subr.bf16.mxu0 0
        %4636 = vmatpush1.bf16.msra.mxu0 0
        %4637 = vmatprep.subr.bf16.mxu0 0
        %4638 = vmatpush1.bf16.msra.mxu0 0
        %4639 = vmatprep.subr.bf16.mxu0 0
        %4640 = vmatpush1.bf16.msra.mxu0 0
        %4641 = vmatprep.subr.bf16.mxu0 0
        %4642 = vmatpush1.bf16.msra.mxu0 0
        %4643 = vmatprep.subr.bf16.mxu0 0
        %4644 = vmatpush1.bf16.msra.mxu0 0
        %4645 = vmatprep.subr.bf16.mxu0 0
        %4646 = vmatpush1.bf16.msra.mxu0 0
        %4647 = vmatprep.mubr.bf16.mxu0 0
        %4648 = vmatmul.mubr.bf16.gmra.mrb[0].mxu0 %v4604
        %v4649 = vpop.f32.mrb[0].mxu0
        %v4650 = vadd.f32 0.0, %v4649
        %v4651 = vpop.f32.mrb[0].mxu0
        %v4652 = vpop.f32.mrb[0].mxu0
        %v4653 = vadd.f32 0.0, %v4652
        %v4654 = vpop.f32.mrb[0].mxu0
        %4655 = vmatprep.mubr.bf16.mxu0 0
        %4656 = vmatmul.mubr.bf16.gmra.mrb[0].mxu0 %v4607
        %v4657 = vpop.f32.mrb[0].mxu0
        %v4658 = vadd.f32 0.0, %v4657
        %v4659 = vpop.f32.mrb[0].mxu0
        %v4660 = vpop.f32.mrb[0].mxu0
        %v4661 = vadd.f32 0.0, %v4660
        %v4662 = vpop.f32.mrb[0].mxu0
        %4663 = vmatprep.mubr.bf16.mxu0 0
        %4664 = vmatmul.mubr.bf16.gmra.mrb[0].mxu0 %v4610
        %v4665 = vpop.f32.mrb[0].mxu0
        %v4666 = vadd.f32 0.0, %v4665
        %v4667 = vpop.f32.mrb[0].mxu0
        %v4668 = vpop.f32.mrb[0].mxu0
        %v4669 = vadd.f32 0.0, %v4668
        %v4670 = vpop.f32.mrb[0].mxu0
        %4671 = vmatprep.mubr.bf16.mxu0 0
        %4672 = vmatmul.mubr.bf16.gmra.mrb[0].mxu0 %v4613
        %v4673 = vpop.f32.mrb[0].mxu0
        %v4674 = vadd.f32 0.0, %v4673
        %v4675 = vpop.f32.mrb[0].mxu0
        %v4676 = vpop.f32.mrb[0].mxu0
        %v4677 = vadd.f32 0.0, %v4676
        %v4678 = vpop.f32.mrb[0].mxu0
        %4679 = vdwg.mxu0
        %v4680 = vadd.f32 %v3676, %v4650
        %v4681 = vadd.f32 %v3677, %v4653
        %v4682 = vadd.f32 %v3678, %v4658
        %v4683 = vadd.f32 %v3679, %v4661
        %v4684 = vadd.f32 %v3680, %v4666
        %v4685 = vadd.f32 %v3681, %v4669
        %v4686 = vadd.f32 %v3682, %v4674
        %v4687 = vadd.f32 %v3683, %v4677
        %v4688 = vld [vmem:[%s10] sm:$0x1]
        %v4690 = vlaneseq
        %v4691 = vshrl.u32 %v4690, 7
        %v4692 = vsub.s32 0, %v4691
        %v4693 = vrot.slane %v4688, %v4692
        %v4695 = vadd.f32 %v4680, %v4693
        %v4696 = vadd.f32 %v4681, %v4693
        %v4697 = vadd.f32 %v4682, %v4693
        %v4698 = vadd.f32 %v4683, %v4693
        %v4699 = vadd.f32 %v4684, %v4693
        %v4700 = vadd.f32 %v4685, %v4693
        %v4701 = vadd.f32 %v4686, %v4693
        %v4702 = vadd.f32 %v4687, %v4693
        %v4703 = vadd.f32 %v649, %v4695
        %v4704 = vadd.f32 %v650, %v4696
        %v4705 = vadd.f32 %v651, %v4697
        %v4706 = vadd.f32 %v652, %v4698
        %v4707 = vadd.f32 %v653, %v4699
        %v4708 = vadd.f32 %v654, %v4700
        %v4709 = vadd.f32 %v655, %v4701
        %v4710 = vadd.f32 %v656, %v4702
        %v4711 = vld [vmem:[%s11] sm:$0x1]
        %v4712 = vld [vmem:[%s12] sm:$0x1]
        %4713 = vadd.xlane.f32.xlu0 %v4703
        %v4714 = vpop.xlane.xlu0 %4713
        %4715 = vadd.xlane.f32.xlu0 %v4704
        %v4716 = vpop.xlane.xlu0 %4715
        %4717 = vadd.xlane.f32.xlu0 %v4705
        %v4718 = vpop.xlane.xlu0 %4717
        %4719 = vadd.xlane.f32.xlu0 %v4706
        %v4720 = vpop.xlane.xlu0 %4719
        %4721 = vadd.xlane.f32.xlu0 %v4707
        %v4722 = vpop.xlane.xlu0 %4721
        %4723 = vadd.xlane.f32.xlu0 %v4708
        %v4724 = vpop.xlane.xlu0 %4723
        %4725 = vadd.xlane.f32.xlu0 %v4709
        %v4726 = vpop.xlane.xlu0 %4725
        %4727 = vadd.xlane.f32.xlu0 %v4710
        %v4728 = vpop.xlane.xlu0 %4727
        %v4729 = vrcp.pop 128.0
        %v4730 = vmul.f32 %v4714, %v4729
        %v4731 = vmul.f32 %v4716, %v4729
        %v4732 = vmul.f32 %v4718, %v4729
        %v4733 = vmul.f32 %v4720, %v4729
        %v4734 = vmul.f32 %v4722, %v4729
        %v4735 = vmul.f32 %v4724, %v4729
        %v4736 = vmul.f32 %v4726, %v4729
        %v4737 = vmul.f32 %v4728, %v4729
        %v4738 = vsub.f32 %v4703, %v4730
        %v4739 = vsub.f32 %v4704, %v4731
        %v4740 = vsub.f32 %v4705, %v4732
        %v4741 = vsub.f32 %v4706, %v4733
        %v4742 = vsub.f32 %v4707, %v4734
        %v4743 = vsub.f32 %v4708, %v4735
        %v4744 = vsub.f32 %v4709, %v4736
        %v4745 = vsub.f32 %v4710, %v4737
        %v4746 = vmul.f32 %v4738, %v4738
        %v4747 = vmul.f32 %v4739, %v4739
        %v4748 = vmul.f32 %v4740, %v4740
        %v4749 = vmul.f32 %v4741, %v4741
        %v4750 = vmul.f32 %v4742, %v4742
        %v4751 = vmul.f32 %v4743, %v4743
        %v4752 = vmul.f32 %v4744, %v4744
        %v4753 = vmul.f32 %v4745, %v4745
        %4754 = vadd.xlane.f32.xlu0 %v4746
        %v4755 = vpop.xlane.xlu0 %4754
        %4756 = vadd.xlane.f32.xlu0 %v4747
        %v4757 = vpop.xlane.xlu0 %4756
        %4758 = vadd.xlane.f32.xlu0 %v4748
        %v4759 = vpop.xlane.xlu0 %4758
        %4760 = vadd.xlane.f32.xlu0 %v4749
        %v4761 = vpop.xlane.xlu0 %4760
        %4762 = vadd.xlane.f32.xlu0 %v4750
        %v4763 = vpop.xlane.xlu0 %4762
        %4764 = vadd.xlane.f32.xlu0 %v4751
        %v4765 = vpop.xlane.xlu0 %4764
        %4766 = vadd.xlane.f32.xlu0 %v4752
        %v4767 = vpop.xlane.xlu0 %4766
        %4768 = vadd.xlane.f32.xlu0 %v4753
        %v4769 = vpop.xlane.xlu0 %4768
        %v4770 = vmul.f32 %v4755, %v4729
        %v4771 = vmul.f32 %v4757, %v4729
        %v4772 = vmul.f32 %v4759, %v4729
        %v4773 = vmul.f32 %v4761, %v4729
        %v4774 = vmul.f32 %v4763, %v4729
        %v4775 = vmul.f32 %v4765, %v4729
        %v4776 = vmul.f32 %v4767, %v4729
        %v4777 = vmul.f32 %v4769, %v4729
        %v4778 = vadd.f32 %v4770, 1e-05
        %v4779 = vadd.f32 %v4771, 1e-05
        %v4780 = vadd.f32 %v4772, 1e-05
        %v4781 = vadd.f32 %v4773, 1e-05
        %v4782 = vadd.f32 %v4774, 1e-05
        %v4783 = vadd.f32 %v4775, 1e-05
        %v4784 = vadd.f32 %v4776, 1e-05
        %v4785 = vadd.f32 %v4777, 1e-05
        %v4786 = vrsqrt.pop %v4778
        %v4787 = vrsqrt.pop %v4779
        %v4788 = vrsqrt.pop %v4780
        %v4789 = vrsqrt.pop %v4781
        %v4790 = vrsqrt.pop %v4782
        %v4791 = vrsqrt.pop %v4783
        %v4792 = vrsqrt.pop %v4784
        %v4793 = vrsqrt.pop %v4785
        %v4794 = vmul.f32 %v4738, %v4786
        %v4795 = vmul.f32 %v4739, %v4787
        %v4796 = vmul.f32 %v4740, %v4788
        %v4797 = vmul.f32 %v4741, %v4789
        %v4798 = vmul.f32 %v4742, %v4790
        %v4799 = vmul.f32 %v4743, %v4791
        %v4800 = vmul.f32 %v4744, %v4792
        %v4801 = vmul.f32 %v4745, %v4793
        %v4803 = vlaneseq
        %v4804 = vshrl.u32 %v4803, 7
        %v4805 = vsub.s32 0, %v4804
        %v4806 = vrot.slane %v4711, %v4805
        %v4808 = vmul.f32 %v4794, %v4806
        %v4809 = vmul.f32 %v4795, %v4806
        %v4810 = vmul.f32 %v4796, %v4806
        %v4811 = vmul.f32 %v4797, %v4806
        %v4812 = vmul.f32 %v4798, %v4806
        %v4813 = vmul.f32 %v4799, %v4806
        %v4814 = vmul.f32 %v4800, %v4806
        %v4815 = vmul.f32 %v4801, %v4806
        %v4817 = vlaneseq
        %v4818 = vshrl.u32 %v4817, 7
        %v4819 = vsub.s32 0, %v4818
        %v4820 = vrot.slane %v4712, %v4819
        %v4822 = vadd.f32 %v4808, %v4820
        %v4823 = vadd.f32 %v4809, %v4820
        %v4824 = vadd.f32 %v4810, %v4820
        %v4825 = vadd.f32 %v4811, %v4820
        %v4826 = vadd.f32 %v4812, %v4820
        %v4827 = vadd.f32 %v4813, %v4820
        %v4828 = vadd.f32 %v4814, %v4820
        %v4829 = vadd.f32 %v4815, %v4820
        %v4830 = vpack.c.bf16 %v4823, %v4822
        %v4831 = vpack.c.bf16 %v4825, %v4824
        %v4832 = vpack.c.bf16 %v4827, %v4826
        %v4833 = vpack.c.bf16 %v4829, %v4828
        %v4834 = vld [vmem:[%s13] sm:$0xff]
        %v4835 = vld [vmem:[%s13 + $0x8] sm:$0xff]
        %v4836 = vld [vmem:[%s13 + $0x10] sm:$0xff]
        %v4837 = vld [vmem:[%s13 + $0x18] sm:$0xff]
        %v4838 = vld [vmem:[%s13 + $0x20] sm:$0xff]
        %v4839 = vld [vmem:[%s13 + $0x28] sm:$0xff]
        %v4840 = vld [vmem:[%s13 + $0x30] sm:$0xff]
        %v4841 = vld [vmem:[%s13 + $0x38] sm:$0xff]
        %v4842 = vld [vmem:[%s13 + $0x40] sm:$0xff]
        %v4843 = vld [vmem:[%s13 + $0x48] sm:$0xff]
        %v4844 = vld [vmem:[%s13 + $0x50] sm:$0xff]
        %v4845 = vld [vmem:[%s13 + $0x58] sm:$0xff]
        %v4846 = vld [vmem:[%s13 + $0x60] sm:$0xff]
        %v4847 = vld [vmem:[%s13 + $0x68] sm:$0xff]
        %v4848 = vld [vmem:[%s13 + $0x70] sm:$0xff]
        %v4849 = vld [vmem:[%s13 + $0x78] sm:$0xff]
        %v4850 = vld [vmem:[%s14] sm:$0x3]
        %v4852 = vlaneseq
        %v4853 = vshrl.u32 %v4852, 7
        %v4854 = vsub.s32 0, %v4853
        %v4855 = vrot.slane %v4850, %v4854
        %v4856 = vlaneseq
        %v4857 = vshrl.u32 %v4856, 7
        %v4858 = vsub.s32 1, %v4857
        %v4859 = vrot.slane %v4850, %v4858
        %v4878 = vunpack.c.l.b16 %v4834
        %v4879 = vunpack.c.h.b16 %v4834
        %v4880 = vunpack.c.l.b16 %v4835
        %v4881 = vunpack.c.h.b16 %v4835
        %v4882 = vunpack.c.l.b16 %v4836
        %v4883 = vunpack.c.h.b16 %v4836
        %v4884 = vunpack.c.l.b16 %v4837
        %v4885 = vunpack.c.h.b16 %v4837
        %v4886 = vunpack.c.l.b16 %v4838
        %v4887 = vunpack.c.h.b16 %v4838
        %v4888 = vunpack.c.l.b16 %v4839
        %v4889 = vunpack.c.h.b16 %v4839
        %v4890 = vunpack.c.l.b16 %v4840
        %v4891 = vunpack.c.h.b16 %v4840
        %v4892 = vunpack.c.l.b16 %v4841
        %v4893 = vunpack.c.h.b16 %v4841
        %v4894 = vunpack.c.l.b16 %v4842
        %v4895 = vunpack.c.h.b16 %v4842
        %v4896 = vunpack.c.l.b16 %v4843
        %v4897 = vunpack.c.h.b16 %v4843
        %v4898 = vunpack.c.l.b16 %v4844
        %v4899 = vunpack.c.h.b16 %v4844
        %v4900 = vunpack.c.l.b16 %v4845
        %v4901 = vunpack.c.h.b16 %v4845
        %v4902 = vunpack.c.l.b16 %v4846
        %v4903 = vunpack.c.h.b16 %v4846
        %v4904 = vunpack.c.l.b16 %v4847
        %v4905 = vunpack.c.h.b16 %v4847
        %v4906 = vunpack.c.l.b16 %v4848
        %v4907 = vunpack.c.h.b16 %v4848
        %v4908 = vunpack.c.l.b16 %v4849
        %v4909 = vunpack.c.h.b16 %v4849
        %v4910 = vpack.c.b16 %v4880, %v4878
        %v4911 = vpack.c.b16 %v4881, %v4879
        %v4912 = vpack.c.b16 %v4884, %v4882
        %v4913 = vpack.c.b16 %v4885, %v4883
        %v4914 = vpack.c.b16 %v4888, %v4886
        %v4915 = vpack.c.b16 %v4889, %v4887
        %v4916 = vpack.c.b16 %v4892, %v4890
        %v4917 = vpack.c.b16 %v4893, %v4891
        %v4918 = vpack.c.b16 %v4896, %v4894
        %v4919 = vpack.c.b16 %v4897, %v4895
        %v4920 = vpack.c.b16 %v4900, %v4898
        %v4921 = vpack.c.b16 %v4901, %v4899
        %v4922 = vpack.c.b16 %v4904, %v4902
        %v4923 = vpack.c.b16 %v4905, %v4903
        %v4924 = vpack.c.b16 %v4908, %v4906
        %v4925 = vpack.c.b16 %v4909, %v4907
        %4942 = vmatprep.subr.bf16.mxu0 %v4911
        %4943 = vmatpush1.bf16.msra.mxu0 %v4910
        %4944 = vmatprep.subr.bf16.mxu0 %v4913
        %4945 = vmatpush1.bf16.msra.mxu0 %v4912
        %4946 = vmatprep.subr.bf16.mxu0 %v4915
        %4947 = vmatpush1.bf16.msra.mxu0 %v4914
        %4948 = vmatprep.subr.bf16.mxu0 %v4917
        %4949 = vmatpush1.bf16.msra.mxu0 %v4916
        %4950 = vmatprep.subr.bf16.mxu0 %v4919
        %4951 = vmatpush1.bf16.msra.mxu0 %v4918
        %4952 = vmatprep.subr.bf16.mxu0 %v4921
        %4953 = vmatpush1.bf16.msra.mxu0 %v4920
        %4954 = vmatprep.subr.bf16.mxu0 %v4923
        %4955 = vmatpush1.bf16.msra.mxu0 %v4922
        %4956 = vmatprep.subr.bf16.mxu0 %v4925
        %4957 = vmatpush1.bf16.msra.mxu0 %v4924
        %4958 = vmatprep.subr.bf16.mxu0 0
        %4959 = vmatpush1.bf16.msra.mxu0 0
        %4960 = vmatprep.subr.bf16.mxu0 0
        %4961 = vmatpush1.bf16.msra.mxu0 0
        %4962 = vmatprep.subr.bf16.mxu0 0
        %4963 = vmatpush1.bf16.msra.mxu0 0
        %4964 = vmatprep.subr.bf16.mxu0 0
        %4965 = vmatpush1.bf16.msra.mxu0 0
        %4966 = vmatprep.subr.bf16.mxu0 0
        %4967 = vmatpush1.bf16.msra.mxu0 0
        %4968 = vmatprep.subr.bf16.mxu0 0
        %4969 = vmatpush1.bf16.msra.mxu0 0
        %4970 = vmatprep.subr.bf16.mxu0 0
        %4971 = vmatpush1.bf16.msra.mxu0 0
        %4972 = vmatprep.subr.bf16.mxu0 0
        %4973 = vmatpush1.bf16.msra.mxu0 0
        %4974 = vmatprep.mubr.bf16.mxu0 0
        %4975 = vmatmul.mubr.bf16.gmra.mrb[0].mxu0 %v4830
        %v4976 = vpop.f32.mrb[0].mxu0
        %v4977 = vadd.f32 %v4855, %v4976
        %v4978 = vpop.f32.mrb[0].mxu0
        %v4979 = vadd.f32 %v4859, %v4978
        %v4980 = vpop.f32.mrb[0].mxu0
        %v4981 = vadd.f32 %v4855, %v4980
        %v4982 = vpop.f32.mrb[0].mxu0
        %v4983 = vadd.f32 %v4859, %v4982
        %4984 = vmatprep.mubr.bf16.mxu0 0
        %4985 = vmatmul.mubr.bf16.gmra.mrb[0].mxu0 %v4831
        %v4986 = vpop.f32.mrb[0].mxu0
        %v4987 = vadd.f32 %v4855, %v4986
        %v4988 = vpop.f32.mrb[0].mxu0
        %v4989 = vadd.f32 %v4859, %v4988
        %v4990 = vpop.f32.mrb[0].mxu0
        %v4991 = vadd.f32 %v4855, %v4990
        %v4992 = vpop.f32.mrb[0].mxu0
        %v4993 = vadd.f32 %v4859, %v4992
        %4994 = vmatprep.mubr.bf16.mxu0 0
        %4995 = vmatmul.mubr.bf16.gmra.mrb[0].mxu0 %v4832
        %v4996 = vpop.f32.mrb[0].mxu0
        %v4997 = vadd.f32 %v4855, %v4996
        %v4998 = vpop.f32.mrb[0].mxu0
        %v4999 = vadd.f32 %v4859, %v4998
        %v5000 = vpop.f32.mrb[0].mxu0
        %v5001 = vadd.f32 %v4855, %v5000
        %v5002 = vpop.f32.mrb[0].mxu0
        %v5003 = vadd.f32 %v4859, %v5002
        %5004 = vmatprep.mubr.bf16.mxu0 0
        %5005 = vmatmul.mubr.bf16.gmra.mrb[0].mxu0 %v4833
        %v5006 = vpop.f32.mrb[0].mxu0
        %v5007 = vadd.f32 %v4855, %v5006
        %v5008 = vpop.f32.mrb[0].mxu0
        %v5009 = vadd.f32 %v4859, %v5008
        %v5010 = vpop.f32.mrb[0].mxu0
        %v5011 = vadd.f32 %v4855, %v5010
        %v5012 = vpop.f32.mrb[0].mxu0
        %v5013 = vadd.f32 %v4859, %v5012
        %5014 = vdwg.mxu0
        %v5015 = vmax.f32 %v4977, 0.0
        %v5016 = vmax.f32 %v4979, 0.0
        %v5017 = vmax.f32 %v4981, 0.0
        %v5018 = vmax.f32 %v4983, 0.0
        %v5019 = vmax.f32 %v4987, 0.0
        %v5020 = vmax.f32 %v4989, 0.0
        %v5021 = vmax.f32 %v4991, 0.0
        %v5022 = vmax.f32 %v4993, 0.0
        %v5023 = vmax.f32 %v4997, 0.0
        %v5024 = vmax.f32 %v4999, 0.0
        %v5025 = vmax.f32 %v5001, 0.0
        %v5026 = vmax.f32 %v5003, 0.0
        %v5027 = vmax.f32 %v5007, 0.0
        %v5028 = vmax.f32 %v5009, 0.0
        %v5029 = vmax.f32 %v5011, 0.0
        %v5030 = vmax.f32 %v5013, 0.0
        %v5031 = vpack.c.bf16 %v5017, %v5015
        %v5032 = vpack.c.bf16 %v5018, %v5016
        %v5033 = vpack.c.bf16 %v5021, %v5019
        %v5034 = vpack.c.bf16 %v5022, %v5020
        %v5035 = vpack.c.bf16 %v5025, %v5023
        %v5036 = vpack.c.bf16 %v5026, %v5024
        %v5037 = vpack.c.bf16 %v5029, %v5027
        %v5038 = vpack.c.bf16 %v5030, %v5028
        %v5039 = vld [vmem:[%s15] sm:$0xf]
        %v5040 = vld [vmem:[%s15 + $0x4] sm:$0xf]
        %v5041 = vld [vmem:[%s15 + $0x8] sm:$0xf]
        %v5042 = vld [vmem:[%s15 + $0xc] sm:$0xf]
        %v5043 = vld [vmem:[%s15 + $0x10] sm:$0xf]
        %v5044 = vld [vmem:[%s15 + $0x14] sm:$0xf]
        %v5045 = vld [vmem:[%s15 + $0x18] sm:$0xf]
        %v5046 = vld [vmem:[%s15 + $0x1c] sm:$0xf]
        %v5047 = vld [vmem:[%s15 + $0x20] sm:$0xf]
        %v5048 = vld [vmem:[%s15 + $0x24] sm:$0xf]
        %v5049 = vld [vmem:[%s15 + $0x28] sm:$0xf]
        %v5050 = vld [vmem:[%s15 + $0x2c] sm:$0xf]
        %v5051 = vld [vmem:[%s15 + $0x30] sm:$0xf]
        %v5052 = vld [vmem:[%s15 + $0x34] sm:$0xf]
        %v5053 = vld [vmem:[%s15 + $0x38] sm:$0xf]
        %v5054 = vld [vmem:[%s15 + $0x3c] sm:$0xf]
        %v5055 = vld [vmem:[%s15 + $0x40] sm:$0xf]
        %v5056 = vld [vmem:[%s15 + $0x44] sm:$0xf]
        %v5057 = vld [vmem:[%s15 + $0x48] sm:$0xf]
        %v5058 = vld [vmem:[%s15 + $0x4c] sm:$0xf]
        %v5059 = vld [vmem:[%s15 + $0x50] sm:$0xf]
        %v5060 = vld [vmem:[%s15 + $0x54] sm:$0xf]
        %v5061 = vld [vmem:[%s15 + $0x58] sm:$0xf]
        %v5062 = vld [vmem:[%s15 + $0x5c] sm:$0xf]
        %v5063 = vld [vmem:[%s15 + $0x60] sm:$0xf]
        %v5064 = vld [vmem:[%s15 + $0x64] sm:$0xf]
        %v5065 = vld [vmem:[%s15 + $0x68] sm:$0xf]
        %v5066 = vld [vmem:[%s15 + $0x6c] sm:$0xf]
        %v5067 = vld [vmem:[%s15 + $0x70] sm:$0xf]
        %v5068 = vld [vmem:[%s15 + $0x74] sm:$0xf]
        %v5069 = vld [vmem:[%s15 + $0x78] sm:$0xf]
        %v5070 = vld [vmem:[%s15 + $0x7c] sm:$0xf]
        %v5071 = vld [vmem:[%s16] sm:$0x1]
        %v5073 = vlaneseq
        %v5074 = vshrl.u32 %v5073, 7
        %v5075 = vsub.s32 0, %v5074
        %v5076 = vrot.slane %v5071, %v5075
        %v5110 = vunpack.c.l.b16 %v5039
        %v5111 = vunpack.c.l.b16 %v5040
        %v5112 = vunpack.c.l.b16 %v5041
        %v5113 = vunpack.c.l.b16 %v5042
        %v5114 = vunpack.c.l.b16 %v5043
        %v5115 = vunpack.c.l.b16 %v5044
        %v5116 = vunpack.c.l.b16 %v5045
        %v5117 = vunpack.c.l.b16 %v5046
        %v5118 = vunpack.c.l.b16 %v5047
        %v5119 = vunpack.c.l.b16 %v5048
        %v5120 = vunpack.c.l.b16 %v5049
        %v5121 = vunpack.c.l.b16 %v5050
        %v5122 = vunpack.c.l.b16 %v5051
        %v5123 = vunpack.c.l.b16 %v5052
        %v5124 = vunpack.c.l.b16 %v5053
        %v5125 = vunpack.c.l.b16 %v5054
        %v5126 = vunpack.c.l.b16 %v5055
        %v5127 = vunpack.c.l.b16 %v5056
        %v5128 = vunpack.c.l.b16 %v5057
        %v5129 = vunpack.c.l.b16 %v5058
        %v5130 = vunpack.c.l.b16 %v5059
        %v5131 = vunpack.c.l.b16 %v5060
        %v5132 = vunpack.c.l.b16 %v5061
        %v5133 = vunpack.c.l.b16 %v5062
        %v5134 = vunpack.c.l.b16 %v5063
        %v5135 = vunpack.c.l.b16 %v5064
        %v5136 = vunpack.c.l.b16 %v5065
        %v5137 = vunpack.c.l.b16 %v5066
        %v5138 = vunpack.c.l.b16 %v5067
        %v5139 = vunpack.c.l.b16 %v5068
        %v5140 = vunpack.c.l.b16 %v5069
        %v5141 = vunpack.c.l.b16 %v5070
        %v5142 = vpack.c.b16 %v5111, %v5110
        %v5143 = vpack.c.b16 %v5113, %v5112
        %v5144 = vpack.c.b16 %v5115, %v5114
        %v5145 = vpack.c.b16 %v5117, %v5116
        %v5146 = vpack.c.b16 %v5119, %v5118
        %v5147 = vpack.c.b16 %v5121, %v5120
        %v5148 = vpack.c.b16 %v5123, %v5122
        %v5149 = vpack.c.b16 %v5125, %v5124
        %v5150 = vpack.c.b16 %v5127, %v5126
        %v5151 = vpack.c.b16 %v5129, %v5128
        %v5152 = vpack.c.b16 %v5131, %v5130
        %v5153 = vpack.c.b16 %v5133, %v5132
        %v5154 = vpack.c.b16 %v5135, %v5134
        %v5155 = vpack.c.b16 %v5137, %v5136
        %v5156 = vpack.c.b16 %v5139, %v5138
        %v5157 = vpack.c.b16 %v5141, %v5140
        %5174 = vmatprep.subr.bf16.mxu0 0
        %5175 = vmatpush1.bf16.msra.mxu0 %v5142
        %5176 = vmatprep.subr.bf16.mxu0 0
        %5177 = vmatpush1.bf16.msra.mxu0 %v5143
        %5178 = vmatprep.subr.bf16.mxu0 0
        %5179 = vmatpush1.bf16.msra.mxu0 %v5144
        %5180 = vmatprep.subr.bf16.mxu0 0
        %5181 = vmatpush1.bf16.msra.mxu0 %v5145
        %5182 = vmatprep.subr.bf16.mxu0 0
        %5183 = vmatpush1.bf16.msra.mxu0 %v5146
        %5184 = vmatprep.subr.bf16.mxu0 0
        %5185 = vmatpush1.bf16.msra.mxu0 %v5147
        %5186 = vmatprep.subr.bf16.mxu0 0
        %5187 = vmatpush1.bf16.msra.mxu0 %v5148
        %5188 = vmatprep.subr.bf16.mxu0 0
        %5189 = vmatpush1.bf16.msra.mxu0 %v5149
        %5190 = vmatprep.subr.bf16.mxu0 0
        %5191 = vmatpush1.bf16.msra.mxu0 %v5150
        %5192 = vmatprep.subr.bf16.mxu0 0
        %5193 = vmatpush1.bf16.msra.mxu0 %v5151
        %5194 = vmatprep.subr.bf16.mxu0 0
        %5195 = vmatpush1.bf16.msra.mxu0 %v5152
        %5196 = vmatprep.subr.bf16.mxu0 0
        %5197 = vmatpush1.bf16.msra.mxu0 %v5153
        %5198 = vmatprep.subr.bf16.mxu0 0
        %5199 = vmatpush1.bf16.msra.mxu0 %v5154
        %5200 = vmatprep.subr.bf16.mxu0 0
        %5201 = vmatpush1.bf16.msra.mxu0 %v5155
        %5202 = vmatprep.subr.bf16.mxu0 0
        %5203 = vmatpush1.bf16.msra.mxu0 %v5156
        %5204 = vmatprep.subr.bf16.mxu0 0
        %5205 = vmatpush1.bf16.msra.mxu0 %v5157
        %5206 = vmatprep.mubr.bf16.mxu0 %v5032
        %5207 = vmatmul.mubr.bf16.gmra.mrb[0].mxu0 %v5031
        %v5208 = vpop.f32.mrb[0].mxu0
        %v5209 = vadd.f32 %v5076, %v5208
        %v5210 = vpop.f32.mrb[0].mxu0
        %v5211 = vpop.f32.mrb[0].mxu0
        %v5212 = vadd.f32 %v5076, %v5211
        %v5213 = vpop.f32.mrb[0].mxu0
        %5214 = vmatprep.mubr.bf16.mxu0 %v5034
        %5215 = vmatmul.mubr.bf16.gmra.mrb[0].mxu0 %v5033
        %v5216 = vpop.f32.mrb[0].mxu0
        %v5217 = vadd.f32 %v5076, %v5216
        %v5218 = vpop.f32.mrb[0].mxu0
        %v5219 = vpop.f32.mrb[0].mxu0
        %v5220 = vadd.f32 %v5076, %v5219
        %v5221 = vpop.f32.mrb[0].mxu0
        %5222 = vmatprep.mubr.bf16.mxu0 %v5036
        %5223 = vmatmul.mubr.bf16.gmra.mrb[0].mxu0 %v5035
        %v5224 = vpop.f32.mrb[0].mxu0
        %v5225 = vadd.f32 %v5076, %v5224
        %v5226 = vpop.f32.mrb[0].mxu0
        %v5227 = vpop.f32.mrb[0].mxu0
        %v5228 = vadd.f32 %v5076, %v5227
        %v5229 = vpop.f32.mrb[0].mxu0
        %5230 = vmatprep.mubr.bf16.mxu0 %v5038
        %5231 = vmatmul.mubr.bf16.gmra.mrb[0].mxu0 %v5037
        %v5232 = vpop.f32.mrb[0].mxu0
        %v5233 = vadd.f32 %v5076, %v5232
        %v5234 = vpop.f32.mrb[0].mxu0
        %v5235 = vpop.f32.mrb[0].mxu0
        %v5236 = vadd.f32 %v5076, %v5235
        %v5237 = vpop.f32.mrb[0].mxu0
        %5238 = vdwg.mxu0
        %v5239 = vadd.f32 %v4822, %v5209
        %v5240 = vadd.f32 %v4823, %v5212
        %v5241 = vadd.f32 %v4824, %v5217
        %v5242 = vadd.f32 %v4825, %v5220
        %v5243 = vadd.f32 %v4826, %v5225
        %v5244 = vadd.f32 %v4827, %v5228
        %v5245 = vadd.f32 %v4828, %v5233
        %v5246 = vadd.f32 %v4829, %v5236
        %v5247 = vld [vmem:[%s17] sm:$0x1]
        %v5248 = vld [vmem:[%s18] sm:$0x1]
        %5249 = vadd.xlane.f32.xlu0 %v5239
        %v5250 = vpop.xlane.xlu0 %5249
        %5251 = vadd.xlane.f32.xlu0 %v5240
        %v5252 = vpop.xlane.xlu0 %5251
        %5253 = vadd.xlane.f32.xlu0 %v5241
        %v5254 = vpop.xlane.xlu0 %5253
        %5255 = vadd.xlane.f32.xlu0 %v5242
        %v5256 = vpop.xlane.xlu0 %5255
        %5257 = vadd.xlane.f32.xlu0 %v5243
        %v5258 = vpop.xlane.xlu0 %5257
        %5259 = vadd.xlane.f32.xlu0 %v5244
        %v5260 = vpop.xlane.xlu0 %5259
        %5261 = vadd.xlane.f32.xlu0 %v5245
        %v5262 = vpop.xlane.xlu0 %5261
        %5263 = vadd.xlane.f32.xlu0 %v5246
        %v5264 = vpop.xlane.xlu0 %5263
        %v5265 = vmul.f32 %v5250, %v4729
        %v5266 = vmul.f32 %v5252, %v4729
        %v5267 = vmul.f32 %v5254, %v4729
        %v5268 = vmul.f32 %v5256, %v4729
        %v5269 = vmul.f32 %v5258, %v4729
        %v5270 = vmul.f32 %v5260, %v4729
        %v5271 = vmul.f32 %v5262, %v4729
        %v5272 = vmul.f32 %v5264, %v4729
        %v5273 = vsub.f32 %v5239, %v5265
        %v5274 = vsub.f32 %v5240, %v5266
        %v5275 = vsub.f32 %v5241, %v5267
        %v5276 = vsub.f32 %v5242, %v5268
        %v5277 = vsub.f32 %v5243, %v5269
        %v5278 = vsub.f32 %v5244, %v5270
        %v5279 = vsub.f32 %v5245, %v5271
        %v5280 = vsub.f32 %v5246, %v5272
        %v5281 = vmul.f32 %v5273, %v5273
        %v5282 = vmul.f32 %v5274, %v5274
        %v5283 = vmul.f32 %v5275, %v5275
        %v5284 = vmul.f32 %v5276, %v5276
        %v5285 = vmul.f32 %v5277, %v5277
        %v5286 = vmul.f32 %v5278, %v5278
        %v5287 = vmul.f32 %v5279, %v5279
        %v5288 = vmul.f32 %v5280, %v5280
        %5289 = vadd.xlane.f32.xlu0 %v5281
        %v5290 = vpop.xlane.xlu0 %5289
        %5291 = vadd.xlane.f32.xlu0 %v5282
        %v5292 = vpop.xlane.xlu0 %5291
        %5293 = vadd.xlane.f32.xlu0 %v5283
        %v5294 = vpop.xlane.xlu0 %5293
        %5295 = vadd.xlane.f32.xlu0 %v5284
        %v5296 = vpop.xlane.xlu0 %5295
        %5297 = vadd.xlane.f32.xlu0 %v5285
        %v5298 = vpop.xlane.xlu0 %5297
        %5299 = vadd.xlane.f32.xlu0 %v5286
        %v5300 = vpop.xlane.xlu0 %5299
        %5301 = vadd.xlane.f32.xlu0 %v5287
        %v5302 = vpop.xlane.xlu0 %5301
        %5303 = vadd.xlane.f32.xlu0 %v5288
        %v5304 = vpop.xlane.xlu0 %5303
        %v5305 = vmul.f32 %v5290, %v4729
        %v5306 = vmul.f32 %v5292, %v4729
        %v5307 = vmul.f32 %v5294, %v4729
        %v5308 = vmul.f32 %v5296, %v4729
        %v5309 = vmul.f32 %v5298, %v4729
        %v5310 = vmul.f32 %v5300, %v4729
        %v5311 = vmul.f32 %v5302, %v4729
        %v5312 = vmul.f32 %v5304, %v4729
        %v5313 = vadd.f32 %v5305, 1e-05
        %v5314 = vadd.f32 %v5306, 1e-05
        %v5315 = vadd.f32 %v5307, 1e-05
        %v5316 = vadd.f32 %v5308, 1e-05
        %v5317 = vadd.f32 %v5309, 1e-05
        %v5318 = vadd.f32 %v5310, 1e-05
        %v5319 = vadd.f32 %v5311, 1e-05
        %v5320 = vadd.f32 %v5312, 1e-05
        %v5321 = vrsqrt.pop %v5313
        %v5322 = vrsqrt.pop %v5314
        %v5323 = vrsqrt.pop %v5315
        %v5324 = vrsqrt.pop %v5316
        %v5325 = vrsqrt.pop %v5317
        %v5326 = vrsqrt.pop %v5318
        %v5327 = vrsqrt.pop %v5319
        %v5328 = vrsqrt.pop %v5320
        %v5329 = vmul.f32 %v5273, %v5321
        %v5330 = vmul.f32 %v5274, %v5322
        %v5331 = vmul.f32 %v5275, %v5323
        %v5332 = vmul.f32 %v5276, %v5324
        %v5333 = vmul.f32 %v5277, %v5325
        %v5334 = vmul.f32 %v5278, %v5326
        %v5335 = vmul.f32 %v5279, %v5327
        %v5336 = vmul.f32 %v5280, %v5328
        %v5338 = vlaneseq
        %v5339 = vshrl.u32 %v5338, 7
        %v5340 = vsub.s32 0, %v5339
        %v5341 = vrot.slane %v5247, %v5340
        %v5343 = vmul.f32 %v5329, %v5341
        %v5344 = vmul.f32 %v5330, %v5341
        %v5345 = vmul.f32 %v5331, %v5341
        %v5346 = vmul.f32 %v5332, %v5341
        %v5347 = vmul.f32 %v5333, %v5341
        %v5348 = vmul.f32 %v5334, %v5341
        %v5349 = vmul.f32 %v5335, %v5341
        %v5350 = vmul.f32 %v5336, %v5341
        %v5352 = vlaneseq
        %v5353 = vshrl.u32 %v5352, 7
        %v5354 = vsub.s32 0, %v5353
        %v5355 = vrot.slane %v5248, %v5354
        %v5357 = vadd.f32 %v5343, %v5355
        %v5358 = vadd.f32 %v5344, %v5355
        %v5359 = vadd.f32 %v5345, %v5355
        %v5360 = vadd.f32 %v5346, %v5355
        %v5361 = vadd.f32 %v5347, %v5355
        %v5362 = vadd.f32 %v5348, %v5355
        %v5363 = vadd.f32 %v5349, %v5355
        %v5364 = vadd.f32 %v5350, %v5355
        %v5365 = vld [vmem:[%s645] sm:$0xff]
        %v5366 = vld [vmem:[%s645 + $0x8] sm:$0xff]
        %v5367 = vld [vmem:[%s645 + $0x10] sm:$0xff]
        %v5368 = vld [vmem:[%s645 + $0x18] sm:$0xff]
        %v5369 = vld [vmem:[%s645 + $0x20] sm:$0xff]
        %v5370 = vld [vmem:[%s645 + $0x28] sm:$0xff]
        %v5371 = vld [vmem:[%s645 + $0x30] sm:$0xff]
        %v5372 = vld [vmem:[%s645 + $0x38] sm:$0xff]
        %5374 = vset.pattern.permute.xlu0 0
        %5375 = vperm.xlu0 %5374, %v5365
        %v5376 = vpop.permute.xlu0 %5375
        %5379 = vset.pattern.permute.xlu0 0
        %5380 = vperm.xlu0 %5379, %v5366
        %v5381 = vpop.permute.xlu0 %5380
        %5384 = vset.pattern.permute.xlu0 0
        %5385 = vperm.xlu0 %5384, %v5367
        %v5386 = vpop.permute.xlu0 %5385
        %5389 = vset.pattern.permute.xlu0 0
        %5390 = vperm.xlu0 %5389, %v5368
        %v5391 = vpop.permute.xlu0 %5390
        %5394 = vset.pattern.permute.xlu0 0
        %5395 = vperm.xlu0 %5394, %v5369
        %v5396 = vpop.permute.xlu0 %5395
        %5399 = vset.pattern.permute.xlu0 0
        %5400 = vperm.xlu0 %5399, %v5370
        %v5401 = vpop.permute.xlu0 %5400
        %5404 = vset.pattern.permute.xlu0 0
        %5405 = vperm.xlu0 %5404, %v5371
        %v5406 = vpop.permute.xlu0 %5405
        %5409 = vset.pattern.permute.xlu0 0
        %5410 = vperm.xlu0 %5409, %v5372
        %v5411 = vpop.permute.xlu0 %5410
        %v5413 = vmul.f32 %v5357, %v5376
        %v5414 = vmul.f32 %v5358, %v5381
        %v5415 = vmul.f32 %v5359, %v5386
        %v5416 = vmul.f32 %v5360, %v5391
        %v5417 = vmul.f32 %v5361, %v5396
        %v5418 = vmul.f32 %v5362, %v5401
        %v5419 = vmul.f32 %v5363, %v5406
        %v5420 = vmul.f32 %v5364, %v5411
        %5421 = vst [vmem:[%s628] sm:$0xff] %v5413
        %5422 = vst [vmem:[%s628 + $0x8] sm:$0xff] %v5414
        %5423 = vst [vmem:[%s628 + $0x10] sm:$0xff] %v5415
        %5424 = vst [vmem:[%s628 + $0x18] sm:$0xff] %v5416
        %5425 = vst [vmem:[%s628 + $0x20] sm:$0xff] %v5417
        %5426 = vst [vmem:[%s628 + $0x28] sm:$0xff] %v5418
        %5427 = vst [vmem:[%s628 + $0x30] sm:$0xff] %v5419
        %5428 = vst [vmem:[%s628 + $0x38] sm:$0xff] %v5420
        %s5429 = sand.u32 %s455, 1
        %s5430 = scalar_lea.sflag [#allocation3], %s5429
        %s5431 = sand.u32 %s455, 1
        %s5432 = smul.addr %s5431, 64
        %s5433 = scalar_lea.vmem [#allocation2], %s5432
        // Predicated region
        $region97: #{tpu_custom_call.1} parent=95 // pred_check
          %p5434 = pneg %p465
        $region98: #{tpu_custom_call.1} parent=95 // pred_check_branch
          %5436 = sbr.rel (%p5434) target = $region100
        $region99: #{tpu_custom_call.1} parent=95 // pred_region
          %s5437 = smul.u32 4, %s33
          %s5439 = ssub.s32 1024, 1024
          %5440 = vsyncadd %s5430, %s5439
          %s5441 = smul.addr %s5437, 2
          %s5442 = smul.addr %s5441, 128
          %s5443 = scalar_lea.hbm %s19, %s5442
          %s5444 = sshll.u32 %s5433, 4
          %s5445 = int_to_ptr.vmem [resolvable:$true] %s5444
          %5450 = dma.vmem_to_hbm [thread:$0]  %s5445, 1024, %s5443, %s5430, 128, 128, 8
        $region100: #{tpu_custom_call.1} parent=95 // pred_fallthru
          _
      $region96: #{tpu_custom_call.1} parent=5 // pred_fallthru
        _
      %p5451 = scmp.le.s32.totalorder 2, %s28
      // Predicated region
      $region101: #{tpu_custom_call.1} parent=5 // pred_check
        %p5452 = pneg %p5451
      $region102: #{tpu_custom_call.1} parent=5 // pred_check_branch
        %5454 = sbr.rel (%p5452) target = $region104
      $region103: #{tpu_custom_call.1} parent=5 // pred_region
        %s5455 = ssub.s32 %s28, 2
        // Predicated region
        $region105: #{tpu_custom_call.1} parent=103 // pred_check
          %p5456 = pneg %p471
        $region106: #{tpu_custom_call.1} parent=103 // pred_check_branch
          %5458 = sbr.rel (%p5456) target = $region108
        $region107: #{tpu_custom_call.1} parent=103 // pred_region
          %s5459 = sand.u32 %s456, 1
          %s5460 = scalar_lea.sflag [#allocation3], %s5459
          %s5461 = sand.u32 %s456, 1
          %s5462 = smul.addr %s5461, 64
          %s5463 = scalar_lea.vmem [#allocation2], %s5462
          %5464 = dma.done %s5460, 1024
        $region108: #{tpu_custom_call.1} parent=103 // pred_fallthru
          _
      $region104: #{tpu_custom_call.1} parent=5 // pred_fallthru
        _
    $region6: #{tpu_custom_call.1} parent=1 // loop_footer
      %s32 = sadd.s32 1, %s28
    $region7: #{tpu_custom_call.1} parent=1 // loop_footer_branch
      %27 = sbr.rel target = $region3
    $region8: #{tpu_custom_call.1} parent=1 // loop_exit
      _
    %5465 = vsyncpa [#allocation3], 1
    %s5466 = scalar_lea.sflag [#allocation3], 1
    %5467 = vsyncpa %s5466, 1

</llo_original>
